<compile_context>
chip_gen: v7x
topology: tpu7x:2x2x1
jax: 0.10.0
libtpu: 0.0.40
codegen_flags: <defaults>
</compile_context>

<pallas_src>
import functools

import jax
import jax.numpy as jnp
from jax import lax
from jax.experimental import pallas as pl
from jax.experimental.pallas import tpu as pltpu


def _round_up(x, m):
    return ((x + m - 1) // m) * m


def _deepjit_kernel(x_ref, wconv_ref, bias_ref, w2_ref, b2_ref, out_ref,
                    xpad_ref, *, TB, Lp, L, E, Fp, filter_sizes):
    """One batch tile: TB sequences of Lp (padded) time steps, all branches fused."""
    NR = TB * Lp
    nb = len(filter_sizes)
    max_fs = max(filter_sizes)
    pad_rows = xpad_ref.shape[0] - NR

    # Stage the bf16 block once into the sublane-padded scratch (no f32 upcast,
    # no im2col materialization). Tail rows only feed time positions that are
    # masked below; zeroing 8 rows is negligible, so do it unconditionally.
    if pad_rows:
        xpad_ref[NR:, :] = jnp.zeros((pad_rows, E), jnp.bfloat16)
    xpad_ref[:NR, :] = x_ref[...]

    # Per-tap matmul accumulation: conv branch j at row r = b*Lp + t is
    #   sum_{f < fs_j}  x[r + f, :] @ W_j[f]
    # Each shifted slice is loaded exactly once and consumed by the MXU.
    accs = [None] * nb
    for f in range(max_fs):
        xf = xpad_ref[f:f + NR, :]                                    # (NR, E) bf16
        for j, fs in enumerate(filter_sizes):
            if f < fs:
                w_tap = wconv_ref[f * E:(f + 1) * E, j * Fp:(j + 1) * Fp]
                d = jnp.dot(xf, w_tap, preferred_element_type=jnp.float32)
                accs[j] = d if accs[j] is None else accs[j] + d

    # bias + ReLU + valid-time mask + max over time, per branch.
    # Masked (invalid / padded / cross-sequence) positions become 0, which can
    # never change the max of post-ReLU (>= 0) values.
    t_idx = lax.broadcasted_iota(jnp.int32, (1, Lp, 1), 1)            # hoisted once
    pooled = []
    for j, fs in enumerate(filter_sizes):
        a = jnp.maximum(accs[j] + bias_ref[:, j * Fp:(j + 1) * Fp], 0.0)
        a = a.reshape(TB, Lp, Fp)
        a = jnp.where(t_idx < (L - fs + 1), a, 0.0)
        pooled.append(jnp.max(a, axis=1))                             # (TB, Fp)
    feats = jnp.concatenate(pooled, axis=-1)                          # (TB, nb*Fp) f32

    # Attention + classifier. w2 column 0 = w_attn, column 1 = w_cls, rest zero;
    # since attn is a per-row scalar:  logits = sigmoid(s_a + b_a) * s_c + b_c.
    scores = jnp.dot(feats, w2_ref[...], preferred_element_type=jnp.float32)
    s_a = scores[:, 0:1] + b2_ref[0:1, 0:1]
    s_c = scores[:, 1:2]
    attn = 1.0 / (1.0 + jnp.exp(-s_a))                                # (TB, 1)
    logit = attn * s_c + b2_ref[0:1, 1:2]                             # (TB, 1)

    # Single lane-dense output slab: lane 0 = logit, lane 1 = attn, rest 0.
    lane = lax.broadcasted_iota(jnp.int32, (TB, 128), 1)
    out_ref[...] = jnp.where(lane == 0, logit,
                             jnp.where(lane == 1, attn, 0.0))


def deepjit_forward(token_ids, embedding, conv_ws, conv_bs,
                    attn_w, attn_b, cls_w, cls_b, filter_sizes):
    """token_ids (B, L) int32 -> (logits (B,) f32, attn_weights (B, 1) f32)."""
    B, L = token_ids.shape
    E = embedding.shape[1]
    F = conv_ws[0].shape[0]
    nb = len(filter_sizes)
    max_fs = max(filter_sizes)
    assert L >= max_fs, "sequence length must be >= the largest filter size"

    Fp = _round_up(F, 128)                       # lane-dense filter count
    Lp = _round_up(L, 8)                         # sublane-aligned seq length
    pad_rows = _round_up(max_fs - 1, 8) if max_fs > 1 else 0

    # ---- VMEM-budget-driven batch-tile size (TB sequences per grid step) ----
    try:
        info = pltpu.get_tpu_info()
        vmem_cap = int(getattr(info, "vmem_capacity_bytes", 64 * 1024 * 1024))
    except Exception:                            # pragma: no cover - CPU tracing etc.
        vmem_cap = 64 * 1024 * 1024              # v7x-safe fallback
    budget = min(40 * 1024 * 1024, int(0.45 * vmem_cap))
    bytes_per_seq = Lp * (2 * 2 * E              # double-buffered bf16 input block
                          + 2 * E                # bf16 padded-x scratch
                          + nb * Fp * 4          # f32 per-branch accumulators
                          + 2 * Fp * 4)          # relu/mask temporaries
    target_rows = 1024                           # MXU M rows per step (sweepable)
    tb = max(8, _round_up(max(target_rows // Lp, 1), 8))
    tb = min(tb, max(8, (budget // max(bytes_per_seq, 1)) // 8 * 8))
    tb = min(tb, _round_up(B, 8))
    if _round_up(B, 8) >= 16:                    # keep >= 2 grid steps (2-TC / megacore)
        tb = min(tb, max(8, (_round_up(B, 8) // 2) // 8 * 8))
    TB = tb
    Bp = _round_up(B, TB)
    grid = Bp // TB

    # ---- one-time parameter repack (bf16 conv weights, lane-padded to Fp) ----
    wcat = jnp.zeros((max_fs * E, nb * Fp), jnp.float32)     # rows f*E..: tap f
    bias_row = jnp.zeros((1, nb * Fp), jnp.float32)
    w2 = jnp.zeros((nb * Fp, 128), jnp.float32)              # col 0: attn, col 1: cls
    b2row = jnp.zeros((1, 128), jnp.float32)
    for j, fs in enumerate(filter_sizes):
        # torch Conv2d weight (F, 1, fs, E) -> per-tap layout (fs*E, F)
        wj = conv_ws[j][:, 0].transpose(1, 2, 0).reshape(fs * E, F)
        wcat = wcat.at[:fs * E, j * Fp:j * Fp + F].set(wj)
        bias_row = bias_row.at[0, j * Fp:j * Fp + F].set(conv_bs[j])
        w2 = w2.at[j * Fp:j * Fp + F, 0].set(attn_w[0, j * F:(j + 1) * F])
        w2 = w2.at[j * Fp:j * Fp + F, 1].set(cls_w[0, j * F:(j + 1) * F])
    wcat = wcat.astype(jnp.bfloat16)
    b2row = b2row.at[0, 0].set(attn_b[0]).at[0, 1].set(cls_b[0])

    # ---- embedding gather (plain-JAX glue) -> lane-dense bf16 (Bp*Lp, E) slab ----
    # TODO(synk): fuse the gather in-kernel once a batched row-gather DMA exists.
    tok = jnp.zeros((Bp, Lp), token_ids.dtype).at[:B, :L].set(token_ids)
    emb_flat = jnp.take(embedding, tok, axis=0).astype(jnp.bfloat16).reshape(Bp * Lp, E)

    kernel = functools.partial(
        _deepjit_kernel, TB=TB, Lp=Lp, L=L, E=E, Fp=Fp,
        filter_sizes=tuple(filter_sizes))

    NR = TB * Lp
    weight_bytes = (wcat.size * 2 + bias_row.size * 4 + w2.size * 4 + b2row.size * 4)
    step_bytes = (2 * NR * E * 2 + (NR + pad_rows) * E * 2
                  + nb * NR * Fp * 4 + 2 * NR * Fp * 4
                  + 2 * weight_bytes + 2 * TB * 128 * 4)
    vmem_limit = int(min(max(32 * 1024 * 1024, step_bytes + 8 * 1024 * 1024),
                         max(32 * 1024 * 1024, int(0.8 * vmem_cap))))

    conv_flops = 2 * Bp * Lp * E * Fp * sum(filter_sizes)
    head_flops = 2 * Bp * nb * Fp * 128
    bytes_accessed = int(Bp * Lp * E * 2 + grid * weight_bytes + Bp * 128 * 4)

    out = pl.pallas_call(
        kernel,
        out_shape=jax.ShapeDtypeStruct((Bp, 128), jnp.float32),
        grid_spec=pltpu.PrefetchScalarGridSpec(
            num_scalar_prefetch=0,
            grid=(grid,),
            in_specs=[
                pl.BlockSpec((TB * Lp, E), lambda i: (i, 0)),
                pl.BlockSpec((max_fs * E, nb * Fp), lambda i: (0, 0)),
                pl.BlockSpec((1, nb * Fp), lambda i: (0, 0)),
                pl.BlockSpec((nb * Fp, 128), lambda i: (0, 0)),
                pl.BlockSpec((1, 128), lambda i: (0, 0)),
            ],
            out_specs=pl.BlockSpec((TB, 128), lambda i: (i, 0)),
            scratch_shapes=[pltpu.VMEM((TB * Lp + pad_rows, E), jnp.bfloat16)],
        ),
        compiler_params=pltpu.CompilerParams(
            dimension_semantics=("parallel",),
            vmem_limit_bytes=vmem_limit),
        cost_estimate=pl.CostEstimate(
            flops=int(conv_flops + head_flops),
            transcendentals=int(Bp),
            bytes_accessed=bytes_accessed),
    )(emb_flat, wcat, bias_row, w2, b2row)

    return out[:B, 0], out[:B, 1:2]


def _reference_forward(token_ids, embedding, conv_ws, conv_bs,
                       attn_w, attn_b, cls_w, cls_b, filter_sizes):
    """Plain-JAX mirror of the PyTorch DeepJITModel (eval mode), bf16 conv inputs."""
    emb = jnp.take(embedding, token_ids, axis=0).astype(jnp.bfloat16)    # (B, L, E)
    B, L, E = emb.shape
    outs = []
    for fs, w, b in zip(filter_sizes, conv_ws, conv_bs):
        wj = w[:, 0].astype(jnp.bfloat16)                                # (F, fs, E)
        t_out = L - fs + 1
        acc = jnp.zeros((B, t_out, w.shape[0]), jnp.float32)
        for i in range(fs):
            acc = acc + jnp.einsum("ble,fe->blf", emb[:, i:i + t_out, :],
                                   wj[:, i, :],
                                   preferred_element_type=jnp.float32)
        acc = jnp.maximum(acc + b[None, None, :], 0.0)
        outs.append(jnp.max(acc, axis=1))
    feats = jnp.concatenate(outs, axis=1)                                # (B, nb*F) f32
    attn_logit = jnp.sum(feats * attn_w, axis=-1, keepdims=True) + attn_b
    attn = jax.nn.sigmoid(attn_logit)                                    # (B, 1)
    weighted = feats * attn
    logits = jnp.sum(weighted * cls_w, axis=-1) + cls_b                  # (B,)
    return logits, attn


if __name__ == "__main__":
    vocab_size = 5000
    embed_dim = 128          # DeepJITModel default
    num_filters = 100        # DeepJITModel default
    filter_sizes = (3, 4, 5)
    batch = 8
    seq_len = 16

    key = jax.random.PRNGKey(0)
    keys = jax.random.split(key, 12)
    embedding = jax.random.normal(keys[0], (vocab_size, embed_dim), jnp.float32)
    conv_ws, conv_bs = [], []
    for i, fs in enumerate(filter_sizes):
        conv_ws.append(0.05 * jax.random.normal(
            keys[1 + 2 * i], (num_filters, 1, fs, embed_dim), jnp.float32))
        conv_bs.append(0.05 * jax.random.normal(
            keys[2 + 2 * i], (num_filters,), jnp.float32))
    feat_dim = num_filters * len(filter_sizes)
    attn_w = 0.05 * jax.random.normal(keys[7], (1, feat_dim), jnp.float32)
    attn_b = 0.05 * jax.random.normal(keys[8], (1,), jnp.float32)
    cls_w = 0.05 * jax.random.normal(keys[9], (1, feat_dim), jnp.float32)
    cls_b = 0.05 * jax.random.normal(keys[10], (1,), jnp.float32)
    token_ids = jax.random.randint(keys[11], (batch, seq_len), 0, vocab_size,
                                   jnp.int32)

    logits, attn = deepjit_forward(token_ids, embedding, conv_ws, conv_bs,
                                   attn_w, attn_b, cls_w, cls_b, filter_sizes)
    logits = jax.block_until_ready(logits)
    attn = jax.block_until_ready(attn)

    ref_logits, ref_attn = _reference_forward(token_ids, embedding, conv_ws,
                                              conv_bs, attn_w, attn_b,
                                              cls_w, cls_b, filter_sizes)
    assert logits.shape == (batch,)
    assert attn.shape == (batch, 1)
    assert jnp.allclose(logits, ref_logits, atol=2e-3, rtol=2e-3)
    assert jnp.allclose(attn, ref_attn, atol=2e-3, rtol=2e-3)
    print("KERNEL_OK")
</pallas_src>

<mosaic_0001>
module attributes {stable_mosaic.version = 11 : i64} {
  func.func @_deepjit_kernel(%arg0: i32, %arg1: memref<128x128xbf16, #tpu.memory_space<vmem>>, %arg2: memref<640x384xbf16, #tpu.memory_space<vmem>>, %arg3: memref<1x384xf32, #tpu.memory_space<vmem>>, %arg4: memref<384x128xf32, #tpu.memory_space<vmem>>, %arg5: memref<1x128xf32, #tpu.memory_space<vmem>>, %arg6: memref<8x128xf32, #tpu.memory_space<vmem>>, %arg7: memref<136x128xbf16, #tpu.memory_space<vmem>>) attributes {dimension_semantics = [#tpu.dimension_semantics<parallel>], iteration_bounds = array<i64: 1>, scalar_prefetch = 0 : i64, scratch_operands = 1 : i64, tpu.core_type = #tpu.core_type<tc>, window_params = [{transform_indices = @transform_0, window_bounds = array<i64: 128, 128>}, {pipeline_mode = #tpu.pipeline_mode<synchronous>, transform_indices = @transform_1, window_bounds = array<i64: 640, 384>}, {pipeline_mode = #tpu.pipeline_mode<synchronous>, transform_indices = @transform_2, window_bounds = array<i64: 1, 384>}, {pipeline_mode = #tpu.pipeline_mode<synchronous>, transform_indices = @transform_3, window_bounds = array<i64: 384, 128>}, {pipeline_mode = #tpu.pipeline_mode<synchronous>, transform_indices = @transform_4, window_bounds = array<i64: 1, 128>}, {transform_indices = @transform_5, window_bounds = array<i64: 8, 128>}]} {
    %cst = arith.constant 0.000000e+00 : bf16
    %0 = vector.broadcast %cst : bf16 to vector<8x128xbf16>
    %c128 = arith.constant 128 : index
    %c0 = arith.constant 0 : index
    %1 = vector.load %arg7[%c128, %c0] : memref<136x128xbf16, #tpu.memory_space<vmem>>, vector<8x128xbf16>
    tpu.vector_store %arg7[%c128, %c0], %0 {strides = array<i32>} : memref<136x128xbf16, #tpu.memory_space<vmem>>, vector<8x128xbf16>,
    %c0_0 = arith.constant 0 : index
    %c0_1 = arith.constant 0 : index
    %2 = vector.load %arg1[%c0_0, %c0_1] : memref<128x128xbf16, #tpu.memory_space<vmem>>, vector<128x128xbf16>
    %c0_2 = arith.constant 0 : index
    %c0_3 = arith.constant 0 : index
    %3 = vector.load %arg7[%c0_2, %c0_3] : memref<136x128xbf16, #tpu.memory_space<vmem>>, vector<128x128xbf16>
    tpu.vector_store %arg7[%c0_2, %c0_3], %2 {strides = array<i32>} : memref<136x128xbf16, #tpu.memory_space<vmem>>, vector<128x128xbf16>,
    %c0_4 = arith.constant 0 : index
    %c0_5 = arith.constant 0 : index
    %4 = vector.load %arg7[%c0_4, %c0_5] : memref<136x128xbf16, #tpu.memory_space<vmem>>, vector<128x128xbf16>
    %c0_6 = arith.constant 0 : index
    %c0_7 = arith.constant 0 : index
    %5 = vector.load %arg2[%c0_6, %c0_7] : memref<640x384xbf16, #tpu.memory_space<vmem>>, vector<128x128xbf16>
    %cst_8 = arith.constant dense<0.000000e+00> : vector<128x128xf32>
    %6 = tpu.matmul %4, %5, %cst_8 {dimension_numbers = #tpu.dot_dimension_numbers<[1], [0], [0], [1], [0, 0, 1, 1], [], []>} : vector<128x128xbf16>, vector<128x128xbf16>, vector<128x128xf32> -> vector<128x128xf32>
    %c0_9 = arith.constant 0 : index
    %c128_10 = arith.constant 128 : index
    %7 = vector.load %arg2[%c0_9, %c128_10] : memref<640x384xbf16, #tpu.memory_space<vmem>>, vector<128x128xbf16>
    %cst_11 = arith.constant dense<0.000000e+00> : vector<128x128xf32>
    %8 = tpu.matmul %4, %7, %cst_11 {dimension_numbers = #tpu.dot_dimension_numbers<[1], [0], [0], [1], [0, 0, 1, 1], [], []>} : vector<128x128xbf16>, vector<128x128xbf16>, vector<128x128xf32> -> vector<128x128xf32>
    %c0_12 = arith.constant 0 : index
    %c256 = arith.constant 256 : index
    %9 = vector.load %arg2[%c0_12, %c256] : memref<640x384xbf16, #tpu.memory_space<vmem>>, vector<128x128xbf16>
    %cst_13 = arith.constant dense<0.000000e+00> : vector<128x128xf32>
    %10 = tpu.matmul %4, %9, %cst_13 {dimension_numbers = #tpu.dot_dimension_numbers<[1], [0], [0], [1], [0, 0, 1, 1], [], []>} : vector<128x128xbf16>, vector<128x128xbf16>, vector<128x128xf32> -> vector<128x128xf32>
    %c1 = arith.constant 1 : index
    %c0_14 = arith.constant 0 : index
    %11 = vector.load %arg7[%c1, %c0_14] : memref<136x128xbf16, #tpu.memory_space<vmem>>, vector<128x128xbf16>
    %c128_15 = arith.constant 128 : index
    %c0_16 = arith.constant 0 : index
    %12 = vector.load %arg2[%c128_15, %c0_16] : memref<640x384xbf16, #tpu.memory_space<vmem>>, vector<128x128xbf16>
    %cst_17 = arith.constant dense<0.000000e+00> : vector<128x128xf32>
    %13 = tpu.matmul %11, %12, %cst_17 {dimension_numbers = #tpu.dot_dimension_numbers<[1], [0], [0], [1], [0, 0, 1, 1], [], []>} : vector<128x128xbf16>, vector<128x128xbf16>, vector<128x128xf32> -> vector<128x128xf32>
    %14 = arith.addf %6, %13 : vector<128x128xf32>
    %c128_18 = arith.constant 128 : index
    %c128_19 = arith.constant 128 : index
    %15 = vector.load %arg2[%c128_18, %c128_19] : memref<640x384xbf16, #tpu.memory_space<vmem>>, vector<128x128xbf16>
    %cst_20 = arith.constant dense<0.000000e+00> : vector<128x128xf32>
    %16 = tpu.matmul %11, %15, %cst_20 {dimension_numbers = #tpu.dot_dimension_numbers<[1], [0], [0], [1], [0, 0, 1, 1], [], []>} : vector<128x128xbf16>, vector<128x128xbf16>, vector<128x128xf32> -> vector<128x128xf32>
    %17 = arith.addf %8, %16 : vector<128x128xf32>
    %c128_21 = arith.constant 128 : index
    %c256_22 = arith.constant 256 : index
    %18 = vector.load %arg2[%c128_21, %c256_22] : memref<640x384xbf16, #tpu.memory_space<vmem>>, vector<128x128xbf16>
    %cst_23 = arith.constant dense<0.000000e+00> : vector<128x128xf32>
    %19 = tpu.matmul %11, %18, %cst_23 {dimension_numbers = #tpu.dot_dimension_numbers<[1], [0], [0], [1], [0, 0, 1, 1], [], []>} : vector<128x128xbf16>, vector<128x128xbf16>, vector<128x128xf32> -> vector<128x128xf32>
    %20 = arith.addf %10, %19 : vector<128x128xf32>
    %c2 = arith.constant 2 : index
    %c0_24 = arith.constant 0 : index
    %21 = vector.load %arg7[%c2, %c0_24] : memref<136x128xbf16, #tpu.memory_space<vmem>>, vector<128x128xbf16>
    %c256_25 = arith.constant 256 : index
    %c0_26 = arith.constant 0 : index
    %22 = vector.load %arg2[%c256_25, %c0_26] : memref<640x384xbf16, #tpu.memory_space<vmem>>, vector<128x128xbf16>
    %cst_27 = arith.constant dense<0.000000e+00> : vector<128x128xf32>
    %23 = tpu.matmul %21, %22, %cst_27 {dimension_numbers = #tpu.dot_dimension_numbers<[1], [0], [0], [1], [0, 0, 1, 1], [], []>} : vector<128x128xbf16>, vector<128x128xbf16>, vector<128x128xf32> -> vector<128x128xf32>
    %24 = arith.addf %14, %23 : vector<128x128xf32>
    %c256_28 = arith.constant 256 : index
    %c128_29 = arith.constant 128 : index
    %25 = vector.load %arg2[%c256_28, %c128_29] : memref<640x384xbf16, #tpu.memory_space<vmem>>, vector<128x128xbf16>
    %cst_30 = arith.constant dense<0.000000e+00> : vector<128x128xf32>
    %26 = tpu.matmul %21, %25, %cst_30 {dimension_numbers = #tpu.dot_dimension_numbers<[1], [0], [0], [1], [0, 0, 1, 1], [], []>} : vector<128x128xbf16>, vector<128x128xbf16>, vector<128x128xf32> -> vector<128x128xf32>
    %27 = arith.addf %17, %26 : vector<128x128xf32>
    %c256_31 = arith.constant 256 : index
    %c256_32 = arith.constant 256 : index
    %28 = vector.load %arg2[%c256_31, %c256_32] : memref<640x384xbf16, #tpu.memory_space<vmem>>, vector<128x128xbf16>
    %cst_33 = arith.constant dense<0.000000e+00> : vector<128x128xf32>
    %29 = tpu.matmul %21, %28, %cst_33 {dimension_numbers = #tpu.dot_dimension_numbers<[1], [0], [0], [1], [0, 0, 1, 1], [], []>} : vector<128x128xbf16>, vector<128x128xbf16>, vector<128x128xf32> -> vector<128x128xf32>
    %30 = arith.addf %20, %29 : vector<128x128xf32>
    %c3 = arith.constant 3 : index
    %c0_34 = arith.constant 0 : index
    %31 = vector.load %arg7[%c3, %c0_34] : memref<136x128xbf16, #tpu.memory_space<vmem>>, vector<128x128xbf16>
    %c384 = arith.constant 384 : index
    %c128_35 = arith.constant 128 : index
    %32 = vector.load %arg2[%c384, %c128_35] : memref<640x384xbf16, #tpu.memory_space<vmem>>, vector<128x128xbf16>
    %cst_36 = arith.constant dense<0.000000e+00> : vector<128x128xf32>
    %33 = tpu.matmul %31, %32, %cst_36 {dimension_numbers = #tpu.dot_dimension_numbers<[1], [0], [0], [1], [0, 0, 1, 1], [], []>} : vector<128x128xbf16>, vector<128x128xbf16>, vector<128x128xf32> -> vector<128x128xf32>
    %34 = arith.addf %27, %33 : vector<128x128xf32>
    %c384_37 = arith.constant 384 : index
    %c256_38 = arith.constant 256 : index
    %35 = vector.load %arg2[%c384_37, %c256_38] : memref<640x384xbf16, #tpu.memory_space<vmem>>, vector<128x128xbf16>
    %cst_39 = arith.constant dense<0.000000e+00> : vector<128x128xf32>
    %36 = tpu.matmul %31, %35, %cst_39 {dimension_numbers = #tpu.dot_dimension_numbers<[1], [0], [0], [1], [0, 0, 1, 1], [], []>} : vector<128x128xbf16>, vector<128x128xbf16>, vector<128x128xf32> -> vector<128x128xf32>
    %37 = arith.addf %30, %36 : vector<128x128xf32>
    %c4 = arith.constant 4 : index
    %c0_40 = arith.constant 0 : index
    %38 = vector.load %arg7[%c4, %c0_40] : memref<136x128xbf16, #tpu.memory_space<vmem>>, vector<128x128xbf16>
    %c512 = arith.constant 512 : index
    %c256_41 = arith.constant 256 : index
    %39 = vector.load %arg2[%c512, %c256_41] : memref<640x384xbf16, #tpu.memory_space<vmem>>, vector<128x128xbf16>
    %cst_42 = arith.constant dense<0.000000e+00> : vector<128x128xf32>
    %40 = tpu.matmul %38, %39, %cst_42 {dimension_numbers = #tpu.dot_dimension_numbers<[1], [0], [0], [1], [0, 0, 1, 1], [], []>} : vector<128x128xbf16>, vector<128x128xbf16>, vector<128x128xf32> -> vector<128x128xf32>
    %41 = arith.addf %37, %40 : vector<128x128xf32>
    %42 = tpu.iota {dimensions = array<i32: 1>} : vector<1x16x1xi32>
    %c0_43 = arith.constant 0 : index
    %c0_44 = arith.constant 0 : index
    %43 = vector.load %arg3[%c0_43, %c0_44] : memref<1x384xf32, #tpu.memory_space<vmem>>, vector<1x128xf32>
    %44 = vector.broadcast %43 : vector<1x128xf32> to vector<128x128xf32>
    %45 = arith.addf %24, %44 : vector<128x128xf32>
    %cst_45 = arith.constant 0.000000e+00 : f32
    %46 = vector.broadcast %cst_45 : f32 to vector<128x128xf32>
    %47 = arith.maximumf %45, %46 : vector<128x128xf32>
    %48 = vector.shape_cast %47 : vector<128x128xf32> to vector<8x16x128xf32>
    %c14_i32 = arith.constant 14 : i32
    %49 = vector.broadcast %c14_i32 : i32 to vector<1x16x1xi32>
    %50 = arith.cmpi slt, %42, %49 : vector<1x16x1xi32>
    %cst_46 = arith.constant 0.000000e+00 : f32
    %51 = vector.shape_cast %50 : vector<1x16x1xi1> to vector<1x16x1xi1>
    %52 = vector.broadcast %51 : vector<1x16x1xi1> to vector<8x16x128xi1>
    %53 = vector.broadcast %cst_46 : f32 to vector<8x16x128xf32>
    %54 = arith.select %52, %48, %53 : vector<8x16x128xi1>, vector<8x16x128xf32>
    %cst_47 = arith.constant dense<0xFF800000> : vector<8x128xf32>
    %55 = vector.multi_reduction <maximumf>, %54, %cst_47 [1] : vector<8x16x128xf32> to vector<8x128xf32>
    %c0_48 = arith.constant 0 : index
    %c128_49 = arith.constant 128 : index
    %56 = vector.load %arg3[%c0_48, %c128_49] : memref<1x384xf32, #tpu.memory_space<vmem>>, vector<1x128xf32>
    %57 = vector.broadcast %56 : vector<1x128xf32> to vector<128x128xf32>
    %58 = arith.addf %34, %57 : vector<128x128xf32>
    %cst_50 = arith.constant 0.000000e+00 : f32
    %59 = vector.broadcast %cst_50 : f32 to vector<128x128xf32>
    %60 = arith.maximumf %58, %59 : vector<128x128xf32>
    %61 = vector.shape_cast %60 : vector<128x128xf32> to vector<8x16x128xf32>
    %c13_i32 = arith.constant 13 : i32
    %62 = vector.broadcast %c13_i32 : i32 to vector<1x16x1xi32>
    %63 = arith.cmpi slt, %42, %62 : vector<1x16x1xi32>
    %cst_51 = arith.constant 0.000000e+00 : f32
    %64 = vector.shape_cast %63 : vector<1x16x1xi1> to vector<1x16x1xi1>
    %65 = vector.broadcast %64 : vector<1x16x1xi1> to vector<8x16x128xi1>
    %66 = vector.broadcast %cst_51 : f32 to vector<8x16x128xf32>
    %67 = arith.select %65, %61, %66 : vector<8x16x128xi1>, vector<8x16x128xf32>
    %cst_52 = arith.constant dense<0xFF800000> : vector<8x128xf32>
    %68 = vector.multi_reduction <maximumf>, %67, %cst_52 [1] : vector<8x16x128xf32> to vector<8x128xf32>
    %c0_53 = arith.constant 0 : index
    %c256_54 = arith.constant 256 : index
    %69 = vector.load %arg3[%c0_53, %c256_54] : memref<1x384xf32, #tpu.memory_space<vmem>>, vector<1x128xf32>
    %70 = vector.broadcast %69 : vector<1x128xf32> to vector<128x128xf32>
    %71 = arith.addf %41, %70 : vector<128x128xf32>
    %cst_55 = arith.constant 0.000000e+00 : f32
    %72 = vector.broadcast %cst_55 : f32 to vector<128x128xf32>
    %73 = arith.maximumf %71, %72 : vector<128x128xf32>
    %74 = vector.shape_cast %73 : vector<128x128xf32> to vector<8x16x128xf32>
    %c12_i32 = arith.constant 12 : i32
    %75 = vector.broadcast %c12_i32 : i32 to vector<1x16x1xi32>
    %76 = arith.cmpi slt, %42, %75 : vector<1x16x1xi32>
    %cst_56 = arith.constant 0.000000e+00 : f32
    %77 = vector.shape_cast %76 : vector<1x16x1xi1> to vector<1x16x1xi1>
    %78 = vector.broadcast %77 : vector<1x16x1xi1> to vector<8x16x128xi1>
    %79 = vector.broadcast %cst_56 : f32 to vector<8x16x128xf32>
    %80 = arith.select %78, %74, %79 : vector<8x16x128xi1>, vector<8x16x128xf32>
    %cst_57 = arith.constant dense<0xFF800000> : vector<8x128xf32>
    %81 = vector.multi_reduction <maximumf>, %80, %cst_57 [1] : vector<8x16x128xf32> to vector<8x128xf32>
    %82 = tpu.concatenate %55, %68, %81 in 1 : vector<8x128xf32>, vector<8x128xf32>, vector<8x128xf32> -> vector<8x384xf32>
    %c0_58 = arith.constant 0 : index
    %c0_59 = arith.constant 0 : index
    %83 = vector.load %arg4[%c0_58, %c0_59] : memref<384x128xf32, #tpu.memory_space<vmem>>, vector<384x128xf32>
    %cst_60 = arith.constant dense<0.000000e+00> : vector<8x128xf32>
    %84 = tpu.matmul %82, %83, %cst_60 {dimension_numbers = #tpu.dot_dimension_numbers<[1], [0], [0], [1], [0, 0, 1, 1], [], []>} : vector<8x384xf32>, vector<384x128xf32>, vector<8x128xf32> -> vector<8x128xf32>
    %85 = vector.extract_strided_slice %84 {offsets = [0, 0], sizes = [8, 1], strides = [1, 1]} : vector<8x128xf32> to vector<8x1xf32>
    %c0_61 = arith.constant 0 : index
    %c0_62 = arith.constant 0 : index
    %86 = vector.load %arg5[%c0_61, %c0_62] : memref<1x128xf32, #tpu.memory_space<vmem>>, vector<1x1xf32>
    %87 = vector.broadcast %86 : vector<1x1xf32> to vector<8x1xf32>
    %88 = arith.addf %85, %87 : vector<8x1xf32>
    %89 = vector.extract_strided_slice %84 {offsets = [0, 1], sizes = [8, 1], strides = [1, 1]} : vector<8x128xf32> to vector<8x1xf32>
    %cst_63 = arith.constant 0.000000e+00 : f32
    %90 = vector.broadcast %cst_63 : f32 to vector<8x1xf32>
    %91 = arith.subf %90, %88 : vector<8x1xf32>
    %92 = math.exp %91 : vector<8x1xf32>
    %cst_64 = arith.constant 1.000000e+00 : f32
    %93 = vector.broadcast %cst_64 : f32 to vector<8x1xf32>
    %94 = arith.addf %93, %92 : vector<8x1xf32>
    %cst_65 = arith.constant 1.000000e+00 : f32
    %95 = vector.broadcast %cst_65 : f32 to vector<8x1xf32>
    %96 = arith.divf %95, %94 : vector<8x1xf32>
    %97 = arith.mulf %96, %89 : vector<8x1xf32>
    %c0_66 = arith.constant 0 : index
    %c1_67 = arith.constant 1 : index
    %98 = vector.load %arg5[%c0_66, %c1_67] : memref<1x128xf32, #tpu.memory_space<vmem>>, vector<1x1xf32>
    %99 = vector.broadcast %98 : vector<1x1xf32> to vector<8x1xf32>
    %100 = arith.addf %97, %99 : vector<8x1xf32>
    %101 = tpu.iota {dimensions = array<i32: 1>} : vector<8x128xi32>
    %c0_i32 = arith.constant 0 : i32
    %102 = vector.broadcast %c0_i32 : i32 to vector<8x128xi32>
    %103 = arith.cmpi eq, %101, %102 : vector<8x128xi32>
    %c1_i32 = arith.constant 1 : i32
    %104 = vector.broadcast %c1_i32 : i32 to vector<8x128xi32>
    %105 = arith.cmpi eq, %101, %104 : vector<8x128xi32>
    %cst_68 = arith.constant 0.000000e+00 : f32
    %106 = vector.shape_cast %96 : vector<8x1xf32> to vector<8x1xf32>
    %107 = vector.broadcast %106 : vector<8x1xf32> to vector<8x128xf32>
    %108 = vector.broadcast %cst_68 : f32 to vector<8x128xf32>
    %109 = arith.select %105, %107, %108 : vector<8x128xi1>, vector<8x128xf32>
    %110 = vector.shape_cast %100 : vector<8x1xf32> to vector<8x1xf32>
    %111 = vector.broadcast %110 : vector<8x1xf32> to vector<8x128xf32>
    %112 = arith.select %103, %111, %109 : vector<8x128xi1>, vector<8x128xf32>
    %c0_69 = arith.constant 0 : index
    %c0_70 = arith.constant 0 : index
    %113 = vector.load %arg6[%c0_69, %c0_70] : memref<8x128xf32, #tpu.memory_space<vmem>>, vector<8x128xf32>
    tpu.vector_store %arg6[%c0_69, %c0_70], %112 {strides = array<i32>} : memref<8x128xf32, #tpu.memory_space<vmem>>, vector<8x128xf32>,
    return
  }
  func.func @transform_0(%arg0: i32) -> (i32, i32) {
    %c0_i32 = arith.constant 0 : i32
    %c0_i32_0 = arith.constant 0 : i32
    return %arg0, %c0_i32 : i32, i32
  }
  func.func @transform_1(%arg0: i32) -> (i32, i32) {
    %c0_i32 = arith.constant 0 : i32
    %c0_i32_0 = arith.constant 0 : i32
    %c0_i32_1 = arith.constant 0 : i32
    return %c0_i32, %c0_i32_0 : i32, i32
  }
  func.func @transform_2(%arg0: i32) -> (i32, i32) {
    %c0_i32 = arith.constant 0 : i32
    %c0_i32_0 = arith.constant 0 : i32
    %c0_i32_1 = arith.constant 0 : i32
    return %c0_i32, %c0_i32_0 : i32, i32
  }
  func.func @transform_3(%arg0: i32) -> (i32, i32) {
    %c0_i32 = arith.constant 0 : i32
    %c0_i32_0 = arith.constant 0 : i32
    %c0_i32_1 = arith.constant 0 : i32
    return %c0_i32, %c0_i32_0 : i32, i32
  }
  func.func @transform_4(%arg0: i32) -> (i32, i32) {
    %c0_i32 = arith.constant 0 : i32
    %c0_i32_0 = arith.constant 0 : i32
    %c0_i32_1 = arith.constant 0 : i32
    return %c0_i32, %c0_i32_0 : i32, i32
  }
  func.func @transform_5(%arg0: i32) -> (i32, i32) {
    %c0_i32 = arith.constant 0 : i32
    %c0_i32_0 = arith.constant 0 : i32
    return %arg0, %c0_i32 : i32, i32
  }
}

</mosaic_0001>

<llo_original>
// kernel: tpu_custom_call.1
$region0: #{tpu_custom_call.1}
  #allocation0 [shape = 'u32[]', space=smem, size = 0x4, offset = 0x4, fixed_abs, tag = 'smem constant byte address 0x4 - core index']
  #allocation1 [shape = 'u32[144,128]{1,0:T(1,128)}', space=vmem, size = 0x12000, scoped, tag = 'internal scratch']
  #allocation2 [shape = 'bf16[136,128]{1,0:T(8,128)(2,1)}', space=vmem, size = 0x8800, scoped, tag = 'scratch operand']
  %s0 = inlined_call_operand.hbm [shape: bf16[128,128], index: 0, kind: input, shape index: {}]
  %s1 = inlined_call_operand.hbm [shape: bf16[640,384], index: 1, kind: input, shape index: {}]
  %s2 = inlined_call_operand.vmem [shape: f32[1,384], index: 2, kind: input, shape index: {}]
  %s3 = inlined_call_operand.hbm [shape: f32[384,128], index: 3, kind: input, shape index: {}]
  %s4 = inlined_call_operand.vmem [shape: f32[1,128], index: 4, kind: input, shape index: {}]
  %s5 = inlined_call_operand.hbm [shape: f32[8,128], index: 5, kind: output, shape index: {}]
  %s6 = sld [smem:[#allocation0]]
  $region42: #{tpu_custom_call.1} parent=0
    _
  %s8 = ssub.s32 1, %s6
  %s9 = scalar_select 0, %s8, %s6
  $region1: #{tpu_custom_call.1} parent=0
    #allocation3 [shape = 'u8[32768]{0}', space=vmem, size = 0x8000, scoped, tag = 'input window, operand 0, single buffered']
    #allocation4 [shape = 's32[1]{0}', space=sflag, size = 0x4, scoped, tag = 'scoped memory for tpu_custom_call.1']
    #allocation5 [shape = 's32[1]{0}', space=sflag, size = 0x4, scoped, tag = 'scoped memory for tpu_custom_call.1']
    #allocation6 [shape = 'u8[491520]{0}', space=vmem, size = 0x78000, scoped, tag = 'input window, operand 1, single buffered']
    #allocation7 [shape = 's32[1]{0}', space=sflag, size = 0x4, scoped, tag = 'scoped memory for tpu_custom_call.1']
    #allocation8 [shape = 'u8[196608]{0}', space=vmem, size = 0x30000, scoped, tag = 'input window, operand 3, single buffered']
    #allocation9 [shape = 'u8[4096]{0}', space=vmem, size = 0x1000, scoped, tag = 'output window, operand 0, single buffered']
    %10 = vsyncpa [#allocation4], 0
    %11 = vsyncpa [#allocation7], 0
    %12 = vsyncpa [#allocation5], 0
    // Predicated region
    $region2: #{tpu_custom_call.1} parent=1 // pred_check
      _
    $region3: #{tpu_custom_call.1} parent=1 // pred_check_branch
      %14 = sbr.rel (0) target = $region5
    $region4: #{tpu_custom_call.1} parent=1 // pred_region
      %s16 = ssub.s32 1024, 1024
      %17 = vsyncadd [#allocation4], %s16
      %s18 = sshll.u32 [#allocation3], 4
      %s19 = int_to_ptr.vmem [resolvable:$true] %s18
      %24 = dma.hbm_to_vmem [thread:$0]  %s0, 1024, %s19, [#allocation4], 64, 64, 4
    $region5: #{tpu_custom_call.1} parent=1 // pred_fallthru
      _
    // Predicated region
    $region6: #{tpu_custom_call.1} parent=1 // pred_check
      _
    $region7: #{tpu_custom_call.1} parent=1 // pred_check_branch
      %26 = sbr.rel (0) target = $region9
    $region8: #{tpu_custom_call.1} parent=1 // pred_region
      %s28 = ssub.s32 15360, 15360
      %29 = vsyncadd [#allocation7], %s28
      %s30 = sshll.u32 [#allocation6], 4
      %s31 = int_to_ptr.vmem [resolvable:$true] %s30
      %36 = dma.hbm_to_vmem [thread:$0]  %s1, 15360, %s31, [#allocation7], 192, 192, 12
    $region9: #{tpu_custom_call.1} parent=1 // pred_fallthru
      _
    // Predicated region
    $region10: #{tpu_custom_call.1} parent=1 // pred_check
      _
    $region11: #{tpu_custom_call.1} parent=1 // pred_check_branch
      %38 = sbr.rel (0) target = $region13
    $region12: #{tpu_custom_call.1} parent=1 // pred_region
      _
    $region13: #{tpu_custom_call.1} parent=1 // pred_fallthru
      _
    // Predicated region
    $region14: #{tpu_custom_call.1} parent=1 // pred_check
      _
    $region15: #{tpu_custom_call.1} parent=1 // pred_check_branch
      %40 = sbr.rel (0) target = $region17
    $region16: #{tpu_custom_call.1} parent=1 // pred_region
      %s42 = ssub.s32 6144, 6144
      %43 = vsyncadd [#allocation7], %s42
      %s44 = sshll.u32 [#allocation8], 4
      %s45 = int_to_ptr.vmem [resolvable:$true] %s44
      %50 = dma.hbm_to_vmem [thread:$0]  %s3, 6144, %s45, [#allocation7], 128, 128, 8
    $region17: #{tpu_custom_call.1} parent=1 // pred_fallthru
      _
    // Predicated region
    $region18: #{tpu_custom_call.1} parent=1 // pred_check
      _
    $region19: #{tpu_custom_call.1} parent=1 // pred_check_branch
      %52 = sbr.rel (0) target = $region21
    $region20: #{tpu_custom_call.1} parent=1 // pred_region
      _
    $region21: #{tpu_custom_call.1} parent=1 // pred_fallthru
      _
    // Predicated region
    $region22: #{tpu_custom_call.1} parent=1 // pred_check
      _
    $region23: #{tpu_custom_call.1} parent=1 // pred_check_branch
      %54 = sbr.rel (0) target = $region25
    $region24: #{tpu_custom_call.1} parent=1 // pred_region
      %55 = dma.done [#allocation4], 1024
    $region25: #{tpu_custom_call.1} parent=1 // pred_fallthru
      _
    // Predicated region
    $region26: #{tpu_custom_call.1} parent=1 // pred_check
      _
    $region27: #{tpu_custom_call.1} parent=1 // pred_check_branch
      %57 = sbr.rel (0) target = $region29
    $region28: #{tpu_custom_call.1} parent=1 // pred_region
      %58 = dma.done [#allocation7], 15360
    $region29: #{tpu_custom_call.1} parent=1 // pred_fallthru
      _
    // Predicated region
    $region30: #{tpu_custom_call.1} parent=1 // pred_check
      _
    $region31: #{tpu_custom_call.1} parent=1 // pred_check_branch
      %60 = sbr.rel (0) target = $region33
    $region32: #{tpu_custom_call.1} parent=1 // pred_region
      %61 = dma.done [#allocation7], 6144
    $region33: #{tpu_custom_call.1} parent=1 // pred_fallthru
      _
    %63 = vst [vmem:[#allocation2 + $0x40] sm:$0xf] 0
    %v64 = vld [vmem:[#allocation3] sm:$0xf]
    %v65 = vld [vmem:[#allocation3 + $0x4] sm:$0xf]
    %v66 = vld [vmem:[#allocation3 + $0x8] sm:$0xf]
    %v67 = vld [vmem:[#allocation3 + $0xc] sm:$0xf]
    %v68 = vld [vmem:[#allocation3 + $0x10] sm:$0xf]
    %v69 = vld [vmem:[#allocation3 + $0x14] sm:$0xf]
    %v70 = vld [vmem:[#allocation3 + $0x18] sm:$0xf]
    %v71 = vld [vmem:[#allocation3 + $0x1c] sm:$0xf]
    %v72 = vld [vmem:[#allocation3 + $0x20] sm:$0xf]
    %v73 = vld [vmem:[#allocation3 + $0x24] sm:$0xf]
    %v74 = vld [vmem:[#allocation3 + $0x28] sm:$0xf]
    %v75 = vld [vmem:[#allocation3 + $0x2c] sm:$0xf]
    %v76 = vld [vmem:[#allocation3 + $0x30] sm:$0xf]
    %v77 = vld [vmem:[#allocation3 + $0x34] sm:$0xf]
    %v78 = vld [vmem:[#allocation3 + $0x38] sm:$0xf]
    %v79 = vld [vmem:[#allocation3 + $0x3c] sm:$0xf]
    %80 = vst [vmem:[#allocation2] sm:$0xf] %v64
    %81 = vst [vmem:[#allocation2 + $0x4] sm:$0xf] %v65
    %82 = vst [vmem:[#allocation2 + $0x8] sm:$0xf] %v66
    %83 = vst [vmem:[#allocation2 + $0xc] sm:$0xf] %v67
    %84 = vst [vmem:[#allocation2 + $0x10] sm:$0xf] %v68
    %85 = vst [vmem:[#allocation2 + $0x14] sm:$0xf] %v69
    %86 = vst [vmem:[#allocation2 + $0x18] sm:$0xf] %v70
    %87 = vst [vmem:[#allocation2 + $0x1c] sm:$0xf] %v71
    %88 = vst [vmem:[#allocation2 + $0x20] sm:$0xf] %v72
    %89 = vst [vmem:[#allocation2 + $0x24] sm:$0xf] %v73
    %90 = vst [vmem:[#allocation2 + $0x28] sm:$0xf] %v74
    %91 = vst [vmem:[#allocation2 + $0x2c] sm:$0xf] %v75
    %92 = vst [vmem:[#allocation2 + $0x30] sm:$0xf] %v76
    %93 = vst [vmem:[#allocation2 + $0x34] sm:$0xf] %v77
    %94 = vst [vmem:[#allocation2 + $0x38] sm:$0xf] %v78
    %95 = vst [vmem:[#allocation2 + $0x3c] sm:$0xf] %v79
    %v96 = vld [vmem:[#allocation2] sm:$0xf]
    %v97 = vld [vmem:[#allocation2 + $0x4] sm:$0xf]
    %v98 = vld [vmem:[#allocation2 + $0x8] sm:$0xf]
    %v99 = vld [vmem:[#allocation2 + $0xc] sm:$0xf]
    %v100 = vld [vmem:[#allocation2 + $0x10] sm:$0xf]
    %v101 = vld [vmem:[#allocation2 + $0x14] sm:$0xf]
    %v102 = vld [vmem:[#allocation2 + $0x18] sm:$0xf]
    %v103 = vld [vmem:[#allocation2 + $0x1c] sm:$0xf]
    %v104 = vld [vmem:[#allocation2 + $0x20] sm:$0xf]
    %v105 = vld [vmem:[#allocation2 + $0x24] sm:$0xf]
    %v106 = vld [vmem:[#allocation2 + $0x28] sm:$0xf]
    %v107 = vld [vmem:[#allocation2 + $0x2c] sm:$0xf]
    %v108 = vld [vmem:[#allocation2 + $0x30] sm:$0xf]
    %v109 = vld [vmem:[#allocation2 + $0x34] sm:$0xf]
    %v110 = vld [vmem:[#allocation2 + $0x38] sm:$0xf]
    %v111 = vld [vmem:[#allocation2 + $0x3c] sm:$0xf]
    %v112 = vld [vmem:[#allocation6] sm:$0xf]
    %v113 = vld [vmem:[#allocation6 + $0xc] sm:$0xf]
    %v114 = vld [vmem:[#allocation6 + $0x18] sm:$0xf]
    %v115 = vld [vmem:[#allocation6 + $0x24] sm:$0xf]
    %v116 = vld [vmem:[#allocation6 + $0x30] sm:$0xf]
    %v117 = vld [vmem:[#allocation6 + $0x3c] sm:$0xf]
    %v118 = vld [vmem:[#allocation6 + $0x48] sm:$0xf]
    %v119 = vld [vmem:[#allocation6 + $0x54] sm:$0xf]
    %v120 = vld [vmem:[#allocation6 + $0x60] sm:$0xf]
    %v121 = vld [vmem:[#allocation6 + $0x6c] sm:$0xf]
    %v122 = vld [vmem:[#allocation6 + $0x78] sm:$0xf]
    %v123 = vld [vmem:[#allocation6 + $0x84] sm:$0xf]
    %v124 = vld [vmem:[#allocation6 + $0x90] sm:$0xf]
    %v125 = vld [vmem:[#allocation6 + $0x9c] sm:$0xf]
    %v126 = vld [vmem:[#allocation6 + $0xa8] sm:$0xf]
    %v127 = vld [vmem:[#allocation6 + $0xb4] sm:$0xf]
    %v128 = vld [vmem:[#allocation6 + $0x4] sm:$0xf]
    %v129 = vld [vmem:[#allocation6 + $0x10] sm:$0xf]
    %v130 = vld [vmem:[#allocation6 + $0x1c] sm:$0xf]
    %v131 = vld [vmem:[#allocation6 + $0x28] sm:$0xf]
    %v132 = vld [vmem:[#allocation6 + $0x34] sm:$0xf]
    %v133 = vld [vmem:[#allocation6 + $0x40] sm:$0xf]
    %v134 = vld [vmem:[#allocation6 + $0x4c] sm:$0xf]
    %v135 = vld [vmem:[#allocation6 + $0x58] sm:$0xf]
    %v136 = vld [vmem:[#allocation6 + $0x64] sm:$0xf]
    %v137 = vld [vmem:[#allocation6 + $0x70] sm:$0xf]
    %v138 = vld [vmem:[#allocation6 + $0x7c] sm:$0xf]
    %v139 = vld [vmem:[#allocation6 + $0x88] sm:$0xf]
    %v140 = vld [vmem:[#allocation6 + $0x94] sm:$0xf]
    %v141 = vld [vmem:[#allocation6 + $0xa0] sm:$0xf]
    %v142 = vld [vmem:[#allocation6 + $0xac] sm:$0xf]
    %v143 = vld [vmem:[#allocation6 + $0xb8] sm:$0xf]
    %v144 = vld [vmem:[#allocation6 + $0x8] sm:$0xf]
    %v145 = vld [vmem:[#allocation6 + $0x14] sm:$0xf]
    %v146 = vld [vmem:[#allocation6 + $0x20] sm:$0xf]
    %v147 = vld [vmem:[#allocation6 + $0x2c] sm:$0xf]
    %v148 = vld [vmem:[#allocation6 + $0x38] sm:$0xf]
    %v149 = vld [vmem:[#allocation6 + $0x44] sm:$0xf]
    %v150 = vld [vmem:[#allocation6 + $0x50] sm:$0xf]
    %v151 = vld [vmem:[#allocation6 + $0x5c] sm:$0xf]
    %v152 = vld [vmem:[#allocation6 + $0x68] sm:$0xf]
    %v153 = vld [vmem:[#allocation6 + $0x74] sm:$0xf]
    %v154 = vld [vmem:[#allocation6 + $0x80] sm:$0xf]
    %v155 = vld [vmem:[#allocation6 + $0x8c] sm:$0xf]
    %v156 = vld [vmem:[#allocation6 + $0x98] sm:$0xf]
    %v157 = vld [vmem:[#allocation6 + $0xa4] sm:$0xf]
    %v158 = vld [vmem:[#allocation6 + $0xb0] sm:$0xf]
    %v159 = vld [vmem:[#allocation6 + $0xbc] sm:$0xf]
    %v160 = vld [vmem:[#allocation2] sm:$0xf]
    %v161 = vld [vmem:[#allocation2 + $0x4] sm:$0xf]
    %v162 = vld [vmem:[#allocation2 + $0x8] sm:$0xf]
    %v163 = vld [vmem:[#allocation2 + $0xc] sm:$0xf]
    %v164 = vld [vmem:[#allocation2 + $0x10] sm:$0xf]
    %v165 = vld [vmem:[#allocation2 + $0x14] sm:$0xf]
    %v166 = vld [vmem:[#allocation2 + $0x18] sm:$0xf]
    %v167 = vld [vmem:[#allocation2 + $0x1c] sm:$0xf]
    %v168 = vld [vmem:[#allocation2 + $0x20] sm:$0xf]
    %v169 = vld [vmem:[#allocation2 + $0x24] sm:$0xf]
    %v170 = vld [vmem:[#allocation2 + $0x28] sm:$0xf]
    %v171 = vld [vmem:[#allocation2 + $0x2c] sm:$0xf]
    %v172 = vld [vmem:[#allocation2 + $0x30] sm:$0xf]
    %v173 = vld [vmem:[#allocation2 + $0x34] sm:$0xf]
    %v174 = vld [vmem:[#allocation2 + $0x38] sm:$0xf]
    %v175 = vld [vmem:[#allocation2 + $0x3c] sm:$0xf]
    %v176 = vld [vmem:[#allocation2 + $0x40] sm:$0x1]
    %v177 = vld [vmem:[#allocation6 + $0xc0] sm:$0xf]
    %v178 = vld [vmem:[#allocation6 + $0xcc] sm:$0xf]
    %v179 = vld [vmem:[#allocation6 + $0xd8] sm:$0xf]
    %v180 = vld [vmem:[#allocation6 + $0xe4] sm:$0xf]
    %v181 = vld [vmem:[#allocation6 + $0xf0] sm:$0xf]
    %v182 = vld [vmem:[#allocation6 + $0xfc] sm:$0xf]
    %v183 = vld [vmem:[#allocation6 + $0x108] sm:$0xf]
    %v184 = vld [vmem:[#allocation6 + $0x114] sm:$0xf]
    %v185 = vld [vmem:[#allocation6 + $0x120] sm:$0xf]
    %v186 = vld [vmem:[#allocation6 + $0x12c] sm:$0xf]
    %v187 = vld [vmem:[#allocation6 + $0x138] sm:$0xf]
    %v188 = vld [vmem:[#allocation6 + $0x144] sm:$0xf]
    %v189 = vld [vmem:[#allocation6 + $0x150] sm:$0xf]
    %v190 = vld [vmem:[#allocation6 + $0x15c] sm:$0xf]
    %v191 = vld [vmem:[#allocation6 + $0x168] sm:$0xf]
    %v192 = vld [vmem:[#allocation6 + $0x174] sm:$0xf]
    %v210 = vunpack.c.l.b16 %v160
    %v211 = vunpack.c.l.b16 %v161
    %v212 = vunpack.c.l.b16 %v162
    %v213 = vunpack.c.l.b16 %v163
    %v214 = vunpack.c.l.b16 %v164
    %v215 = vunpack.c.l.b16 %v165
    %v216 = vunpack.c.l.b16 %v166
    %v217 = vunpack.c.l.b16 %v167
    %v218 = vunpack.c.l.b16 %v168
    %v219 = vunpack.c.l.b16 %v169
    %v220 = vunpack.c.l.b16 %v170
    %v221 = vunpack.c.l.b16 %v171
    %v222 = vunpack.c.l.b16 %v172
    %v223 = vunpack.c.l.b16 %v173
    %v224 = vunpack.c.l.b16 %v174
    %v225 = vunpack.c.l.b16 %v175
    %v226 = vunpack.c.l.b16 %v176
    %v227 = vpack.c.b16 %v211, %v210
    %v228 = vpack.c.b16 %v213, %v212
    %v229 = vpack.c.b16 %v215, %v214
    %v230 = vpack.c.b16 %v217, %v216
    %v231 = vpack.c.b16 %v219, %v218
    %v232 = vpack.c.b16 %v221, %v220
    %v233 = vpack.c.b16 %v223, %v222
    %v234 = vpack.c.b16 %v225, %v224
    %v235 = vpack.c.b16 %v226, %v226
    %vm236 = vsmask.f32 7424
    %v238 = vshrl.u32 %v227, 16
    %v240 = vshll.u32 %v227, 16
    %v242 = vrot.slane %v240, 1
    %v243 = vor.u32 %v238, %v242
    %v245 = vshll.u32 %v228, 16
    %v247 = vrot.slane %v245, 1
    %v248 = vsel %vm236, %v243, %v247
    %v249 = vshrl.u32 %v228, 16
    %v251 = vor.u32 %v249, %v247
    %v253 = vshll.u32 %v229, 16
    %v255 = vrot.slane %v253, 1
    %v256 = vsel %vm236, %v251, %v255
    %v257 = vshrl.u32 %v229, 16
    %v259 = vor.u32 %v257, %v255
    %v261 = vshll.u32 %v230, 16
    %v263 = vrot.slane %v261, 1
    %v264 = vsel %vm236, %v259, %v263
    %v265 = vshrl.u32 %v230, 16
    %v267 = vor.u32 %v265, %v263
    %v269 = vshll.u32 %v231, 16
    %v271 = vrot.slane %v269, 1
    %v272 = vsel %vm236, %v267, %v271
    %v273 = vshrl.u32 %v231, 16
    %v275 = vor.u32 %v273, %v271
    %v277 = vshll.u32 %v232, 16
    %v279 = vrot.slane %v277, 1
    %v280 = vsel %vm236, %v275, %v279
    %v281 = vshrl.u32 %v232, 16
    %v283 = vor.u32 %v281, %v279
    %v285 = vshll.u32 %v233, 16
    %v287 = vrot.slane %v285, 1
    %v288 = vsel %vm236, %v283, %v287
    %v289 = vshrl.u32 %v233, 16
    %v291 = vor.u32 %v289, %v287
    %v293 = vshll.u32 %v234, 16
    %v295 = vrot.slane %v293, 1
    %v296 = vsel %vm236, %v291, %v295
    %v297 = vshrl.u32 %v234, 16
    %v299 = vor.u32 %v297, %v295
    %v301 = vshll.u32 %v235, 16
    %v303 = vrot.slane %v301, 1
    %v304 = vsel %vm236, %v299, %v303
    %v329 = vunpack.c.l.b16 %v177
    %v330 = vunpack.c.l.b16 %v178
    %v331 = vunpack.c.l.b16 %v179
    %v332 = vunpack.c.l.b16 %v180
    %v333 = vunpack.c.l.b16 %v181
    %v334 = vunpack.c.l.b16 %v182
    %v335 = vunpack.c.l.b16 %v183
    %v336 = vunpack.c.l.b16 %v184
    %v337 = vunpack.c.l.b16 %v185
    %v338 = vunpack.c.l.b16 %v186
    %v339 = vunpack.c.l.b16 %v187
    %v340 = vunpack.c.l.b16 %v188
    %v341 = vunpack.c.l.b16 %v189
    %v342 = vunpack.c.l.b16 %v190
    %v343 = vunpack.c.l.b16 %v191
    %v344 = vunpack.c.l.b16 %v192
    %v345 = vpack.c.b16 %v330, %v329
    %v346 = vpack.c.b16 %v332, %v331
    %v347 = vpack.c.b16 %v334, %v333
    %v348 = vpack.c.b16 %v336, %v335
    %v349 = vpack.c.b16 %v338, %v337
    %v350 = vpack.c.b16 %v340, %v339
    %v351 = vpack.c.b16 %v342, %v341
    %v352 = vpack.c.b16 %v344, %v343
    %361 = vmatprep.subr.bf16.mxu0 0
    %362 = vmatpush1.bf16.msra.mxu0 %v345
    %363 = vmatprep.subr.bf16.mxu0 0
    %364 = vmatpush1.bf16.msra.mxu0 %v346
    %365 = vmatprep.subr.bf16.mxu0 0
    %366 = vmatpush1.bf16.msra.mxu0 %v347
    %367 = vmatprep.subr.bf16.mxu0 0
    %368 = vmatpush1.bf16.msra.mxu0 %v348
    %369 = vmatprep.subr.bf16.mxu0 0
    %370 = vmatpush1.bf16.msra.mxu0 %v349
    %371 = vmatprep.subr.bf16.mxu0 0
    %372 = vmatpush1.bf16.msra.mxu0 %v350
    %373 = vmatprep.subr.bf16.mxu0 0
    %374 = vmatpush1.bf16.msra.mxu0 %v351
    %375 = vmatprep.subr.bf16.mxu0 0
    %376 = vmatpush1.bf16.msra.mxu0 %v352
    %377 = vmatprep.subr.bf16.mxu0 0
    %378 = vmatpush1.bf16.msra.mxu0 0
    %379 = vmatprep.subr.bf16.mxu0 0
    %380 = vmatpush1.bf16.msra.mxu0 0
    %381 = vmatprep.subr.bf16.mxu0 0
    %382 = vmatpush1.bf16.msra.mxu0 0
    %383 = vmatprep.subr.bf16.mxu0 0
    %384 = vmatpush1.bf16.msra.mxu0 0
    %385 = vmatprep.subr.bf16.mxu0 0
    %386 = vmatpush1.bf16.msra.mxu0 0
    %387 = vmatprep.subr.bf16.mxu0 0
    %388 = vmatpush1.bf16.msra.mxu0 0
    %389 = vmatprep.subr.bf16.mxu0 0
    %390 = vmatpush1.bf16.msra.mxu0 0
    %391 = vmatprep.subr.bf16.mxu0 0
    %392 = vmatpush1.bf16.msra.mxu0 0
    %393 = vmatprep.mubr.bf16.mxu0 0
    %394 = vmatmul.mubr.bf16.gmra.mrb[0].mxu0 %v248
    %v395 = vpop.f32.mrb[0].mxu0
    %v396 = vadd.f32 0.0, %v395
    %v397 = vpop.f32.mrb[0].mxu0
    %v398 = vpop.f32.mrb[0].mxu0
    %v399 = vadd.f32 0.0, %v398
    %v400 = vpop.f32.mrb[0].mxu0
    %401 = vmatprep.mubr.bf16.mxu0 0
    %402 = vmatmul.mubr.bf16.gmra.mrb[0].mxu0 %v256
    %v403 = vpop.f32.mrb[0].mxu0
    %v404 = vadd.f32 0.0, %v403
    %v405 = vpop.f32.mrb[0].mxu0
    %v406 = vpop.f32.mrb[0].mxu0
    %v407 = vadd.f32 0.0, %v406
    %v408 = vpop.f32.mrb[0].mxu0
    %409 = vmatprep.mubr.bf16.mxu0 0
    %410 = vmatmul.mubr.bf16.gmra.mrb[0].mxu0 %v264
    %v411 = vpop.f32.mrb[0].mxu0
    %v412 = vadd.f32 0.0, %v411
    %v413 = vpop.f32.mrb[0].mxu0
    %v414 = vpop.f32.mrb[0].mxu0
    %v415 = vadd.f32 0.0, %v414
    %v416 = vpop.f32.mrb[0].mxu0
    %417 = vmatprep.mubr.bf16.mxu0 0
    %418 = vmatmul.mubr.bf16.gmra.mrb[0].mxu0 %v272
    %v419 = vpop.f32.mrb[0].mxu0
    %v420 = vadd.f32 0.0, %v419
    %v421 = vpop.f32.mrb[0].mxu0
    %v422 = vpop.f32.mrb[0].mxu0
    %v423 = vadd.f32 0.0, %v422
    %v424 = vpop.f32.mrb[0].mxu0
    %425 = vmatprep.mubr.bf16.mxu0 0
    %426 = vmatmul.mubr.bf16.gmra.mrb[0].mxu0 %v280
    %v427 = vpop.f32.mrb[0].mxu0
    %v428 = vadd.f32 0.0, %v427
    %v429 = vpop.f32.mrb[0].mxu0
    %v430 = vpop.f32.mrb[0].mxu0
    %v431 = vadd.f32 0.0, %v430
    %v432 = vpop.f32.mrb[0].mxu0
    %433 = vmatprep.mubr.bf16.mxu0 0
    %434 = vmatmul.mubr.bf16.gmra.mrb[0].mxu0 %v288
    %v435 = vpop.f32.mrb[0].mxu0
    %v436 = vadd.f32 0.0, %v435
    %v437 = vpop.f32.mrb[0].mxu0
    %v438 = vpop.f32.mrb[0].mxu0
    %v439 = vadd.f32 0.0, %v438
    %v440 = vpop.f32.mrb[0].mxu0
    %441 = vmatprep.mubr.bf16.mxu0 0
    %442 = vmatmul.mubr.bf16.gmra.mrb[0].mxu0 %v296
    %v443 = vpop.f32.mrb[0].mxu0
    %v444 = vadd.f32 0.0, %v443
    %v445 = vpop.f32.mrb[0].mxu0
    %v446 = vpop.f32.mrb[0].mxu0
    %v447 = vadd.f32 0.0, %v446
    %v448 = vpop.f32.mrb[0].mxu0
    %449 = vmatprep.mubr.bf16.mxu0 0
    %450 = vmatmul.mubr.bf16.gmra.mrb[0].mxu0 %v304
    %v451 = vpop.f32.mrb[0].mxu0
    %v452 = vadd.f32 0.0, %v451
    %v453 = vpop.f32.mrb[0].mxu0
    %v454 = vpop.f32.mrb[0].mxu0
    %v455 = vadd.f32 0.0, %v454
    %v456 = vpop.f32.mrb[0].mxu0
    %457 = vdwg.mxu0
    %v474 = vunpack.c.l.b16 %v96
    %v475 = vunpack.c.l.b16 %v97
    %v476 = vunpack.c.l.b16 %v98
    %v477 = vunpack.c.l.b16 %v99
    %v478 = vunpack.c.l.b16 %v100
    %v479 = vunpack.c.l.b16 %v101
    %v480 = vunpack.c.l.b16 %v102
    %v481 = vunpack.c.l.b16 %v103
    %v482 = vunpack.c.l.b16 %v104
    %v483 = vunpack.c.l.b16 %v105
    %v484 = vunpack.c.l.b16 %v106
    %v485 = vunpack.c.l.b16 %v107
    %v486 = vunpack.c.l.b16 %v108
    %v487 = vunpack.c.l.b16 %v109
    %v488 = vunpack.c.l.b16 %v110
    %v489 = vunpack.c.l.b16 %v111
    %v490 = vpack.c.b16 %v475, %v474
    %v491 = vpack.c.b16 %v477, %v476
    %v492 = vpack.c.b16 %v479, %v478
    %v493 = vpack.c.b16 %v481, %v480
    %v494 = vpack.c.b16 %v483, %v482
    %v495 = vpack.c.b16 %v485, %v484
    %v496 = vpack.c.b16 %v487, %v486
    %v497 = vpack.c.b16 %v489, %v488
    %v522 = vunpack.c.l.b16 %v112
    %v523 = vunpack.c.l.b16 %v113
    %v524 = vunpack.c.l.b16 %v114
    %v525 = vunpack.c.l.b16 %v115
    %v526 = vunpack.c.l.b16 %v116
    %v527 = vunpack.c.l.b16 %v117
    %v528 = vunpack.c.l.b16 %v118
    %v529 = vunpack.c.l.b16 %v119
    %v530 = vunpack.c.l.b16 %v120
    %v531 = vunpack.c.l.b16 %v121
    %v532 = vunpack.c.l.b16 %v122
    %v533 = vunpack.c.l.b16 %v123
    %v534 = vunpack.c.l.b16 %v124
    %v535 = vunpack.c.l.b16 %v125
    %v536 = vunpack.c.l.b16 %v126
    %v537 = vunpack.c.l.b16 %v127
    %v538 = vpack.c.b16 %v523, %v522
    %v539 = vpack.c.b16 %v525, %v524
    %v540 = vpack.c.b16 %v527, %v526
    %v541 = vpack.c.b16 %v529, %v528
    %v542 = vpack.c.b16 %v531, %v530
    %v543 = vpack.c.b16 %v533, %v532
    %v544 = vpack.c.b16 %v535, %v534
    %v545 = vpack.c.b16 %v537, %v536
    %554 = vmatprep.subr.bf16.mxu0 0
    %555 = vmatpush1.bf16.msra.mxu0 %v538
    %556 = vmatprep.subr.bf16.mxu0 0
    %557 = vmatpush1.bf16.msra.mxu0 %v539
    %558 = vmatprep.subr.bf16.mxu0 0
    %559 = vmatpush1.bf16.msra.mxu0 %v540
    %560 = vmatprep.subr.bf16.mxu0 0
    %561 = vmatpush1.bf16.msra.mxu0 %v541
    %562 = vmatprep.subr.bf16.mxu0 0
    %563 = vmatpush1.bf16.msra.mxu0 %v542
    %564 = vmatprep.subr.bf16.mxu0 0
    %565 = vmatpush1.bf16.msra.mxu0 %v543
    %566 = vmatprep.subr.bf16.mxu0 0
    %567 = vmatpush1.bf16.msra.mxu0 %v544
    %568 = vmatprep.subr.bf16.mxu0 0
    %569 = vmatpush1.bf16.msra.mxu0 %v545
    %570 = vmatprep.subr.bf16.mxu0 0
    %571 = vmatpush1.bf16.msra.mxu0 0
    %572 = vmatprep.subr.bf16.mxu0 0
    %573 = vmatpush1.bf16.msra.mxu0 0
    %574 = vmatprep.subr.bf16.mxu0 0
    %575 = vmatpush1.bf16.msra.mxu0 0
    %576 = vmatprep.subr.bf16.mxu0 0
    %577 = vmatpush1.bf16.msra.mxu0 0
    %578 = vmatprep.subr.bf16.mxu0 0
    %579 = vmatpush1.bf16.msra.mxu0 0
    %580 = vmatprep.subr.bf16.mxu0 0
    %581 = vmatpush1.bf16.msra.mxu0 0
    %582 = vmatprep.subr.bf16.mxu0 0
    %583 = vmatpush1.bf16.msra.mxu0 0
    %584 = vmatprep.subr.bf16.mxu0 0
    %585 = vmatpush1.bf16.msra.mxu0 0
    %586 = vmatprep.mubr.bf16.mxu0 0
    %587 = vmatmul.mubr.bf16.gmra.mrb[0].mxu0 %v490
    %v588 = vpop.f32.mrb[0].mxu0
    %v589 = vadd.f32 %v396, %v588
    %v590 = vpop.f32.mrb[0].mxu0
    %v591 = vpop.f32.mrb[0].mxu0
    %v592 = vadd.f32 %v399, %v591
    %v593 = vpop.f32.mrb[0].mxu0
    %594 = vmatprep.mubr.bf16.mxu0 0
    %595 = vmatmul.mubr.bf16.gmra.mrb[0].mxu0 %v491
    %v596 = vpop.f32.mrb[0].mxu0
    %v597 = vadd.f32 %v404, %v596
    %v598 = vpop.f32.mrb[0].mxu0
    %v599 = vpop.f32.mrb[0].mxu0
    %v600 = vadd.f32 %v407, %v599
    %v601 = vpop.f32.mrb[0].mxu0
    %602 = vmatprep.mubr.bf16.mxu0 0
    %603 = vmatmul.mubr.bf16.gmra.mrb[0].mxu0 %v492
    %v604 = vpop.f32.mrb[0].mxu0
    %v605 = vadd.f32 %v412, %v604
    %v606 = vpop.f32.mrb[0].mxu0
    %v607 = vpop.f32.mrb[0].mxu0
    %v608 = vadd.f32 %v415, %v607
    %v609 = vpop.f32.mrb[0].mxu0
    %610 = vmatprep.mubr.bf16.mxu0 0
    %611 = vmatmul.mubr.bf16.gmra.mrb[0].mxu0 %v493
    %v612 = vpop.f32.mrb[0].mxu0
    %v613 = vadd.f32 %v420, %v612
    %v614 = vpop.f32.mrb[0].mxu0
    %v615 = vpop.f32.mrb[0].mxu0
    %v616 = vadd.f32 %v423, %v615
    %v617 = vpop.f32.mrb[0].mxu0
    %618 = vmatprep.mubr.bf16.mxu0 0
    %619 = vmatmul.mubr.bf16.gmra.mrb[0].mxu0 %v494
    %v620 = vpop.f32.mrb[0].mxu0
    %v621 = vadd.f32 %v428, %v620
    %v622 = vpop.f32.mrb[0].mxu0
    %v623 = vpop.f32.mrb[0].mxu0
    %v624 = vadd.f32 %v431, %v623
    %v625 = vpop.f32.mrb[0].mxu0
    %626 = vmatprep.mubr.bf16.mxu0 0
    %627 = vmatmul.mubr.bf16.gmra.mrb[0].mxu0 %v495
    %v628 = vpop.f32.mrb[0].mxu0
    %v629 = vadd.f32 %v436, %v628
    %v630 = vpop.f32.mrb[0].mxu0
    %v631 = vpop.f32.mrb[0].mxu0
    %v632 = vadd.f32 %v439, %v631
    %v633 = vpop.f32.mrb[0].mxu0
    %634 = vmatprep.mubr.bf16.mxu0 0
    %635 = vmatmul.mubr.bf16.gmra.mrb[0].mxu0 %v496
    %v636 = vpop.f32.mrb[0].mxu0
    %v637 = vadd.f32 %v444, %v636
    %v638 = vpop.f32.mrb[0].mxu0
    %v639 = vpop.f32.mrb[0].mxu0
    %v640 = vadd.f32 %v447, %v639
    %v641 = vpop.f32.mrb[0].mxu0
    %642 = vmatprep.mubr.bf16.mxu0 0
    %643 = vmatmul.mubr.bf16.gmra.mrb[0].mxu0 %v497
    %v644 = vpop.f32.mrb[0].mxu0
    %v645 = vadd.f32 %v452, %v644
    %v646 = vpop.f32.mrb[0].mxu0
    %v647 = vpop.f32.mrb[0].mxu0
    %v648 = vadd.f32 %v455, %v647
    %v649 = vpop.f32.mrb[0].mxu0
    %650 = vdwg.mxu0
    %v651 = vld [vmem:[#allocation6 + $0xc4] sm:$0xf]
    %v652 = vld [vmem:[#allocation6 + $0xd0] sm:$0xf]
    %v653 = vld [vmem:[#allocation6 + $0xdc] sm:$0xf]
    %v654 = vld [vmem:[#allocation6 + $0xe8] sm:$0xf]
    %v655 = vld [vmem:[#allocation6 + $0xf4] sm:$0xf]
    %v656 = vld [vmem:[#allocation6 + $0x100] sm:$0xf]
    %v657 = vld [vmem:[#allocation6 + $0x10c] sm:$0xf]
    %v658 = vld [vmem:[#allocation6 + $0x118] sm:$0xf]
    %v659 = vld [vmem:[#allocation6 + $0x124] sm:$0xf]
    %v660 = vld [vmem:[#allocation6 + $0x130] sm:$0xf]
    %v661 = vld [vmem:[#allocation6 + $0x13c] sm:$0xf]
    %v662 = vld [vmem:[#allocation6 + $0x148] sm:$0xf]
    %v663 = vld [vmem:[#allocation6 + $0x154] sm:$0xf]
    %v664 = vld [vmem:[#allocation6 + $0x160] sm:$0xf]
    %v665 = vld [vmem:[#allocation6 + $0x16c] sm:$0xf]
    %v666 = vld [vmem:[#allocation6 + $0x178] sm:$0xf]
    %v683 = vunpack.c.l.b16 %v651
    %v684 = vunpack.c.l.b16 %v652
    %v685 = vunpack.c.l.b16 %v653
    %v686 = vunpack.c.l.b16 %v654
    %v687 = vunpack.c.l.b16 %v655
    %v688 = vunpack.c.l.b16 %v656
    %v689 = vunpack.c.l.b16 %v657
    %v690 = vunpack.c.l.b16 %v658
    %v691 = vunpack.c.l.b16 %v659
    %v692 = vunpack.c.l.b16 %v660
    %v693 = vunpack.c.l.b16 %v661
    %v694 = vunpack.c.l.b16 %v662
    %v695 = vunpack.c.l.b16 %v663
    %v696 = vunpack.c.l.b16 %v664
    %v697 = vunpack.c.l.b16 %v665
    %v698 = vunpack.c.l.b16 %v666
    %v699 = vpack.c.b16 %v684, %v683
    %v700 = vpack.c.b16 %v686, %v685
    %v701 = vpack.c.b16 %v688, %v687
    %v702 = vpack.c.b16 %v690, %v689
    %v703 = vpack.c.b16 %v692, %v691
    %v704 = vpack.c.b16 %v694, %v693
    %v705 = vpack.c.b16 %v696, %v695
    %v706 = vpack.c.b16 %v698, %v697
    %715 = vmatprep.subr.bf16.mxu0 0
    %716 = vmatpush1.bf16.msra.mxu0 %v699
    %717 = vmatprep.subr.bf16.mxu0 0
    %718 = vmatpush1.bf16.msra.mxu0 %v700
    %719 = vmatprep.subr.bf16.mxu0 0
    %720 = vmatpush1.bf16.msra.mxu0 %v701
    %721 = vmatprep.subr.bf16.mxu0 0
    %722 = vmatpush1.bf16.msra.mxu0 %v702
    %723 = vmatprep.subr.bf16.mxu0 0
    %724 = vmatpush1.bf16.msra.mxu0 %v703
    %725 = vmatprep.subr.bf16.mxu0 0
    %726 = vmatpush1.bf16.msra.mxu0 %v704
    %727 = vmatprep.subr.bf16.mxu0 0
    %728 = vmatpush1.bf16.msra.mxu0 %v705
    %729 = vmatprep.subr.bf16.mxu0 0
    %730 = vmatpush1.bf16.msra.mxu0 %v706
    %731 = vmatprep.subr.bf16.mxu0 0
    %732 = vmatpush1.bf16.msra.mxu0 0
    %733 = vmatprep.subr.bf16.mxu0 0
    %734 = vmatpush1.bf16.msra.mxu0 0
    %735 = vmatprep.subr.bf16.mxu0 0
    %736 = vmatpush1.bf16.msra.mxu0 0
    %737 = vmatprep.subr.bf16.mxu0 0
    %738 = vmatpush1.bf16.msra.mxu0 0
    %739 = vmatprep.subr.bf16.mxu0 0
    %740 = vmatpush1.bf16.msra.mxu0 0
    %741 = vmatprep.subr.bf16.mxu0 0
    %742 = vmatpush1.bf16.msra.mxu0 0
    %743 = vmatprep.subr.bf16.mxu0 0
    %744 = vmatpush1.bf16.msra.mxu0 0
    %745 = vmatprep.subr.bf16.mxu0 0
    %746 = vmatpush1.bf16.msra.mxu0 0
    %747 = vmatprep.mubr.bf16.mxu0 0
    %748 = vmatmul.mubr.bf16.gmra.mrb[0].mxu0 %v248
    %v749 = vpop.f32.mrb[0].mxu0
    %v750 = vadd.f32 0.0, %v749
    %v751 = vpop.f32.mrb[0].mxu0
    %v752 = vpop.f32.mrb[0].mxu0
    %v753 = vadd.f32 0.0, %v752
    %v754 = vpop.f32.mrb[0].mxu0
    %755 = vmatprep.mubr.bf16.mxu0 0
    %756 = vmatmul.mubr.bf16.gmra.mrb[0].mxu0 %v256
    %v757 = vpop.f32.mrb[0].mxu0
    %v758 = vadd.f32 0.0, %v757
    %v759 = vpop.f32.mrb[0].mxu0
    %v760 = vpop.f32.mrb[0].mxu0
    %v761 = vadd.f32 0.0, %v760
    %v762 = vpop.f32.mrb[0].mxu0
    %763 = vmatprep.mubr.bf16.mxu0 0
    %764 = vmatmul.mubr.bf16.gmra.mrb[0].mxu0 %v264
    %v765 = vpop.f32.mrb[0].mxu0
    %v766 = vadd.f32 0.0, %v765
    %v767 = vpop.f32.mrb[0].mxu0
    %v768 = vpop.f32.mrb[0].mxu0
    %v769 = vadd.f32 0.0, %v768
    %v770 = vpop.f32.mrb[0].mxu0
    %771 = vmatprep.mubr.bf16.mxu0 0
    %772 = vmatmul.mubr.bf16.gmra.mrb[0].mxu0 %v272
    %v773 = vpop.f32.mrb[0].mxu0
    %v774 = vadd.f32 0.0, %v773
    %v775 = vpop.f32.mrb[0].mxu0
    %v776 = vpop.f32.mrb[0].mxu0
    %v777 = vadd.f32 0.0, %v776
    %v778 = vpop.f32.mrb[0].mxu0
    %779 = vmatprep.mubr.bf16.mxu0 0
    %780 = vmatmul.mubr.bf16.gmra.mrb[0].mxu0 %v280
    %v781 = vpop.f32.mrb[0].mxu0
    %v782 = vadd.f32 0.0, %v781
    %v783 = vpop.f32.mrb[0].mxu0
    %v784 = vpop.f32.mrb[0].mxu0
    %v785 = vadd.f32 0.0, %v784
    %v786 = vpop.f32.mrb[0].mxu0
    %787 = vmatprep.mubr.bf16.mxu0 0
    %788 = vmatmul.mubr.bf16.gmra.mrb[0].mxu0 %v288
    %v789 = vpop.f32.mrb[0].mxu0
    %v790 = vadd.f32 0.0, %v789
    %v791 = vpop.f32.mrb[0].mxu0
    %v792 = vpop.f32.mrb[0].mxu0
    %v793 = vadd.f32 0.0, %v792
    %v794 = vpop.f32.mrb[0].mxu0
    %795 = vmatprep.mubr.bf16.mxu0 0
    %796 = vmatmul.mubr.bf16.gmra.mrb[0].mxu0 %v296
    %v797 = vpop.f32.mrb[0].mxu0
    %v798 = vadd.f32 0.0, %v797
    %v799 = vpop.f32.mrb[0].mxu0
    %v800 = vpop.f32.mrb[0].mxu0
    %v801 = vadd.f32 0.0, %v800
    %v802 = vpop.f32.mrb[0].mxu0
    %803 = vmatprep.mubr.bf16.mxu0 0
    %804 = vmatmul.mubr.bf16.gmra.mrb[0].mxu0 %v304
    %v805 = vpop.f32.mrb[0].mxu0
    %v806 = vadd.f32 0.0, %v805
    %v807 = vpop.f32.mrb[0].mxu0
    %v808 = vpop.f32.mrb[0].mxu0
    %v809 = vadd.f32 0.0, %v808
    %v810 = vpop.f32.mrb[0].mxu0
    %811 = vdwg.mxu0
    %v828 = vunpack.c.l.b16 %v128
    %v829 = vunpack.c.l.b16 %v129
    %v830 = vunpack.c.l.b16 %v130
    %v831 = vunpack.c.l.b16 %v131
    %v832 = vunpack.c.l.b16 %v132
    %v833 = vunpack.c.l.b16 %v133
    %v834 = vunpack.c.l.b16 %v134
    %v835 = vunpack.c.l.b16 %v135
    %v836 = vunpack.c.l.b16 %v136
    %v837 = vunpack.c.l.b16 %v137
    %v838 = vunpack.c.l.b16 %v138
    %v839 = vunpack.c.l.b16 %v139
    %v840 = vunpack.c.l.b16 %v140
    %v841 = vunpack.c.l.b16 %v141
    %v842 = vunpack.c.l.b16 %v142
    %v843 = vunpack.c.l.b16 %v143
    %v844 = vpack.c.b16 %v829, %v828
    %v845 = vpack.c.b16 %v831, %v830
    %v846 = vpack.c.b16 %v833, %v832
    %v847 = vpack.c.b16 %v835, %v834
    %v848 = vpack.c.b16 %v837, %v836
    %v849 = vpack.c.b16 %v839, %v838
    %v850 = vpack.c.b16 %v841, %v840
    %v851 = vpack.c.b16 %v843, %v842
    %860 = vmatprep.subr.bf16.mxu0 0
    %861 = vmatpush1.bf16.msra.mxu0 %v844
    %862 = vmatprep.subr.bf16.mxu0 0
    %863 = vmatpush1.bf16.msra.mxu0 %v845
    %864 = vmatprep.subr.bf16.mxu0 0
    %865 = vmatpush1.bf16.msra.mxu0 %v846
    %866 = vmatprep.subr.bf16.mxu0 0
    %867 = vmatpush1.bf16.msra.mxu0 %v847
    %868 = vmatprep.subr.bf16.mxu0 0
    %869 = vmatpush1.bf16.msra.mxu0 %v848
    %870 = vmatprep.subr.bf16.mxu0 0
    %871 = vmatpush1.bf16.msra.mxu0 %v849
    %872 = vmatprep.subr.bf16.mxu0 0
    %873 = vmatpush1.bf16.msra.mxu0 %v850
    %874 = vmatprep.subr.bf16.mxu0 0
    %875 = vmatpush1.bf16.msra.mxu0 %v851
    %876 = vmatprep.subr.bf16.mxu0 0
    %877 = vmatpush1.bf16.msra.mxu0 0
    %878 = vmatprep.subr.bf16.mxu0 0
    %879 = vmatpush1.bf16.msra.mxu0 0
    %880 = vmatprep.subr.bf16.mxu0 0
    %881 = vmatpush1.bf16.msra.mxu0 0
    %882 = vmatprep.subr.bf16.mxu0 0
    %883 = vmatpush1.bf16.msra.mxu0 0
    %884 = vmatprep.subr.bf16.mxu0 0
    %885 = vmatpush1.bf16.msra.mxu0 0
    %886 = vmatprep.subr.bf16.mxu0 0
    %887 = vmatpush1.bf16.msra.mxu0 0
    %888 = vmatprep.subr.bf16.mxu0 0
    %889 = vmatpush1.bf16.msra.mxu0 0
    %890 = vmatprep.subr.bf16.mxu0 0
    %891 = vmatpush1.bf16.msra.mxu0 0
    %892 = vmatprep.mubr.bf16.mxu0 0
    %893 = vmatmul.mubr.bf16.gmra.mrb[0].mxu0 %v490
    %v894 = vpop.f32.mrb[0].mxu0
    %v895 = vadd.f32 %v750, %v894
    %v896 = vpop.f32.mrb[0].mxu0
    %v897 = vpop.f32.mrb[0].mxu0
    %v898 = vadd.f32 %v753, %v897
    %v899 = vpop.f32.mrb[0].mxu0
    %900 = vmatprep.mubr.bf16.mxu0 0
    %901 = vmatmul.mubr.bf16.gmra.mrb[0].mxu0 %v491
    %v902 = vpop.f32.mrb[0].mxu0
    %v903 = vadd.f32 %v758, %v902
    %v904 = vpop.f32.mrb[0].mxu0
    %v905 = vpop.f32.mrb[0].mxu0
    %v906 = vadd.f32 %v761, %v905
    %v907 = vpop.f32.mrb[0].mxu0
    %908 = vmatprep.mubr.bf16.mxu0 0
    %909 = vmatmul.mubr.bf16.gmra.mrb[0].mxu0 %v492
    %v910 = vpop.f32.mrb[0].mxu0
    %v911 = vadd.f32 %v766, %v910
    %v912 = vpop.f32.mrb[0].mxu0
    %v913 = vpop.f32.mrb[0].mxu0
    %v914 = vadd.f32 %v769, %v913
    %v915 = vpop.f32.mrb[0].mxu0
    %916 = vmatprep.mubr.bf16.mxu0 0
    %917 = vmatmul.mubr.bf16.gmra.mrb[0].mxu0 %v493
    %v918 = vpop.f32.mrb[0].mxu0
    %v919 = vadd.f32 %v774, %v918
    %v920 = vpop.f32.mrb[0].mxu0
    %v921 = vpop.f32.mrb[0].mxu0
    %v922 = vadd.f32 %v777, %v921
    %v923 = vpop.f32.mrb[0].mxu0
    %924 = vmatprep.mubr.bf16.mxu0 0
    %925 = vmatmul.mubr.bf16.gmra.mrb[0].mxu0 %v494
    %v926 = vpop.f32.mrb[0].mxu0
    %v927 = vadd.f32 %v782, %v926
    %v928 = vpop.f32.mrb[0].mxu0
    %v929 = vpop.f32.mrb[0].mxu0
    %v930 = vadd.f32 %v785, %v929
    %v931 = vpop.f32.mrb[0].mxu0
    %932 = vmatprep.mubr.bf16.mxu0 0
    %933 = vmatmul.mubr.bf16.gmra.mrb[0].mxu0 %v495
    %v934 = vpop.f32.mrb[0].mxu0
    %v935 = vadd.f32 %v790, %v934
    %v936 = vpop.f32.mrb[0].mxu0
    %v937 = vpop.f32.mrb[0].mxu0
    %v938 = vadd.f32 %v793, %v937
    %v939 = vpop.f32.mrb[0].mxu0
    %940 = vmatprep.mubr.bf16.mxu0 0
    %941 = vmatmul.mubr.bf16.gmra.mrb[0].mxu0 %v496
    %v942 = vpop.f32.mrb[0].mxu0
    %v943 = vadd.f32 %v798, %v942
    %v944 = vpop.f32.mrb[0].mxu0
    %v945 = vpop.f32.mrb[0].mxu0
    %v946 = vadd.f32 %v801, %v945
    %v947 = vpop.f32.mrb[0].mxu0
    %948 = vmatprep.mubr.bf16.mxu0 0
    %949 = vmatmul.mubr.bf16.gmra.mrb[0].mxu0 %v497
    %v950 = vpop.f32.mrb[0].mxu0
    %v951 = vadd.f32 %v806, %v950
    %v952 = vpop.f32.mrb[0].mxu0
    %v953 = vpop.f32.mrb[0].mxu0
    %v954 = vadd.f32 %v809, %v953
    %v955 = vpop.f32.mrb[0].mxu0
    %956 = vdwg.mxu0
    %v957 = vld [vmem:[#allocation6 + $0xc8] sm:$0xf]
    %v958 = vld [vmem:[#allocation6 + $0xd4] sm:$0xf]
    %v959 = vld [vmem:[#allocation6 + $0xe0] sm:$0xf]
    %v960 = vld [vmem:[#allocation6 + $0xec] sm:$0xf]
    %v961 = vld [vmem:[#allocation6 + $0xf8] sm:$0xf]
    %v962 = vld [vmem:[#allocation6 + $0x104] sm:$0xf]
    %v963 = vld [vmem:[#allocation6 + $0x110] sm:$0xf]
    %v964 = vld [vmem:[#allocation6 + $0x11c] sm:$0xf]
    %v965 = vld [vmem:[#allocation6 + $0x128] sm:$0xf]
    %v966 = vld [vmem:[#allocation6 + $0x134] sm:$0xf]
    %v967 = vld [vmem:[#allocation6 + $0x140] sm:$0xf]
    %v968 = vld [vmem:[#allocation6 + $0x14c] sm:$0xf]
    %v969 = vld [vmem:[#allocation6 + $0x158] sm:$0xf]
    %v970 = vld [vmem:[#allocation6 + $0x164] sm:$0xf]
    %v971 = vld [vmem:[#allocation6 + $0x170] sm:$0xf]
    %v972 = vld [vmem:[#allocation6 + $0x17c] sm:$0xf]
    %v989 = vunpack.c.l.b16 %v957
    %v990 = vunpack.c.l.b16 %v958
    %v991 = vunpack.c.l.b16 %v959
    %v992 = vunpack.c.l.b16 %v960
    %v993 = vunpack.c.l.b16 %v961
    %v994 = vunpack.c.l.b16 %v962
    %v995 = vunpack.c.l.b16 %v963
    %v996 = vunpack.c.l.b16 %v964
    %v997 = vunpack.c.l.b16 %v965
    %v998 = vunpack.c.l.b16 %v966
    %v999 = vunpack.c.l.b16 %v967
    %v1000 = vunpack.c.l.b16 %v968
    %v1001 = vunpack.c.l.b16 %v969
    %v1002 = vunpack.c.l.b16 %v970
    %v1003 = vunpack.c.l.b16 %v971
    %v1004 = vunpack.c.l.b16 %v972
    %v1005 = vpack.c.b16 %v990, %v989
    %v1006 = vpack.c.b16 %v992, %v991
    %v1007 = vpack.c.b16 %v994, %v993
    %v1008 = vpack.c.b16 %v996, %v995
    %v1009 = vpack.c.b16 %v998, %v997
    %v1010 = vpack.c.b16 %v1000, %v999
    %v1011 = vpack.c.b16 %v1002, %v1001
    %v1012 = vpack.c.b16 %v1004, %v1003
    %1021 = vmatprep.subr.bf16.mxu0 0
    %1022 = vmatpush1.bf16.msra.mxu0 %v1005
    %1023 = vmatprep.subr.bf16.mxu0 0
    %1024 = vmatpush1.bf16.msra.mxu0 %v1006
    %1025 = vmatprep.subr.bf16.mxu0 0
    %1026 = vmatpush1.bf16.msra.mxu0 %v1007
    %1027 = vmatprep.subr.bf16.mxu0 0
    %1028 = vmatpush1.bf16.msra.mxu0 %v1008
    %1029 = vmatprep.subr.bf16.mxu0 0
    %1030 = vmatpush1.bf16.msra.mxu0 %v1009
    %1031 = vmatprep.subr.bf16.mxu0 0
    %1032 = vmatpush1.bf16.msra.mxu0 %v1010
    %1033 = vmatprep.subr.bf16.mxu0 0
    %1034 = vmatpush1.bf16.msra.mxu0 %v1011
    %1035 = vmatprep.subr.bf16.mxu0 0
    %1036 = vmatpush1.bf16.msra.mxu0 %v1012
    %1037 = vmatprep.subr.bf16.mxu0 0
    %1038 = vmatpush1.bf16.msra.mxu0 0
    %1039 = vmatprep.subr.bf16.mxu0 0
    %1040 = vmatpush1.bf16.msra.mxu0 0
    %1041 = vmatprep.subr.bf16.mxu0 0
    %1042 = vmatpush1.bf16.msra.mxu0 0
    %1043 = vmatprep.subr.bf16.mxu0 0
    %1044 = vmatpush1.bf16.msra.mxu0 0
    %1045 = vmatprep.subr.bf16.mxu0 0
    %1046 = vmatpush1.bf16.msra.mxu0 0
    %1047 = vmatprep.subr.bf16.mxu0 0
    %1048 = vmatpush1.bf16.msra.mxu0 0
    %1049 = vmatprep.subr.bf16.mxu0 0
    %1050 = vmatpush1.bf16.msra.mxu0 0
    %1051 = vmatprep.subr.bf16.mxu0 0
    %1052 = vmatpush1.bf16.msra.mxu0 0
    %1053 = vmatprep.mubr.bf16.mxu0 0
    %1054 = vmatmul.mubr.bf16.gmra.mrb[0].mxu0 %v248
    %v1055 = vpop.f32.mrb[0].mxu0
    %v1056 = vadd.f32 0.0, %v1055
    %v1057 = vpop.f32.mrb[0].mxu0
    %v1058 = vpop.f32.mrb[0].mxu0
    %v1059 = vadd.f32 0.0, %v1058
    %v1060 = vpop.f32.mrb[0].mxu0
    %1061 = vmatprep.mubr.bf16.mxu0 0
    %1062 = vmatmul.mubr.bf16.gmra.mrb[0].mxu0 %v256
    %v1063 = vpop.f32.mrb[0].mxu0
    %v1064 = vadd.f32 0.0, %v1063
    %v1065 = vpop.f32.mrb[0].mxu0
    %v1066 = vpop.f32.mrb[0].mxu0
    %v1067 = vadd.f32 0.0, %v1066
    %v1068 = vpop.f32.mrb[0].mxu0
    %1069 = vmatprep.mubr.bf16.mxu0 0
    %1070 = vmatmul.mubr.bf16.gmra.mrb[0].mxu0 %v264
    %v1071 = vpop.f32.mrb[0].mxu0
    %v1072 = vadd.f32 0.0, %v1071
    %v1073 = vpop.f32.mrb[0].mxu0
    %v1074 = vpop.f32.mrb[0].mxu0
    %v1075 = vadd.f32 0.0, %v1074
    %v1076 = vpop.f32.mrb[0].mxu0
    %1077 = vmatprep.mubr.bf16.mxu0 0
    %1078 = vmatmul.mubr.bf16.gmra.mrb[0].mxu0 %v272
    %v1079 = vpop.f32.mrb[0].mxu0
    %v1080 = vadd.f32 0.0, %v1079
    %v1081 = vpop.f32.mrb[0].mxu0
    %v1082 = vpop.f32.mrb[0].mxu0
    %v1083 = vadd.f32 0.0, %v1082
    %v1084 = vpop.f32.mrb[0].mxu0
    %1085 = vmatprep.mubr.bf16.mxu0 0
    %1086 = vmatmul.mubr.bf16.gmra.mrb[0].mxu0 %v280
    %v1087 = vpop.f32.mrb[0].mxu0
    %v1088 = vadd.f32 0.0, %v1087
    %v1089 = vpop.f32.mrb[0].mxu0
    %v1090 = vpop.f32.mrb[0].mxu0
    %v1091 = vadd.f32 0.0, %v1090
    %v1092 = vpop.f32.mrb[0].mxu0
    %1093 = vmatprep.mubr.bf16.mxu0 0
    %1094 = vmatmul.mubr.bf16.gmra.mrb[0].mxu0 %v288
    %v1095 = vpop.f32.mrb[0].mxu0
    %v1096 = vadd.f32 0.0, %v1095
    %v1097 = vpop.f32.mrb[0].mxu0
    %v1098 = vpop.f32.mrb[0].mxu0
    %v1099 = vadd.f32 0.0, %v1098
    %v1100 = vpop.f32.mrb[0].mxu0
    %1101 = vmatprep.mubr.bf16.mxu0 0
    %1102 = vmatmul.mubr.bf16.gmra.mrb[0].mxu0 %v296
    %v1103 = vpop.f32.mrb[0].mxu0
    %v1104 = vadd.f32 0.0, %v1103
    %v1105 = vpop.f32.mrb[0].mxu0
    %v1106 = vpop.f32.mrb[0].mxu0
    %v1107 = vadd.f32 0.0, %v1106
    %v1108 = vpop.f32.mrb[0].mxu0
    %1109 = vmatprep.mubr.bf16.mxu0 0
    %1110 = vmatmul.mubr.bf16.gmra.mrb[0].mxu0 %v304
    %v1111 = vpop.f32.mrb[0].mxu0
    %v1112 = vadd.f32 0.0, %v1111
    %v1113 = vpop.f32.mrb[0].mxu0
    %v1114 = vpop.f32.mrb[0].mxu0
    %v1115 = vadd.f32 0.0, %v1114
    %v1116 = vpop.f32.mrb[0].mxu0
    %1117 = vdwg.mxu0
    %v1134 = vunpack.c.l.b16 %v144
    %v1135 = vunpack.c.l.b16 %v145
    %v1136 = vunpack.c.l.b16 %v146
    %v1137 = vunpack.c.l.b16 %v147
    %v1138 = vunpack.c.l.b16 %v148
    %v1139 = vunpack.c.l.b16 %v149
    %v1140 = vunpack.c.l.b16 %v150
    %v1141 = vunpack.c.l.b16 %v151
    %v1142 = vunpack.c.l.b16 %v152
    %v1143 = vunpack.c.l.b16 %v153
    %v1144 = vunpack.c.l.b16 %v154
    %v1145 = vunpack.c.l.b16 %v155
    %v1146 = vunpack.c.l.b16 %v156
    %v1147 = vunpack.c.l.b16 %v157
    %v1148 = vunpack.c.l.b16 %v158
    %v1149 = vunpack.c.l.b16 %v159
    %v1150 = vpack.c.b16 %v1135, %v1134
    %v1151 = vpack.c.b16 %v1137, %v1136
    %v1152 = vpack.c.b16 %v1139, %v1138
    %v1153 = vpack.c.b16 %v1141, %v1140
    %v1154 = vpack.c.b16 %v1143, %v1142
    %v1155 = vpack.c.b16 %v1145, %v1144
    %v1156 = vpack.c.b16 %v1147, %v1146
    %v1157 = vpack.c.b16 %v1149, %v1148
    %1166 = vmatprep.subr.bf16.mxu0 0
    %1167 = vmatpush1.bf16.msra.mxu0 %v1150
    %1168 = vmatprep.subr.bf16.mxu0 0
    %1169 = vmatpush1.bf16.msra.mxu0 %v1151
    %1170 = vmatprep.subr.bf16.mxu0 0
    %1171 = vmatpush1.bf16.msra.mxu0 %v1152
    %1172 = vmatprep.subr.bf16.mxu0 0
    %1173 = vmatpush1.bf16.msra.mxu0 %v1153
    %1174 = vmatprep.subr.bf16.mxu0 0
    %1175 = vmatpush1.bf16.msra.mxu0 %v1154
    %1176 = vmatprep.subr.bf16.mxu0 0
    %1177 = vmatpush1.bf16.msra.mxu0 %v1155
    %1178 = vmatprep.subr.bf16.mxu0 0
    %1179 = vmatpush1.bf16.msra.mxu0 %v1156
    %1180 = vmatprep.subr.bf16.mxu0 0
    %1181 = vmatpush1.bf16.msra.mxu0 %v1157
    %1182 = vmatprep.subr.bf16.mxu0 0
    %1183 = vmatpush1.bf16.msra.mxu0 0
    %1184 = vmatprep.subr.bf16.mxu0 0
    %1185 = vmatpush1.bf16.msra.mxu0 0
    %1186 = vmatprep.subr.bf16.mxu0 0
    %1187 = vmatpush1.bf16.msra.mxu0 0
    %1188 = vmatprep.subr.bf16.mxu0 0
    %1189 = vmatpush1.bf16.msra.mxu0 0
    %1190 = vmatprep.subr.bf16.mxu0 0
    %1191 = vmatpush1.bf16.msra.mxu0 0
    %1192 = vmatprep.subr.bf16.mxu0 0
    %1193 = vmatpush1.bf16.msra.mxu0 0
    %1194 = vmatprep.subr.bf16.mxu0 0
    %1195 = vmatpush1.bf16.msra.mxu0 0
    %1196 = vmatprep.subr.bf16.mxu0 0
    %1197 = vmatpush1.bf16.msra.mxu0 0
    %1198 = vmatprep.mubr.bf16.mxu0 0
    %1199 = vmatmul.mubr.bf16.gmra.mrb[0].mxu0 %v490
    %v1200 = vpop.f32.mrb[0].mxu0
    %v1201 = vadd.f32 %v1056, %v1200
    %v1202 = vpop.f32.mrb[0].mxu0
    %v1203 = vpop.f32.mrb[0].mxu0
    %v1204 = vadd.f32 %v1059, %v1203
    %v1205 = vpop.f32.mrb[0].mxu0
    %1206 = vmatprep.mubr.bf16.mxu0 0
    %1207 = vmatmul.mubr.bf16.gmra.mrb[0].mxu0 %v491
    %v1208 = vpop.f32.mrb[0].mxu0
    %v1209 = vadd.f32 %v1064, %v1208
    %v1210 = vpop.f32.mrb[0].mxu0
    %v1211 = vpop.f32.mrb[0].mxu0
    %v1212 = vadd.f32 %v1067, %v1211
    %v1213 = vpop.f32.mrb[0].mxu0
    %1214 = vmatprep.mubr.bf16.mxu0 0
    %1215 = vmatmul.mubr.bf16.gmra.mrb[0].mxu0 %v492
    %v1216 = vpop.f32.mrb[0].mxu0
    %v1217 = vadd.f32 %v1072, %v1216
    %v1218 = vpop.f32.mrb[0].mxu0
    %v1219 = vpop.f32.mrb[0].mxu0
    %v1220 = vadd.f32 %v1075, %v1219
    %v1221 = vpop.f32.mrb[0].mxu0
    %1222 = vmatprep.mubr.bf16.mxu0 0
    %1223 = vmatmul.mubr.bf16.gmra.mrb[0].mxu0 %v493
    %v1224 = vpop.f32.mrb[0].mxu0
    %v1225 = vadd.f32 %v1080, %v1224
    %v1226 = vpop.f32.mrb[0].mxu0
    %v1227 = vpop.f32.mrb[0].mxu0
    %v1228 = vadd.f32 %v1083, %v1227
    %v1229 = vpop.f32.mrb[0].mxu0
    %1230 = vmatprep.mubr.bf16.mxu0 0
    %1231 = vmatmul.mubr.bf16.gmra.mrb[0].mxu0 %v494
    %v1232 = vpop.f32.mrb[0].mxu0
    %v1233 = vadd.f32 %v1088, %v1232
    %v1234 = vpop.f32.mrb[0].mxu0
    %v1235 = vpop.f32.mrb[0].mxu0
    %v1236 = vadd.f32 %v1091, %v1235
    %v1237 = vpop.f32.mrb[0].mxu0
    %1238 = vmatprep.mubr.bf16.mxu0 0
    %1239 = vmatmul.mubr.bf16.gmra.mrb[0].mxu0 %v495
    %v1240 = vpop.f32.mrb[0].mxu0
    %v1241 = vadd.f32 %v1096, %v1240
    %v1242 = vpop.f32.mrb[0].mxu0
    %v1243 = vpop.f32.mrb[0].mxu0
    %v1244 = vadd.f32 %v1099, %v1243
    %v1245 = vpop.f32.mrb[0].mxu0
    %1246 = vmatprep.mubr.bf16.mxu0 0
    %1247 = vmatmul.mubr.bf16.gmra.mrb[0].mxu0 %v496
    %v1248 = vpop.f32.mrb[0].mxu0
    %v1249 = vadd.f32 %v1104, %v1248
    %v1250 = vpop.f32.mrb[0].mxu0
    %v1251 = vpop.f32.mrb[0].mxu0
    %v1252 = vadd.f32 %v1107, %v1251
    %v1253 = vpop.f32.mrb[0].mxu0
    %1254 = vmatprep.mubr.bf16.mxu0 0
    %1255 = vmatmul.mubr.bf16.gmra.mrb[0].mxu0 %v497
    %v1256 = vpop.f32.mrb[0].mxu0
    %v1257 = vadd.f32 %v1112, %v1256
    %v1258 = vpop.f32.mrb[0].mxu0
    %v1259 = vpop.f32.mrb[0].mxu0
    %v1260 = vadd.f32 %v1115, %v1259
    %v1261 = vpop.f32.mrb[0].mxu0
    %1262 = vdwg.mxu0
    %v1263 = vld [vmem:[#allocation2] sm:$0xe]
    %v1264 = vld [vmem:[#allocation6 + $0x180] sm:$0xf]
    %v1265 = vld [vmem:[#allocation6 + $0x18c] sm:$0xf]
    %v1266 = vld [vmem:[#allocation6 + $0x198] sm:$0xf]
    %v1267 = vld [vmem:[#allocation6 + $0x1a4] sm:$0xf]
    %v1268 = vld [vmem:[#allocation6 + $0x1b0] sm:$0xf]
    %v1269 = vld [vmem:[#allocation6 + $0x1bc] sm:$0xf]
    %v1270 = vld [vmem:[#allocation6 + $0x1c8] sm:$0xf]
    %v1271 = vld [vmem:[#allocation6 + $0x1d4] sm:$0xf]
    %v1272 = vld [vmem:[#allocation6 + $0x1e0] sm:$0xf]
    %v1273 = vld [vmem:[#allocation6 + $0x1ec] sm:$0xf]
    %v1274 = vld [vmem:[#allocation6 + $0x1f8] sm:$0xf]
    %v1275 = vld [vmem:[#allocation6 + $0x204] sm:$0xf]
    %v1276 = vld [vmem:[#allocation6 + $0x210] sm:$0xf]
    %v1277 = vld [vmem:[#allocation6 + $0x21c] sm:$0xf]
    %v1278 = vld [vmem:[#allocation6 + $0x228] sm:$0xf]
    %v1279 = vld [vmem:[#allocation6 + $0x234] sm:$0xf]
    %v1281 = vunpack.c.l.b16 %v1263
    %v1282 = vpack.c.b16 %v211, %v1281
    %vm1283 = vcmask 1046528
    %v1284 = vrot.slane %v1282, 1
    %v1285 = vrot.slane %v228, 1
    %v1286 = vsel %vm1283, %v1284, %v1285
    %v1287 = vrot.slane %v229, 1
    %v1288 = vsel %vm1283, %v1285, %v1287
    %v1289 = vrot.slane %v230, 1
    %v1290 = vsel %vm1283, %v1287, %v1289
    %v1291 = vrot.slane %v231, 1
    %v1292 = vsel %vm1283, %v1289, %v1291
    %v1293 = vrot.slane %v232, 1
    %v1294 = vsel %vm1283, %v1291, %v1293
    %v1295 = vrot.slane %v233, 1
    %v1296 = vsel %vm1283, %v1293, %v1295
    %v1297 = vrot.slane %v234, 1
    %v1298 = vsel %vm1283, %v1295, %v1297
    %v1299 = vrot.slane %v235, 1
    %v1300 = vsel %vm1283, %v1297, %v1299
    %v1325 = vunpack.c.l.b16 %v1264
    %v1326 = vunpack.c.l.b16 %v1265
    %v1327 = vunpack.c.l.b16 %v1266
    %v1328 = vunpack.c.l.b16 %v1267
    %v1329 = vunpack.c.l.b16 %v1268
    %v1330 = vunpack.c.l.b16 %v1269
    %v1331 = vunpack.c.l.b16 %v1270
    %v1332 = vunpack.c.l.b16 %v1271
    %v1333 = vunpack.c.l.b16 %v1272
    %v1334 = vunpack.c.l.b16 %v1273
    %v1335 = vunpack.c.l.b16 %v1274
    %v1336 = vunpack.c.l.b16 %v1275
    %v1337 = vunpack.c.l.b16 %v1276
    %v1338 = vunpack.c.l.b16 %v1277
    %v1339 = vunpack.c.l.b16 %v1278
    %v1340 = vunpack.c.l.b16 %v1279
    %v1341 = vpack.c.b16 %v1326, %v1325
    %v1342 = vpack.c.b16 %v1328, %v1327
    %v1343 = vpack.c.b16 %v1330, %v1329
    %v1344 = vpack.c.b16 %v1332, %v1331
    %v1345 = vpack.c.b16 %v1334, %v1333
    %v1346 = vpack.c.b16 %v1336, %v1335
    %v1347 = vpack.c.b16 %v1338, %v1337
    %v1348 = vpack.c.b16 %v1340, %v1339
    %1357 = vmatprep.subr.bf16.mxu0 0
    %1358 = vmatpush1.bf16.msra.mxu0 %v1341
    %1359 = vmatprep.subr.bf16.mxu0 0
    %1360 = vmatpush1.bf16.msra.mxu0 %v1342
    %1361 = vmatprep.subr.bf16.mxu0 0
    %1362 = vmatpush1.bf16.msra.mxu0 %v1343
    %1363 = vmatprep.subr.bf16.mxu0 0
    %1364 = vmatpush1.bf16.msra.mxu0 %v1344
    %1365 = vmatprep.subr.bf16.mxu0 0
    %1366 = vmatpush1.bf16.msra.mxu0 %v1345
    %1367 = vmatprep.subr.bf16.mxu0 0
    %1368 = vmatpush1.bf16.msra.mxu0 %v1346
    %1369 = vmatprep.subr.bf16.mxu0 0
    %1370 = vmatpush1.bf16.msra.mxu0 %v1347
    %1371 = vmatprep.subr.bf16.mxu0 0
    %1372 = vmatpush1.bf16.msra.mxu0 %v1348
    %1373 = vmatprep.subr.bf16.mxu0 0
    %1374 = vmatpush1.bf16.msra.mxu0 0
    %1375 = vmatprep.subr.bf16.mxu0 0
    %1376 = vmatpush1.bf16.msra.mxu0 0
    %1377 = vmatprep.subr.bf16.mxu0 0
    %1378 = vmatpush1.bf16.msra.mxu0 0
    %1379 = vmatprep.subr.bf16.mxu0 0
    %1380 = vmatpush1.bf16.msra.mxu0 0
    %1381 = vmatprep.subr.bf16.mxu0 0
    %1382 = vmatpush1.bf16.msra.mxu0 0
    %1383 = vmatprep.subr.bf16.mxu0 0
    %1384 = vmatpush1.bf16.msra.mxu0 0
    %1385 = vmatprep.subr.bf16.mxu0 0
    %1386 = vmatpush1.bf16.msra.mxu0 0
    %1387 = vmatprep.subr.bf16.mxu0 0
    %1388 = vmatpush1.bf16.msra.mxu0 0
    %1389 = vmatprep.mubr.bf16.mxu0 0
    %1390 = vmatmul.mubr.bf16.gmra.mrb[0].mxu0 %v1286
    %v1391 = vpop.f32.mrb[0].mxu0
    %v1392 = vadd.f32 0.0, %v1391
    %v1393 = vpop.f32.mrb[0].mxu0
    %v1394 = vpop.f32.mrb[0].mxu0
    %v1395 = vadd.f32 0.0, %v1394
    %v1396 = vpop.f32.mrb[0].mxu0
    %1397 = vmatprep.mubr.bf16.mxu0 0
    %1398 = vmatmul.mubr.bf16.gmra.mrb[0].mxu0 %v1288
    %v1399 = vpop.f32.mrb[0].mxu0
    %v1400 = vadd.f32 0.0, %v1399
    %v1401 = vpop.f32.mrb[0].mxu0
    %v1402 = vpop.f32.mrb[0].mxu0
    %v1403 = vadd.f32 0.0, %v1402
    %v1404 = vpop.f32.mrb[0].mxu0
    %1405 = vmatprep.mubr.bf16.mxu0 0
    %1406 = vmatmul.mubr.bf16.gmra.mrb[0].mxu0 %v1290
    %v1407 = vpop.f32.mrb[0].mxu0
    %v1408 = vadd.f32 0.0, %v1407
    %v1409 = vpop.f32.mrb[0].mxu0
    %v1410 = vpop.f32.mrb[0].mxu0
    %v1411 = vadd.f32 0.0, %v1410
    %v1412 = vpop.f32.mrb[0].mxu0
    %1413 = vmatprep.mubr.bf16.mxu0 0
    %1414 = vmatmul.mubr.bf16.gmra.mrb[0].mxu0 %v1292
    %v1415 = vpop.f32.mrb[0].mxu0
    %v1416 = vadd.f32 0.0, %v1415
    %v1417 = vpop.f32.mrb[0].mxu0
    %v1418 = vpop.f32.mrb[0].mxu0
    %v1419 = vadd.f32 0.0, %v1418
    %v1420 = vpop.f32.mrb[0].mxu0
    %1421 = vmatprep.mubr.bf16.mxu0 0
    %1422 = vmatmul.mubr.bf16.gmra.mrb[0].mxu0 %v1294
    %v1423 = vpop.f32.mrb[0].mxu0
    %v1424 = vadd.f32 0.0, %v1423
    %v1425 = vpop.f32.mrb[0].mxu0
    %v1426 = vpop.f32.mrb[0].mxu0
    %v1427 = vadd.f32 0.0, %v1426
    %v1428 = vpop.f32.mrb[0].mxu0
    %1429 = vmatprep.mubr.bf16.mxu0 0
    %1430 = vmatmul.mubr.bf16.gmra.mrb[0].mxu0 %v1296
    %v1431 = vpop.f32.mrb[0].mxu0
    %v1432 = vadd.f32 0.0, %v1431
    %v1433 = vpop.f32.mrb[0].mxu0
    %v1434 = vpop.f32.mrb[0].mxu0
    %v1435 = vadd.f32 0.0, %v1434
    %v1436 = vpop.f32.mrb[0].mxu0
    %1437 = vmatprep.mubr.bf16.mxu0 0
    %1438 = vmatmul.mubr.bf16.gmra.mrb[0].mxu0 %v1298
    %v1439 = vpop.f32.mrb[0].mxu0
    %v1440 = vadd.f32 0.0, %v1439
    %v1441 = vpop.f32.mrb[0].mxu0
    %v1442 = vpop.f32.mrb[0].mxu0
    %v1443 = vadd.f32 0.0, %v1442
    %v1444 = vpop.f32.mrb[0].mxu0
    %1445 = vmatprep.mubr.bf16.mxu0 0
    %1446 = vmatmul.mubr.bf16.gmra.mrb[0].mxu0 %v1300
    %v1447 = vpop.f32.mrb[0].mxu0
    %v1448 = vadd.f32 0.0, %v1447
    %v1449 = vpop.f32.mrb[0].mxu0
    %v1450 = vpop.f32.mrb[0].mxu0
    %v1451 = vadd.f32 0.0, %v1450
    %v1452 = vpop.f32.mrb[0].mxu0
    %1453 = vdwg.mxu0
    %v1454 = vadd.f32 %v589, %v1392
    %v1455 = vadd.f32 %v592, %v1395
    %v1456 = vadd.f32 %v597, %v1400
    %v1457 = vadd.f32 %v600, %v1403
    %v1458 = vadd.f32 %v605, %v1408
    %v1459 = vadd.f32 %v608, %v1411
    %v1460 = vadd.f32 %v613, %v1416
    %v1461 = vadd.f32 %v616, %v1419
    %v1462 = vadd.f32 %v621, %v1424
    %v1463 = vadd.f32 %v624, %v1427
    %v1464 = vadd.f32 %v629, %v1432
    %v1465 = vadd.f32 %v632, %v1435
    %v1466 = vadd.f32 %v637, %v1440
    %v1467 = vadd.f32 %v640, %v1443
    %v1468 = vadd.f32 %v645, %v1448
    %v1469 = vadd.f32 %v648, %v1451
    %v1470 = vld [vmem:[#allocation6 + $0x184] sm:$0xf]
    %v1471 = vld [vmem:[#allocation6 + $0x190] sm:$0xf]
    %v1472 = vld [vmem:[#allocation6 + $0x19c] sm:$0xf]
    %v1473 = vld [vmem:[#allocation6 + $0x1a8] sm:$0xf]
    %v1474 = vld [vmem:[#allocation6 + $0x1b4] sm:$0xf]
    %v1475 = vld [vmem:[#allocation6 + $0x1c0] sm:$0xf]
    %v1476 = vld [vmem:[#allocation6 + $0x1cc] sm:$0xf]
    %v1477 = vld [vmem:[#allocation6 + $0x1d8] sm:$0xf]
    %v1478 = vld [vmem:[#allocation6 + $0x1e4] sm:$0xf]
    %v1479 = vld [vmem:[#allocation6 + $0x1f0] sm:$0xf]
    %v1480 = vld [vmem:[#allocation6 + $0x1fc] sm:$0xf]
    %v1481 = vld [vmem:[#allocation6 + $0x208] sm:$0xf]
    %v1482 = vld [vmem:[#allocation6 + $0x214] sm:$0xf]
    %v1483 = vld [vmem:[#allocation6 + $0x220] sm:$0xf]
    %v1484 = vld [vmem:[#allocation6 + $0x22c] sm:$0xf]
    %v1485 = vld [vmem:[#allocation6 + $0x238] sm:$0xf]
    %v1502 = vunpack.c.l.b16 %v1470
    %v1503 = vunpack.c.l.b16 %v1471
    %v1504 = vunpack.c.l.b16 %v1472
    %v1505 = vunpack.c.l.b16 %v1473
    %v1506 = vunpack.c.l.b16 %v1474
    %v1507 = vunpack.c.l.b16 %v1475
    %v1508 = vunpack.c.l.b16 %v1476
    %v1509 = vunpack.c.l.b16 %v1477
    %v1510 = vunpack.c.l.b16 %v1478
    %v1511 = vunpack.c.l.b16 %v1479
    %v1512 = vunpack.c.l.b16 %v1480
    %v1513 = vunpack.c.l.b16 %v1481
    %v1514 = vunpack.c.l.b16 %v1482
    %v1515 = vunpack.c.l.b16 %v1483
    %v1516 = vunpack.c.l.b16 %v1484
    %v1517 = vunpack.c.l.b16 %v1485
    %v1518 = vpack.c.b16 %v1503, %v1502
    %v1519 = vpack.c.b16 %v1505, %v1504
    %v1520 = vpack.c.b16 %v1507, %v1506
    %v1521 = vpack.c.b16 %v1509, %v1508
    %v1522 = vpack.c.b16 %v1511, %v1510
    %v1523 = vpack.c.b16 %v1513, %v1512
    %v1524 = vpack.c.b16 %v1515, %v1514
    %v1525 = vpack.c.b16 %v1517, %v1516
    %1534 = vmatprep.subr.bf16.mxu0 0
    %1535 = vmatpush1.bf16.msra.mxu0 %v1518
    %1536 = vmatprep.subr.bf16.mxu0 0
    %1537 = vmatpush1.bf16.msra.mxu0 %v1519
    %1538 = vmatprep.subr.bf16.mxu0 0
    %1539 = vmatpush1.bf16.msra.mxu0 %v1520
    %1540 = vmatprep.subr.bf16.mxu0 0
    %1541 = vmatpush1.bf16.msra.mxu0 %v1521
    %1542 = vmatprep.subr.bf16.mxu0 0
    %1543 = vmatpush1.bf16.msra.mxu0 %v1522
    %1544 = vmatprep.subr.bf16.mxu0 0
    %1545 = vmatpush1.bf16.msra.mxu0 %v1523
    %1546 = vmatprep.subr.bf16.mxu0 0
    %1547 = vmatpush1.bf16.msra.mxu0 %v1524
    %1548 = vmatprep.subr.bf16.mxu0 0
    %1549 = vmatpush1.bf16.msra.mxu0 %v1525
    %1550 = vmatprep.subr.bf16.mxu0 0
    %1551 = vmatpush1.bf16.msra.mxu0 0
    %1552 = vmatprep.subr.bf16.mxu0 0
    %1553 = vmatpush1.bf16.msra.mxu0 0
    %1554 = vmatprep.subr.bf16.mxu0 0
    %1555 = vmatpush1.bf16.msra.mxu0 0
    %1556 = vmatprep.subr.bf16.mxu0 0
    %1557 = vmatpush1.bf16.msra.mxu0 0
    %1558 = vmatprep.subr.bf16.mxu0 0
    %1559 = vmatpush1.bf16.msra.mxu0 0
    %1560 = vmatprep.subr.bf16.mxu0 0
    %1561 = vmatpush1.bf16.msra.mxu0 0
    %1562 = vmatprep.subr.bf16.mxu0 0
    %1563 = vmatpush1.bf16.msra.mxu0 0
    %1564 = vmatprep.subr.bf16.mxu0 0
    %1565 = vmatpush1.bf16.msra.mxu0 0
    %1566 = vmatprep.mubr.bf16.mxu0 0
    %1567 = vmatmul.mubr.bf16.gmra.mrb[0].mxu0 %v1286
    %v1568 = vpop.f32.mrb[0].mxu0
    %v1569 = vadd.f32 0.0, %v1568
    %v1570 = vpop.f32.mrb[0].mxu0
    %v1571 = vpop.f32.mrb[0].mxu0
    %v1572 = vadd.f32 0.0, %v1571
    %v1573 = vpop.f32.mrb[0].mxu0
    %1574 = vmatprep.mubr.bf16.mxu0 0
    %1575 = vmatmul.mubr.bf16.gmra.mrb[0].mxu0 %v1288
    %v1576 = vpop.f32.mrb[0].mxu0
    %v1577 = vadd.f32 0.0, %v1576
    %v1578 = vpop.f32.mrb[0].mxu0
    %v1579 = vpop.f32.mrb[0].mxu0
    %v1580 = vadd.f32 0.0, %v1579
    %v1581 = vpop.f32.mrb[0].mxu0
    %1582 = vmatprep.mubr.bf16.mxu0 0
    %1583 = vmatmul.mubr.bf16.gmra.mrb[0].mxu0 %v1290
    %v1584 = vpop.f32.mrb[0].mxu0
    %v1585 = vadd.f32 0.0, %v1584
    %v1586 = vpop.f32.mrb[0].mxu0
    %v1587 = vpop.f32.mrb[0].mxu0
    %v1588 = vadd.f32 0.0, %v1587
    %v1589 = vpop.f32.mrb[0].mxu0
    %1590 = vmatprep.mubr.bf16.mxu0 0
    %1591 = vmatmul.mubr.bf16.gmra.mrb[0].mxu0 %v1292
    %v1592 = vpop.f32.mrb[0].mxu0
    %v1593 = vadd.f32 0.0, %v1592
    %v1594 = vpop.f32.mrb[0].mxu0
    %v1595 = vpop.f32.mrb[0].mxu0
    %v1596 = vadd.f32 0.0, %v1595
    %v1597 = vpop.f32.mrb[0].mxu0
    %1598 = vmatprep.mubr.bf16.mxu0 0
    %1599 = vmatmul.mubr.bf16.gmra.mrb[0].mxu0 %v1294
    %v1600 = vpop.f32.mrb[0].mxu0
    %v1601 = vadd.f32 0.0, %v1600
    %v1602 = vpop.f32.mrb[0].mxu0
    %v1603 = vpop.f32.mrb[0].mxu0
    %v1604 = vadd.f32 0.0, %v1603
    %v1605 = vpop.f32.mrb[0].mxu0
    %1606 = vmatprep.mubr.bf16.mxu0 0
    %1607 = vmatmul.mubr.bf16.gmra.mrb[0].mxu0 %v1296
    %v1608 = vpop.f32.mrb[0].mxu0
    %v1609 = vadd.f32 0.0, %v1608
    %v1610 = vpop.f32.mrb[0].mxu0
    %v1611 = vpop.f32.mrb[0].mxu0
    %v1612 = vadd.f32 0.0, %v1611
    %v1613 = vpop.f32.mrb[0].mxu0
    %1614 = vmatprep.mubr.bf16.mxu0 0
    %1615 = vmatmul.mubr.bf16.gmra.mrb[0].mxu0 %v1298
    %v1616 = vpop.f32.mrb[0].mxu0
    %v1617 = vadd.f32 0.0, %v1616
    %v1618 = vpop.f32.mrb[0].mxu0
    %v1619 = vpop.f32.mrb[0].mxu0
    %v1620 = vadd.f32 0.0, %v1619
    %v1621 = vpop.f32.mrb[0].mxu0
    %1622 = vmatprep.mubr.bf16.mxu0 0
    %1623 = vmatmul.mubr.bf16.gmra.mrb[0].mxu0 %v1300
    %v1624 = vpop.f32.mrb[0].mxu0
    %v1625 = vadd.f32 0.0, %v1624
    %v1626 = vpop.f32.mrb[0].mxu0
    %v1627 = vpop.f32.mrb[0].mxu0
    %v1628 = vadd.f32 0.0, %v1627
    %v1629 = vpop.f32.mrb[0].mxu0
    %1630 = vdwg.mxu0
    %v1631 = vadd.f32 %v895, %v1569
    %v1632 = vadd.f32 %v898, %v1572
    %v1633 = vadd.f32 %v903, %v1577
    %v1634 = vadd.f32 %v906, %v1580
    %v1635 = vadd.f32 %v911, %v1585
    %v1636 = vadd.f32 %v914, %v1588
    %v1637 = vadd.f32 %v919, %v1593
    %v1638 = vadd.f32 %v922, %v1596
    %v1639 = vadd.f32 %v927, %v1601
    %v1640 = vadd.f32 %v930, %v1604
    %v1641 = vadd.f32 %v935, %v1609
    %v1642 = vadd.f32 %v938, %v1612
    %v1643 = vadd.f32 %v943, %v1617
    %v1644 = vadd.f32 %v946, %v1620
    %v1645 = vadd.f32 %v951, %v1625
    %v1646 = vadd.f32 %v954, %v1628
    %v1647 = vld [vmem:[#allocation6 + $0x188] sm:$0xf]
    %v1648 = vld [vmem:[#allocation6 + $0x194] sm:$0xf]
    %v1649 = vld [vmem:[#allocation6 + $0x1a0] sm:$0xf]
    %v1650 = vld [vmem:[#allocation6 + $0x1ac] sm:$0xf]
    %v1651 = vld [vmem:[#allocation6 + $0x1b8] sm:$0xf]
    %v1652 = vld [vmem:[#allocation6 + $0x1c4] sm:$0xf]
    %v1653 = vld [vmem:[#allocation6 + $0x1d0] sm:$0xf]
    %v1654 = vld [vmem:[#allocation6 + $0x1dc] sm:$0xf]
    %v1655 = vld [vmem:[#allocation6 + $0x1e8] sm:$0xf]
    %v1656 = vld [vmem:[#allocation6 + $0x1f4] sm:$0xf]
    %v1657 = vld [vmem:[#allocation6 + $0x200] sm:$0xf]
    %v1658 = vld [vmem:[#allocation6 + $0x20c] sm:$0xf]
    %v1659 = vld [vmem:[#allocation6 + $0x218] sm:$0xf]
    %v1660 = vld [vmem:[#allocation6 + $0x224] sm:$0xf]
    %v1661 = vld [vmem:[#allocation6 + $0x230] sm:$0xf]
    %v1662 = vld [vmem:[#allocation6 + $0x23c] sm:$0xf]
    %v1679 = vunpack.c.l.b16 %v1647
    %v1680 = vunpack.c.l.b16 %v1648
    %v1681 = vunpack.c.l.b16 %v1649
    %v1682 = vunpack.c.l.b16 %v1650
    %v1683 = vunpack.c.l.b16 %v1651
    %v1684 = vunpack.c.l.b16 %v1652
    %v1685 = vunpack.c.l.b16 %v1653
    %v1686 = vunpack.c.l.b16 %v1654
    %v1687 = vunpack.c.l.b16 %v1655
    %v1688 = vunpack.c.l.b16 %v1656
    %v1689 = vunpack.c.l.b16 %v1657
    %v1690 = vunpack.c.l.b16 %v1658
    %v1691 = vunpack.c.l.b16 %v1659
    %v1692 = vunpack.c.l.b16 %v1660
    %v1693 = vunpack.c.l.b16 %v1661
    %v1694 = vunpack.c.l.b16 %v1662
    %v1695 = vpack.c.b16 %v1680, %v1679
    %v1696 = vpack.c.b16 %v1682, %v1681
    %v1697 = vpack.c.b16 %v1684, %v1683
    %v1698 = vpack.c.b16 %v1686, %v1685
    %v1699 = vpack.c.b16 %v1688, %v1687
    %v1700 = vpack.c.b16 %v1690, %v1689
    %v1701 = vpack.c.b16 %v1692, %v1691
    %v1702 = vpack.c.b16 %v1694, %v1693
    %1711 = vmatprep.subr.bf16.mxu0 0
    %1712 = vmatpush1.bf16.msra.mxu0 %v1695
    %1713 = vmatprep.subr.bf16.mxu0 0
    %1714 = vmatpush1.bf16.msra.mxu0 %v1696
    %1715 = vmatprep.subr.bf16.mxu0 0
    %1716 = vmatpush1.bf16.msra.mxu0 %v1697
    %1717 = vmatprep.subr.bf16.mxu0 0
    %1718 = vmatpush1.bf16.msra.mxu0 %v1698
    %1719 = vmatprep.subr.bf16.mxu0 0
    %1720 = vmatpush1.bf16.msra.mxu0 %v1699
    %1721 = vmatprep.subr.bf16.mxu0 0
    %1722 = vmatpush1.bf16.msra.mxu0 %v1700
    %1723 = vmatprep.subr.bf16.mxu0 0
    %1724 = vmatpush1.bf16.msra.mxu0 %v1701
    %1725 = vmatprep.subr.bf16.mxu0 0
    %1726 = vmatpush1.bf16.msra.mxu0 %v1702
    %1727 = vmatprep.subr.bf16.mxu0 0
    %1728 = vmatpush1.bf16.msra.mxu0 0
    %1729 = vmatprep.subr.bf16.mxu0 0
    %1730 = vmatpush1.bf16.msra.mxu0 0
    %1731 = vmatprep.subr.bf16.mxu0 0
    %1732 = vmatpush1.bf16.msra.mxu0 0
    %1733 = vmatprep.subr.bf16.mxu0 0
    %1734 = vmatpush1.bf16.msra.mxu0 0
    %1735 = vmatprep.subr.bf16.mxu0 0
    %1736 = vmatpush1.bf16.msra.mxu0 0
    %1737 = vmatprep.subr.bf16.mxu0 0
    %1738 = vmatpush1.bf16.msra.mxu0 0
    %1739 = vmatprep.subr.bf16.mxu0 0
    %1740 = vmatpush1.bf16.msra.mxu0 0
    %1741 = vmatprep.subr.bf16.mxu0 0
    %1742 = vmatpush1.bf16.msra.mxu0 0
    %1743 = vmatprep.mubr.bf16.mxu0 0
    %1744 = vmatmul.mubr.bf16.gmra.mrb[0].mxu0 %v1286
    %v1745 = vpop.f32.mrb[0].mxu0
    %v1746 = vadd.f32 0.0, %v1745
    %v1747 = vpop.f32.mrb[0].mxu0
    %v1748 = vpop.f32.mrb[0].mxu0
    %v1749 = vadd.f32 0.0, %v1748
    %v1750 = vpop.f32.mrb[0].mxu0
    %1751 = vmatprep.mubr.bf16.mxu0 0
    %1752 = vmatmul.mubr.bf16.gmra.mrb[0].mxu0 %v1288
    %v1753 = vpop.f32.mrb[0].mxu0
    %v1754 = vadd.f32 0.0, %v1753
    %v1755 = vpop.f32.mrb[0].mxu0
    %v1756 = vpop.f32.mrb[0].mxu0
    %v1757 = vadd.f32 0.0, %v1756
    %v1758 = vpop.f32.mrb[0].mxu0
    %1759 = vmatprep.mubr.bf16.mxu0 0
    %1760 = vmatmul.mubr.bf16.gmra.mrb[0].mxu0 %v1290
    %v1761 = vpop.f32.mrb[0].mxu0
    %v1762 = vadd.f32 0.0, %v1761
    %v1763 = vpop.f32.mrb[0].mxu0
    %v1764 = vpop.f32.mrb[0].mxu0
    %v1765 = vadd.f32 0.0, %v1764
    %v1766 = vpop.f32.mrb[0].mxu0
    %1767 = vmatprep.mubr.bf16.mxu0 0
    %1768 = vmatmul.mubr.bf16.gmra.mrb[0].mxu0 %v1292
    %v1769 = vpop.f32.mrb[0].mxu0
    %v1770 = vadd.f32 0.0, %v1769
    %v1771 = vpop.f32.mrb[0].mxu0
    %v1772 = vpop.f32.mrb[0].mxu0
    %v1773 = vadd.f32 0.0, %v1772
    %v1774 = vpop.f32.mrb[0].mxu0
    %1775 = vmatprep.mubr.bf16.mxu0 0
    %1776 = vmatmul.mubr.bf16.gmra.mrb[0].mxu0 %v1294
    %v1777 = vpop.f32.mrb[0].mxu0
    %v1778 = vadd.f32 0.0, %v1777
    %v1779 = vpop.f32.mrb[0].mxu0
    %v1780 = vpop.f32.mrb[0].mxu0
    %v1781 = vadd.f32 0.0, %v1780
    %v1782 = vpop.f32.mrb[0].mxu0
    %1783 = vmatprep.mubr.bf16.mxu0 0
    %1784 = vmatmul.mubr.bf16.gmra.mrb[0].mxu0 %v1296
    %v1785 = vpop.f32.mrb[0].mxu0
    %v1786 = vadd.f32 0.0, %v1785
    %v1787 = vpop.f32.mrb[0].mxu0
    %v1788 = vpop.f32.mrb[0].mxu0
    %v1789 = vadd.f32 0.0, %v1788
    %v1790 = vpop.f32.mrb[0].mxu0
    %1791 = vmatprep.mubr.bf16.mxu0 0
    %1792 = vmatmul.mubr.bf16.gmra.mrb[0].mxu0 %v1298
    %v1793 = vpop.f32.mrb[0].mxu0
    %v1794 = vadd.f32 0.0, %v1793
    %v1795 = vpop.f32.mrb[0].mxu0
    %v1796 = vpop.f32.mrb[0].mxu0
    %v1797 = vadd.f32 0.0, %v1796
    %v1798 = vpop.f32.mrb[0].mxu0
    %1799 = vmatprep.mubr.bf16.mxu0 0
    %1800 = vmatmul.mubr.bf16.gmra.mrb[0].mxu0 %v1300
    %v1801 = vpop.f32.mrb[0].mxu0
    %v1802 = vadd.f32 0.0, %v1801
    %v1803 = vpop.f32.mrb[0].mxu0
    %v1804 = vpop.f32.mrb[0].mxu0
    %v1805 = vadd.f32 0.0, %v1804
    %v1806 = vpop.f32.mrb[0].mxu0
    %1807 = vdwg.mxu0
    %v1808 = vadd.f32 %v1201, %v1746
    %v1809 = vadd.f32 %v1204, %v1749
    %v1810 = vadd.f32 %v1209, %v1754
    %v1811 = vadd.f32 %v1212, %v1757
    %v1812 = vadd.f32 %v1217, %v1762
    %v1813 = vadd.f32 %v1220, %v1765
    %v1814 = vadd.f32 %v1225, %v1770
    %v1815 = vadd.f32 %v1228, %v1773
    %v1816 = vadd.f32 %v1233, %v1778
    %v1817 = vadd.f32 %v1236, %v1781
    %v1818 = vadd.f32 %v1241, %v1786
    %v1819 = vadd.f32 %v1244, %v1789
    %v1820 = vadd.f32 %v1249, %v1794
    %v1821 = vadd.f32 %v1252, %v1797
    %v1822 = vadd.f32 %v1257, %v1802
    %v1823 = vadd.f32 %v1260, %v1805
    %v1824 = vld [vmem:[#allocation2 + $0x40] sm:$0x3]
    %v1825 = vld [vmem:[#allocation6 + $0x244] sm:$0xf]
    %v1826 = vld [vmem:[#allocation6 + $0x250] sm:$0xf]
    %v1827 = vld [vmem:[#allocation6 + $0x25c] sm:$0xf]
    %v1828 = vld [vmem:[#allocation6 + $0x268] sm:$0xf]
    %v1829 = vld [vmem:[#allocation6 + $0x274] sm:$0xf]
    %v1830 = vld [vmem:[#allocation6 + $0x280] sm:$0xf]
    %v1831 = vld [vmem:[#allocation6 + $0x28c] sm:$0xf]
    %v1832 = vld [vmem:[#allocation6 + $0x298] sm:$0xf]
    %v1833 = vld [vmem:[#allocation6 + $0x2a4] sm:$0xf]
    %v1834 = vld [vmem:[#allocation6 + $0x2b0] sm:$0xf]
    %v1835 = vld [vmem:[#allocation6 + $0x2bc] sm:$0xf]
    %v1836 = vld [vmem:[#allocation6 + $0x2c8] sm:$0xf]
    %v1837 = vld [vmem:[#allocation6 + $0x2d4] sm:$0xf]
    %v1838 = vld [vmem:[#allocation6 + $0x2e0] sm:$0xf]
    %v1839 = vld [vmem:[#allocation6 + $0x2ec] sm:$0xf]
    %v1840 = vld [vmem:[#allocation6 + $0x2f8] sm:$0xf]
    %v1842 = vunpack.c.l.b16 %v1824
    %v1843 = vpack.c.b16 %v1842, %v1842
    %vm1844 = vsmask.f32 6400
    %v1846 = vshrl.u32 %v1282, 16
    %v1848 = vrot.slane %v1846, 1
    %v1849 = vshll.u32 %v1282, 16
    %v1851 = vrot.slane %v1849, 2
    %v1852 = vor.u32 %v1848, %v1851
    %v1853 = vrot.slane %v249, 1
    %v1854 = vrot.slane %v245, 2
    %v1855 = vor.u32 %v1853, %v1854
    %v1856 = vsel %vm1844, %v1852, %v1855
    %v1857 = vrot.slane %v257, 1
    %v1858 = vrot.slane %v253, 2
    %v1859 = vor.u32 %v1857, %v1858
    %v1860 = vsel %vm1844, %v1855, %v1859
    %v1861 = vrot.slane %v265, 1
    %v1862 = vrot.slane %v261, 2
    %v1863 = vor.u32 %v1861, %v1862
    %v1864 = vsel %vm1844, %v1859, %v1863
    %v1865 = vrot.slane %v273, 1
    %v1866 = vrot.slane %v269, 2
    %v1867 = vor.u32 %v1865, %v1866
    %v1868 = vsel %vm1844, %v1863, %v1867
    %v1869 = vrot.slane %v281, 1
    %v1870 = vrot.slane %v277, 2
    %v1871 = vor.u32 %v1869, %v1870
    %v1872 = vsel %vm1844, %v1867, %v1871
    %v1873 = vrot.slane %v289, 1
    %v1874 = vrot.slane %v285, 2
    %v1875 = vor.u32 %v1873, %v1874
    %v1876 = vsel %vm1844, %v1871, %v1875
    %v1877 = vrot.slane %v297, 1
    %v1878 = vrot.slane %v293, 2
    %v1879 = vor.u32 %v1877, %v1878
    %v1880 = vsel %vm1844, %v1875, %v1879
    %v1882 = vshrl.u32 %v1843, 16
    %v1884 = vrot.slane %v1882, 1
    %v1885 = vshll.u32 %v1843, 16
    %v1887 = vrot.slane %v1885, 2
    %v1888 = vor.u32 %v1884, %v1887
    %v1889 = vsel %vm1844, %v1879, %v1888
    %v1914 = vunpack.c.l.b16 %v1825
    %v1915 = vunpack.c.l.b16 %v1826
    %v1916 = vunpack.c.l.b16 %v1827
    %v1917 = vunpack.c.l.b16 %v1828
    %v1918 = vunpack.c.l.b16 %v1829
    %v1919 = vunpack.c.l.b16 %v1830
    %v1920 = vunpack.c.l.b16 %v1831
    %v1921 = vunpack.c.l.b16 %v1832
    %v1922 = vunpack.c.l.b16 %v1833
    %v1923 = vunpack.c.l.b16 %v1834
    %v1924 = vunpack.c.l.b16 %v1835
    %v1925 = vunpack.c.l.b16 %v1836
    %v1926 = vunpack.c.l.b16 %v1837
    %v1927 = vunpack.c.l.b16 %v1838
    %v1928 = vunpack.c.l.b16 %v1839
    %v1929 = vunpack.c.l.b16 %v1840
    %v1930 = vpack.c.b16 %v1915, %v1914
    %v1931 = vpack.c.b16 %v1917, %v1916
    %v1932 = vpack.c.b16 %v1919, %v1918
    %v1933 = vpack.c.b16 %v1921, %v1920
    %v1934 = vpack.c.b16 %v1923, %v1922
    %v1935 = vpack.c.b16 %v1925, %v1924
    %v1936 = vpack.c.b16 %v1927, %v1926
    %v1937 = vpack.c.b16 %v1929, %v1928
    %1946 = vmatprep.subr.bf16.mxu0 0
    %1947 = vmatpush1.bf16.msra.mxu0 %v1930
    %1948 = vmatprep.subr.bf16.mxu0 0
    %1949 = vmatpush1.bf16.msra.mxu0 %v1931
    %1950 = vmatprep.subr.bf16.mxu0 0
    %1951 = vmatpush1.bf16.msra.mxu0 %v1932
    %1952 = vmatprep.subr.bf16.mxu0 0
    %1953 = vmatpush1.bf16.msra.mxu0 %v1933
    %1954 = vmatprep.subr.bf16.mxu0 0
    %1955 = vmatpush1.bf16.msra.mxu0 %v1934
    %1956 = vmatprep.subr.bf16.mxu0 0
    %1957 = vmatpush1.bf16.msra.mxu0 %v1935
    %1958 = vmatprep.subr.bf16.mxu0 0
    %1959 = vmatpush1.bf16.msra.mxu0 %v1936
    %1960 = vmatprep.subr.bf16.mxu0 0
    %1961 = vmatpush1.bf16.msra.mxu0 %v1937
    %1962 = vmatprep.subr.bf16.mxu0 0
    %1963 = vmatpush1.bf16.msra.mxu0 0
    %1964 = vmatprep.subr.bf16.mxu0 0
    %1965 = vmatpush1.bf16.msra.mxu0 0
    %1966 = vmatprep.subr.bf16.mxu0 0
    %1967 = vmatpush1.bf16.msra.mxu0 0
    %1968 = vmatprep.subr.bf16.mxu0 0
    %1969 = vmatpush1.bf16.msra.mxu0 0
    %1970 = vmatprep.subr.bf16.mxu0 0
    %1971 = vmatpush1.bf16.msra.mxu0 0
    %1972 = vmatprep.subr.bf16.mxu0 0
    %1973 = vmatpush1.bf16.msra.mxu0 0
    %1974 = vmatprep.subr.bf16.mxu0 0
    %1975 = vmatpush1.bf16.msra.mxu0 0
    %1976 = vmatprep.subr.bf16.mxu0 0
    %1977 = vmatpush1.bf16.msra.mxu0 0
    %1978 = vmatprep.mubr.bf16.mxu0 0
    %1979 = vmatmul.mubr.bf16.gmra.mrb[0].mxu0 %v1856
    %v1980 = vpop.f32.mrb[0].mxu0
    %v1981 = vadd.f32 0.0, %v1980
    %v1982 = vpop.f32.mrb[0].mxu0
    %v1983 = vpop.f32.mrb[0].mxu0
    %v1984 = vadd.f32 0.0, %v1983
    %v1985 = vpop.f32.mrb[0].mxu0
    %1986 = vmatprep.mubr.bf16.mxu0 0
    %1987 = vmatmul.mubr.bf16.gmra.mrb[0].mxu0 %v1860
    %v1988 = vpop.f32.mrb[0].mxu0
    %v1989 = vadd.f32 0.0, %v1988
    %v1990 = vpop.f32.mrb[0].mxu0
    %v1991 = vpop.f32.mrb[0].mxu0
    %v1992 = vadd.f32 0.0, %v1991
    %v1993 = vpop.f32.mrb[0].mxu0
    %1994 = vmatprep.mubr.bf16.mxu0 0
    %1995 = vmatmul.mubr.bf16.gmra.mrb[0].mxu0 %v1864
    %v1996 = vpop.f32.mrb[0].mxu0
    %v1997 = vadd.f32 0.0, %v1996
    %v1998 = vpop.f32.mrb[0].mxu0
    %v1999 = vpop.f32.mrb[0].mxu0
    %v2000 = vadd.f32 0.0, %v1999
    %v2001 = vpop.f32.mrb[0].mxu0
    %2002 = vmatprep.mubr.bf16.mxu0 0
    %2003 = vmatmul.mubr.bf16.gmra.mrb[0].mxu0 %v1868
    %v2004 = vpop.f32.mrb[0].mxu0
    %v2005 = vadd.f32 0.0, %v2004
    %v2006 = vpop.f32.mrb[0].mxu0
    %v2007 = vpop.f32.mrb[0].mxu0
    %v2008 = vadd.f32 0.0, %v2007
    %v2009 = vpop.f32.mrb[0].mxu0
    %2010 = vmatprep.mubr.bf16.mxu0 0
    %2011 = vmatmul.mubr.bf16.gmra.mrb[0].mxu0 %v1872
    %v2012 = vpop.f32.mrb[0].mxu0
    %v2013 = vadd.f32 0.0, %v2012
    %v2014 = vpop.f32.mrb[0].mxu0
    %v2015 = vpop.f32.mrb[0].mxu0
    %v2016 = vadd.f32 0.0, %v2015
    %v2017 = vpop.f32.mrb[0].mxu0
    %2018 = vmatprep.mubr.bf16.mxu0 0
    %2019 = vmatmul.mubr.bf16.gmra.mrb[0].mxu0 %v1876
    %v2020 = vpop.f32.mrb[0].mxu0
    %v2021 = vadd.f32 0.0, %v2020
    %v2022 = vpop.f32.mrb[0].mxu0
    %v2023 = vpop.f32.mrb[0].mxu0
    %v2024 = vadd.f32 0.0, %v2023
    %v2025 = vpop.f32.mrb[0].mxu0
    %2026 = vmatprep.mubr.bf16.mxu0 0
    %2027 = vmatmul.mubr.bf16.gmra.mrb[0].mxu0 %v1880
    %v2028 = vpop.f32.mrb[0].mxu0
    %v2029 = vadd.f32 0.0, %v2028
    %v2030 = vpop.f32.mrb[0].mxu0
    %v2031 = vpop.f32.mrb[0].mxu0
    %v2032 = vadd.f32 0.0, %v2031
    %v2033 = vpop.f32.mrb[0].mxu0
    %2034 = vmatprep.mubr.bf16.mxu0 0
    %2035 = vmatmul.mubr.bf16.gmra.mrb[0].mxu0 %v1889
    %v2036 = vpop.f32.mrb[0].mxu0
    %v2037 = vadd.f32 0.0, %v2036
    %v2038 = vpop.f32.mrb[0].mxu0
    %v2039 = vpop.f32.mrb[0].mxu0
    %v2040 = vadd.f32 0.0, %v2039
    %v2041 = vpop.f32.mrb[0].mxu0
    %2042 = vdwg.mxu0
    %v2043 = vadd.f32 %v1631, %v1981
    %v2044 = vadd.f32 %v1632, %v1984
    %v2045 = vadd.f32 %v1633, %v1989
    %v2046 = vadd.f32 %v1634, %v1992
    %v2047 = vadd.f32 %v1635, %v1997
    %v2048 = vadd.f32 %v1636, %v2000
    %v2049 = vadd.f32 %v1637, %v2005
    %v2050 = vadd.f32 %v1638, %v2008
    %v2051 = vadd.f32 %v1639, %v2013
    %v2052 = vadd.f32 %v1640, %v2016
    %v2053 = vadd.f32 %v1641, %v2021
    %v2054 = vadd.f32 %v1642, %v2024
    %v2055 = vadd.f32 %v1643, %v2029
    %v2056 = vadd.f32 %v1644, %v2032
    %v2057 = vadd.f32 %v1645, %v2037
    %v2058 = vadd.f32 %v1646, %v2040
    %v2059 = vld [vmem:[#allocation6 + $0x248] sm:$0xf]
    %v2060 = vld [vmem:[#allocation6 + $0x254] sm:$0xf]
    %v2061 = vld [vmem:[#allocation6 + $0x260] sm:$0xf]
    %v2062 = vld [vmem:[#allocation6 + $0x26c] sm:$0xf]
    %v2063 = vld [vmem:[#allocation6 + $0x278] sm:$0xf]
    %v2064 = vld [vmem:[#allocation6 + $0x284] sm:$0xf]
    %v2065 = vld [vmem:[#allocation6 + $0x290] sm:$0xf]
    %v2066 = vld [vmem:[#allocation6 + $0x29c] sm:$0xf]
    %v2067 = vld [vmem:[#allocation6 + $0x2a8] sm:$0xf]
    %v2068 = vld [vmem:[#allocation6 + $0x2b4] sm:$0xf]
    %v2069 = vld [vmem:[#allocation6 + $0x2c0] sm:$0xf]
    %v2070 = vld [vmem:[#allocation6 + $0x2cc] sm:$0xf]
    %v2071 = vld [vmem:[#allocation6 + $0x2d8] sm:$0xf]
    %v2072 = vld [vmem:[#allocation6 + $0x2e4] sm:$0xf]
    %v2073 = vld [vmem:[#allocation6 + $0x2f0] sm:$0xf]
    %v2074 = vld [vmem:[#allocation6 + $0x2fc] sm:$0xf]
    %v2091 = vunpack.c.l.b16 %v2059
    %v2092 = vunpack.c.l.b16 %v2060
    %v2093 = vunpack.c.l.b16 %v2061
    %v2094 = vunpack.c.l.b16 %v2062
    %v2095 = vunpack.c.l.b16 %v2063
    %v2096 = vunpack.c.l.b16 %v2064
    %v2097 = vunpack.c.l.b16 %v2065
    %v2098 = vunpack.c.l.b16 %v2066
    %v2099 = vunpack.c.l.b16 %v2067
    %v2100 = vunpack.c.l.b16 %v2068
    %v2101 = vunpack.c.l.b16 %v2069
    %v2102 = vunpack.c.l.b16 %v2070
    %v2103 = vunpack.c.l.b16 %v2071
    %v2104 = vunpack.c.l.b16 %v2072
    %v2105 = vunpack.c.l.b16 %v2073
    %v2106 = vunpack.c.l.b16 %v2074
    %v2107 = vpack.c.b16 %v2092, %v2091
    %v2108 = vpack.c.b16 %v2094, %v2093
    %v2109 = vpack.c.b16 %v2096, %v2095
    %v2110 = vpack.c.b16 %v2098, %v2097
    %v2111 = vpack.c.b16 %v2100, %v2099
    %v2112 = vpack.c.b16 %v2102, %v2101
    %v2113 = vpack.c.b16 %v2104, %v2103
    %v2114 = vpack.c.b16 %v2106, %v2105
    %2123 = vmatprep.subr.bf16.mxu0 0
    %2124 = vmatpush1.bf16.msra.mxu0 %v2107
    %2125 = vmatprep.subr.bf16.mxu0 0
    %2126 = vmatpush1.bf16.msra.mxu0 %v2108
    %2127 = vmatprep.subr.bf16.mxu0 0
    %2128 = vmatpush1.bf16.msra.mxu0 %v2109
    %2129 = vmatprep.subr.bf16.mxu0 0
    %2130 = vmatpush1.bf16.msra.mxu0 %v2110
    %2131 = vmatprep.subr.bf16.mxu0 0
    %2132 = vmatpush1.bf16.msra.mxu0 %v2111
    %2133 = vmatprep.subr.bf16.mxu0 0
    %2134 = vmatpush1.bf16.msra.mxu0 %v2112
    %2135 = vmatprep.subr.bf16.mxu0 0
    %2136 = vmatpush1.bf16.msra.mxu0 %v2113
    %2137 = vmatprep.subr.bf16.mxu0 0
    %2138 = vmatpush1.bf16.msra.mxu0 %v2114
    %2139 = vmatprep.subr.bf16.mxu0 0
    %2140 = vmatpush1.bf16.msra.mxu0 0
    %2141 = vmatprep.subr.bf16.mxu0 0
    %2142 = vmatpush1.bf16.msra.mxu0 0
    %2143 = vmatprep.subr.bf16.mxu0 0
    %2144 = vmatpush1.bf16.msra.mxu0 0
    %2145 = vmatprep.subr.bf16.mxu0 0
    %2146 = vmatpush1.bf16.msra.mxu0 0
    %2147 = vmatprep.subr.bf16.mxu0 0
    %2148 = vmatpush1.bf16.msra.mxu0 0
    %2149 = vmatprep.subr.bf16.mxu0 0
    %2150 = vmatpush1.bf16.msra.mxu0 0
    %2151 = vmatprep.subr.bf16.mxu0 0
    %2152 = vmatpush1.bf16.msra.mxu0 0
    %2153 = vmatprep.subr.bf16.mxu0 0
    %2154 = vmatpush1.bf16.msra.mxu0 0
    %2155 = vmatprep.mubr.bf16.mxu0 0
    %2156 = vmatmul.mubr.bf16.gmra.mrb[0].mxu0 %v1856
    %v2157 = vpop.f32.mrb[0].mxu0
    %v2158 = vadd.f32 0.0, %v2157
    %v2159 = vpop.f32.mrb[0].mxu0
    %v2160 = vpop.f32.mrb[0].mxu0
    %v2161 = vadd.f32 0.0, %v2160
    %v2162 = vpop.f32.mrb[0].mxu0
    %2163 = vmatprep.mubr.bf16.mxu0 0
    %2164 = vmatmul.mubr.bf16.gmra.mrb[0].mxu0 %v1860
    %v2165 = vpop.f32.mrb[0].mxu0
    %v2166 = vadd.f32 0.0, %v2165
    %v2167 = vpop.f32.mrb[0].mxu0
    %v2168 = vpop.f32.mrb[0].mxu0
    %v2169 = vadd.f32 0.0, %v2168
    %v2170 = vpop.f32.mrb[0].mxu0
    %2171 = vmatprep.mubr.bf16.mxu0 0
    %2172 = vmatmul.mubr.bf16.gmra.mrb[0].mxu0 %v1864
    %v2173 = vpop.f32.mrb[0].mxu0
    %v2174 = vadd.f32 0.0, %v2173
    %v2175 = vpop.f32.mrb[0].mxu0
    %v2176 = vpop.f32.mrb[0].mxu0
    %v2177 = vadd.f32 0.0, %v2176
    %v2178 = vpop.f32.mrb[0].mxu0
    %2179 = vmatprep.mubr.bf16.mxu0 0
    %2180 = vmatmul.mubr.bf16.gmra.mrb[0].mxu0 %v1868
    %v2181 = vpop.f32.mrb[0].mxu0
    %v2182 = vadd.f32 0.0, %v2181
    %v2183 = vpop.f32.mrb[0].mxu0
    %v2184 = vpop.f32.mrb[0].mxu0
    %v2185 = vadd.f32 0.0, %v2184
    %v2186 = vpop.f32.mrb[0].mxu0
    %2187 = vmatprep.mubr.bf16.mxu0 0
    %2188 = vmatmul.mubr.bf16.gmra.mrb[0].mxu0 %v1872
    %v2189 = vpop.f32.mrb[0].mxu0
    %v2190 = vadd.f32 0.0, %v2189
    %v2191 = vpop.f32.mrb[0].mxu0
    %v2192 = vpop.f32.mrb[0].mxu0
    %v2193 = vadd.f32 0.0, %v2192
    %v2194 = vpop.f32.mrb[0].mxu0
    %2195 = vmatprep.mubr.bf16.mxu0 0
    %2196 = vmatmul.mubr.bf16.gmra.mrb[0].mxu0 %v1876
    %v2197 = vpop.f32.mrb[0].mxu0
    %v2198 = vadd.f32 0.0, %v2197
    %v2199 = vpop.f32.mrb[0].mxu0
    %v2200 = vpop.f32.mrb[0].mxu0
    %v2201 = vadd.f32 0.0, %v2200
    %v2202 = vpop.f32.mrb[0].mxu0
    %2203 = vmatprep.mubr.bf16.mxu0 0
    %2204 = vmatmul.mubr.bf16.gmra.mrb[0].mxu0 %v1880
    %v2205 = vpop.f32.mrb[0].mxu0
    %v2206 = vadd.f32 0.0, %v2205
    %v2207 = vpop.f32.mrb[0].mxu0
    %v2208 = vpop.f32.mrb[0].mxu0
    %v2209 = vadd.f32 0.0, %v2208
    %v2210 = vpop.f32.mrb[0].mxu0
    %2211 = vmatprep.mubr.bf16.mxu0 0
    %2212 = vmatmul.mubr.bf16.gmra.mrb[0].mxu0 %v1889
    %v2213 = vpop.f32.mrb[0].mxu0
    %v2214 = vadd.f32 0.0, %v2213
    %v2215 = vpop.f32.mrb[0].mxu0
    %v2216 = vpop.f32.mrb[0].mxu0
    %v2217 = vadd.f32 0.0, %v2216
    %v2218 = vpop.f32.mrb[0].mxu0
    %2219 = vdwg.mxu0
    %v2220 = vadd.f32 %v1808, %v2158
    %v2221 = vadd.f32 %v1809, %v2161
    %v2222 = vadd.f32 %v1810, %v2166
    %v2223 = vadd.f32 %v1811, %v2169
    %v2224 = vadd.f32 %v1812, %v2174
    %v2225 = vadd.f32 %v1813, %v2177
    %v2226 = vadd.f32 %v1814, %v2182
    %v2227 = vadd.f32 %v1815, %v2185
    %v2228 = vadd.f32 %v1816, %v2190
    %v2229 = vadd.f32 %v1817, %v2193
    %v2230 = vadd.f32 %v1818, %v2198
    %v2231 = vadd.f32 %v1819, %v2201
    %v2232 = vadd.f32 %v1820, %v2206
    %v2233 = vadd.f32 %v1821, %v2209
    %v2234 = vadd.f32 %v1822, %v2214
    %v2235 = vadd.f32 %v1823, %v2217
    %v2236 = vld [vmem:[#allocation2] sm:$0xc]
    %v2237 = vld [vmem:[#allocation6 + $0x308] sm:$0xf]
    %v2238 = vld [vmem:[#allocation6 + $0x314] sm:$0xf]
    %v2239 = vld [vmem:[#allocation6 + $0x320] sm:$0xf]
    %v2240 = vld [vmem:[#allocation6 + $0x32c] sm:$0xf]
    %v2241 = vld [vmem:[#allocation6 + $0x338] sm:$0xf]
    %v2242 = vld [vmem:[#allocation6 + $0x344] sm:$0xf]
    %v2243 = vld [vmem:[#allocation6 + $0x350] sm:$0xf]
    %v2244 = vld [vmem:[#allocation6 + $0x35c] sm:$0xf]
    %v2245 = vld [vmem:[#allocation6 + $0x368] sm:$0xf]
    %v2246 = vld [vmem:[#allocation6 + $0x374] sm:$0xf]
    %v2247 = vld [vmem:[#allocation6 + $0x380] sm:$0xf]
    %v2248 = vld [vmem:[#allocation6 + $0x38c] sm:$0xf]
    %v2249 = vld [vmem:[#allocation6 + $0x398] sm:$0xf]
    %v2250 = vld [vmem:[#allocation6 + $0x3a4] sm:$0xf]
    %v2251 = vld [vmem:[#allocation6 + $0x3b0] sm:$0xf]
    %v2252 = vld [vmem:[#allocation6 + $0x3bc] sm:$0xf]
    %v2254 = vunpack.c.l.b16 %v2236
    %v2255 = vpack.c.b16 %v211, %v2254
    %vm2256 = vcmask 1045504
    %v2257 = vrot.slane %v2255, 2
    %v2258 = vrot.slane %v228, 2
    %v2259 = vsel %vm2256, %v2257, %v2258
    %v2260 = vrot.slane %v229, 2
    %v2261 = vsel %vm2256, %v2258, %v2260
    %v2262 = vrot.slane %v230, 2
    %v2263 = vsel %vm2256, %v2260, %v2262
    %v2264 = vrot.slane %v231, 2
    %v2265 = vsel %vm2256, %v2262, %v2264
    %v2266 = vrot.slane %v232, 2
    %v2267 = vsel %vm2256, %v2264, %v2266
    %v2268 = vrot.slane %v233, 2
    %v2269 = vsel %vm2256, %v2266, %v2268
    %v2270 = vrot.slane %v234, 2
    %v2271 = vsel %vm2256, %v2268, %v2270
    %v2272 = vrot.slane %v1843, 2
    %v2273 = vsel %vm2256, %v2270, %v2272
    %v2298 = vunpack.c.l.b16 %v2237
    %v2299 = vunpack.c.l.b16 %v2238
    %v2300 = vunpack.c.l.b16 %v2239
    %v2301 = vunpack.c.l.b16 %v2240
    %v2302 = vunpack.c.l.b16 %v2241
    %v2303 = vunpack.c.l.b16 %v2242
    %v2304 = vunpack.c.l.b16 %v2243
    %v2305 = vunpack.c.l.b16 %v2244
    %v2306 = vunpack.c.l.b16 %v2245
    %v2307 = vunpack.c.l.b16 %v2246
    %v2308 = vunpack.c.l.b16 %v2247
    %v2309 = vunpack.c.l.b16 %v2248
    %v2310 = vunpack.c.l.b16 %v2249
    %v2311 = vunpack.c.l.b16 %v2250
    %v2312 = vunpack.c.l.b16 %v2251
    %v2313 = vunpack.c.l.b16 %v2252
    %v2314 = vpack.c.b16 %v2299, %v2298
    %v2315 = vpack.c.b16 %v2301, %v2300
    %v2316 = vpack.c.b16 %v2303, %v2302
    %v2317 = vpack.c.b16 %v2305, %v2304
    %v2318 = vpack.c.b16 %v2307, %v2306
    %v2319 = vpack.c.b16 %v2309, %v2308
    %v2320 = vpack.c.b16 %v2311, %v2310
    %v2321 = vpack.c.b16 %v2313, %v2312
    %2330 = vmatprep.subr.bf16.mxu0 0
    %2331 = vmatpush1.bf16.msra.mxu0 %v2314
    %2332 = vmatprep.subr.bf16.mxu0 0
    %2333 = vmatpush1.bf16.msra.mxu0 %v2315
    %2334 = vmatprep.subr.bf16.mxu0 0
    %2335 = vmatpush1.bf16.msra.mxu0 %v2316
    %2336 = vmatprep.subr.bf16.mxu0 0
    %2337 = vmatpush1.bf16.msra.mxu0 %v2317
    %2338 = vmatprep.subr.bf16.mxu0 0
    %2339 = vmatpush1.bf16.msra.mxu0 %v2318
    %2340 = vmatprep.subr.bf16.mxu0 0
    %2341 = vmatpush1.bf16.msra.mxu0 %v2319
    %2342 = vmatprep.subr.bf16.mxu0 0
    %2343 = vmatpush1.bf16.msra.mxu0 %v2320
    %2344 = vmatprep.subr.bf16.mxu0 0
    %2345 = vmatpush1.bf16.msra.mxu0 %v2321
    %2346 = vmatprep.subr.bf16.mxu0 0
    %2347 = vmatpush1.bf16.msra.mxu0 0
    %2348 = vmatprep.subr.bf16.mxu0 0
    %2349 = vmatpush1.bf16.msra.mxu0 0
    %2350 = vmatprep.subr.bf16.mxu0 0
    %2351 = vmatpush1.bf16.msra.mxu0 0
    %2352 = vmatprep.subr.bf16.mxu0 0
    %2353 = vmatpush1.bf16.msra.mxu0 0
    %2354 = vmatprep.subr.bf16.mxu0 0
    %2355 = vmatpush1.bf16.msra.mxu0 0
    %2356 = vmatprep.subr.bf16.mxu0 0
    %2357 = vmatpush1.bf16.msra.mxu0 0
    %2358 = vmatprep.subr.bf16.mxu0 0
    %2359 = vmatpush1.bf16.msra.mxu0 0
    %2360 = vmatprep.subr.bf16.mxu0 0
    %2361 = vmatpush1.bf16.msra.mxu0 0
    %2362 = vmatprep.mubr.bf16.mxu0 0
    %2363 = vmatmul.mubr.bf16.gmra.mrb[0].mxu0 %v2259
    %v2364 = vpop.f32.mrb[0].mxu0
    %v2365 = vadd.f32 0.0, %v2364
    %v2366 = vpop.f32.mrb[0].mxu0
    %v2367 = vpop.f32.mrb[0].mxu0
    %v2368 = vadd.f32 0.0, %v2367
    %v2369 = vpop.f32.mrb[0].mxu0
    %2370 = vmatprep.mubr.bf16.mxu0 0
    %2371 = vmatmul.mubr.bf16.gmra.mrb[0].mxu0 %v2261
    %v2372 = vpop.f32.mrb[0].mxu0
    %v2373 = vadd.f32 0.0, %v2372
    %v2374 = vpop.f32.mrb[0].mxu0
    %v2375 = vpop.f32.mrb[0].mxu0
    %v2376 = vadd.f32 0.0, %v2375
    %v2377 = vpop.f32.mrb[0].mxu0
    %2378 = vmatprep.mubr.bf16.mxu0 0
    %2379 = vmatmul.mubr.bf16.gmra.mrb[0].mxu0 %v2263
    %v2380 = vpop.f32.mrb[0].mxu0
    %v2381 = vadd.f32 0.0, %v2380
    %v2382 = vpop.f32.mrb[0].mxu0
    %v2383 = vpop.f32.mrb[0].mxu0
    %v2384 = vadd.f32 0.0, %v2383
    %v2385 = vpop.f32.mrb[0].mxu0
    %2386 = vmatprep.mubr.bf16.mxu0 0
    %2387 = vmatmul.mubr.bf16.gmra.mrb[0].mxu0 %v2265
    %v2388 = vpop.f32.mrb[0].mxu0
    %v2389 = vadd.f32 0.0, %v2388
    %v2390 = vpop.f32.mrb[0].mxu0
    %v2391 = vpop.f32.mrb[0].mxu0
    %v2392 = vadd.f32 0.0, %v2391
    %v2393 = vpop.f32.mrb[0].mxu0
    %2394 = vmatprep.mubr.bf16.mxu0 0
    %2395 = vmatmul.mubr.bf16.gmra.mrb[0].mxu0 %v2267
    %v2396 = vpop.f32.mrb[0].mxu0
    %v2397 = vadd.f32 0.0, %v2396
    %v2398 = vpop.f32.mrb[0].mxu0
    %v2399 = vpop.f32.mrb[0].mxu0
    %v2400 = vadd.f32 0.0, %v2399
    %v2401 = vpop.f32.mrb[0].mxu0
    %2402 = vmatprep.mubr.bf16.mxu0 0
    %2403 = vmatmul.mubr.bf16.gmra.mrb[0].mxu0 %v2269
    %v2404 = vpop.f32.mrb[0].mxu0
    %v2405 = vadd.f32 0.0, %v2404
    %v2406 = vpop.f32.mrb[0].mxu0
    %v2407 = vpop.f32.mrb[0].mxu0
    %v2408 = vadd.f32 0.0, %v2407
    %v2409 = vpop.f32.mrb[0].mxu0
    %2410 = vmatprep.mubr.bf16.mxu0 0
    %2411 = vmatmul.mubr.bf16.gmra.mrb[0].mxu0 %v2271
    %v2412 = vpop.f32.mrb[0].mxu0
    %v2413 = vadd.f32 0.0, %v2412
    %v2414 = vpop.f32.mrb[0].mxu0
    %v2415 = vpop.f32.mrb[0].mxu0
    %v2416 = vadd.f32 0.0, %v2415
    %v2417 = vpop.f32.mrb[0].mxu0
    %2418 = vmatprep.mubr.bf16.mxu0 0
    %2419 = vmatmul.mubr.bf16.gmra.mrb[0].mxu0 %v2273
    %v2420 = vpop.f32.mrb[0].mxu0
    %v2421 = vadd.f32 0.0, %v2420
    %v2422 = vpop.f32.mrb[0].mxu0
    %v2423 = vpop.f32.mrb[0].mxu0
    %v2424 = vadd.f32 0.0, %v2423
    %v2425 = vpop.f32.mrb[0].mxu0
    %2426 = vdwg.mxu0
    %v2427 = vadd.f32 %v2220, %v2365
    %v2428 = vadd.f32 %v2221, %v2368
    %v2429 = vadd.f32 %v2222, %v2373
    %v2430 = vadd.f32 %v2223, %v2376
    %v2431 = vadd.f32 %v2224, %v2381
    %v2432 = vadd.f32 %v2225, %v2384
    %v2433 = vadd.f32 %v2226, %v2389
    %v2434 = vadd.f32 %v2227, %v2392
    %v2435 = vadd.f32 %v2228, %v2397
    %v2436 = vadd.f32 %v2229, %v2400
    %v2437 = vadd.f32 %v2230, %v2405
    %v2438 = vadd.f32 %v2231, %v2408
    %v2439 = vadd.f32 %v2232, %v2413
    %v2440 = vadd.f32 %v2233, %v2416
    %v2441 = vadd.f32 %v2234, %v2421
    %v2442 = vadd.f32 %v2235, %v2424
    %v2443 = vlaneseq
    %v2444 = vshrl.u32 %v2443, 7
    %v2445 = vadd.s32 %v2444, 8
    %v2446 = vld [vmem:[%s2] sm:$0x1]
    %v2448 = vlaneseq
    %v2449 = vshrl.u32 %v2448, 7
    %v2450 = vsub.s32 0, %v2449
    %v2451 = vrot.slane %v2446, %v2450
    %v2453 = vadd.f32 %v1454, %v2451
    %v2454 = vadd.f32 %v1455, %v2451
    %v2455 = vadd.f32 %v1456, %v2451
    %v2456 = vadd.f32 %v1457, %v2451
    %v2457 = vadd.f32 %v1458, %v2451
    %v2458 = vadd.f32 %v1459, %v2451
    %v2459 = vadd.f32 %v1460, %v2451
    %v2460 = vadd.f32 %v1461, %v2451
    %v2461 = vadd.f32 %v1462, %v2451
    %v2462 = vadd.f32 %v1463, %v2451
    %v2463 = vadd.f32 %v1464, %v2451
    %v2464 = vadd.f32 %v1465, %v2451
    %v2465 = vadd.f32 %v1466, %v2451
    %v2466 = vadd.f32 %v1467, %v2451
    %v2467 = vadd.f32 %v1468, %v2451
    %v2468 = vadd.f32 %v1469, %v2451
    %v2469 = vmax.f32 %v2453, 0.0
    %v2470 = vmax.f32 %v2454, 0.0
    %v2471 = vmax.f32 %v2455, 0.0
    %v2472 = vmax.f32 %v2456, 0.0
    %v2473 = vmax.f32 %v2457, 0.0
    %v2474 = vmax.f32 %v2458, 0.0
    %v2475 = vmax.f32 %v2459, 0.0
    %v2476 = vmax.f32 %v2460, 0.0
    %v2477 = vmax.f32 %v2461, 0.0
    %v2478 = vmax.f32 %v2462, 0.0
    %v2479 = vmax.f32 %v2463, 0.0
    %v2480 = vmax.f32 %v2464, 0.0
    %v2481 = vmax.f32 %v2465, 0.0
    %v2482 = vmax.f32 %v2466, 0.0
    %v2483 = vmax.f32 %v2467, 0.0
    %v2484 = vmax.f32 %v2468, 0.0
    %vm2485 = vcmp.lt.s32.totalorder %v2444, 14
    %vm2486 = vcmp.lt.s32.totalorder %v2445, 14
    %v2487 = vsel %vm2485, 1, 0
    %v2488 = vsel %vm2486, 1, 0
    %vm2489 = vcmp.eq.s32.totalorder %v2487, 1
    %vm2490 = vcmp.eq.s32.totalorder %v2488, 1
    %v2491 = vsel %vm2489, %v2469, 0.0
    %v2492 = vsel %vm2490, %v2470, 0.0
    %v2493 = vsel %vm2489, %v2471, 0.0
    %v2494 = vsel %vm2490, %v2472, 0.0
    %v2495 = vsel %vm2489, %v2473, 0.0
    %v2496 = vsel %vm2490, %v2474, 0.0
    %v2497 = vsel %vm2489, %v2475, 0.0
    %v2498 = vsel %vm2490, %v2476, 0.0
    %v2499 = vsel %vm2489, %v2477, 0.0
    %v2500 = vsel %vm2490, %v2478, 0.0
    %v2501 = vsel %vm2489, %v2479, 0.0
    %v2502 = vsel %vm2490, %v2480, 0.0
    %v2503 = vsel %vm2489, %v2481, 0.0
    %v2504 = vsel %vm2490, %v2482, 0.0
    %v2505 = vsel %vm2489, %v2483, 0.0
    %v2506 = vsel %vm2490, %v2484, 0.0
    %v2507 = vmax.f32 %v2491, %v2492
    %v2508 = vrot.slane %v2507, 4
    %v2509 = vmax.f32 %v2507, %v2508
    %v2510 = vrot.slane %v2509, 2
    %v2511 = vmax.f32 %v2509, %v2510
    %v2512 = vrot.slane %v2511, 1
    %v2513 = vmax.f32 %v2511, %v2512
    %v2514 = vmax.f32 %v2493, %v2494
    %v2515 = vrot.slane %v2514, 4
    %v2516 = vmax.f32 %v2514, %v2515
    %v2517 = vrot.slane %v2516, 2
    %v2518 = vmax.f32 %v2516, %v2517
    %v2519 = vrot.slane %v2518, 1
    %v2520 = vmax.f32 %v2518, %v2519
    %v2521 = vmax.f32 %v2495, %v2496
    %v2522 = vrot.slane %v2521, 4
    %v2523 = vmax.f32 %v2521, %v2522
    %v2524 = vrot.slane %v2523, 2
    %v2525 = vmax.f32 %v2523, %v2524
    %v2526 = vrot.slane %v2525, 1
    %v2527 = vmax.f32 %v2525, %v2526
    %v2528 = vmax.f32 %v2497, %v2498
    %v2529 = vrot.slane %v2528, 4
    %v2530 = vmax.f32 %v2528, %v2529
    %v2531 = vrot.slane %v2530, 2
    %v2532 = vmax.f32 %v2530, %v2531
    %v2533 = vrot.slane %v2532, 1
    %v2534 = vmax.f32 %v2532, %v2533
    %v2535 = vmax.f32 %v2499, %v2500
    %v2536 = vrot.slane %v2535, 4
    %v2537 = vmax.f32 %v2535, %v2536
    %v2538 = vrot.slane %v2537, 2
    %v2539 = vmax.f32 %v2537, %v2538
    %v2540 = vrot.slane %v2539, 1
    %v2541 = vmax.f32 %v2539, %v2540
    %v2542 = vmax.f32 %v2501, %v2502
    %v2543 = vrot.slane %v2542, 4
    %v2544 = vmax.f32 %v2542, %v2543
    %v2545 = vrot.slane %v2544, 2
    %v2546 = vmax.f32 %v2544, %v2545
    %v2547 = vrot.slane %v2546, 1
    %v2548 = vmax.f32 %v2546, %v2547
    %v2549 = vmax.f32 %v2503, %v2504
    %v2550 = vrot.slane %v2549, 4
    %v2551 = vmax.f32 %v2549, %v2550
    %v2552 = vrot.slane %v2551, 2
    %v2553 = vmax.f32 %v2551, %v2552
    %v2554 = vrot.slane %v2553, 1
    %v2555 = vmax.f32 %v2553, %v2554
    %v2556 = vmax.f32 %v2505, %v2506
    %v2557 = vrot.slane %v2556, 4
    %v2558 = vmax.f32 %v2556, %v2557
    %v2559 = vrot.slane %v2558, 2
    %v2560 = vmax.f32 %v2558, %v2559
    %v2561 = vrot.slane %v2560, 1
    %v2562 = vmax.f32 %v2560, %v2561
    %v2563 = vld [vmem:[%s2 + $0x1] sm:$0x1]
    %v2565 = vlaneseq
    %v2566 = vshrl.u32 %v2565, 7
    %v2567 = vsub.s32 0, %v2566
    %v2568 = vrot.slane %v2563, %v2567
    %v2570 = vadd.f32 %v2043, %v2568
    %v2571 = vadd.f32 %v2044, %v2568
    %v2572 = vadd.f32 %v2045, %v2568
    %v2573 = vadd.f32 %v2046, %v2568
    %v2574 = vadd.f32 %v2047, %v2568
    %v2575 = vadd.f32 %v2048, %v2568
    %v2576 = vadd.f32 %v2049, %v2568
    %v2577 = vadd.f32 %v2050, %v2568
    %v2578 = vadd.f32 %v2051, %v2568
    %v2579 = vadd.f32 %v2052, %v2568
    %v2580 = vadd.f32 %v2053, %v2568
    %v2581 = vadd.f32 %v2054, %v2568
    %v2582 = vadd.f32 %v2055, %v2568
    %v2583 = vadd.f32 %v2056, %v2568
    %v2584 = vadd.f32 %v2057, %v2568
    %v2585 = vadd.f32 %v2058, %v2568
    %v2586 = vmax.f32 %v2570, 0.0
    %v2587 = vmax.f32 %v2571, 0.0
    %v2588 = vmax.f32 %v2572, 0.0
    %v2589 = vmax.f32 %v2573, 0.0
    %v2590 = vmax.f32 %v2574, 0.0
    %v2591 = vmax.f32 %v2575, 0.0
    %v2592 = vmax.f32 %v2576, 0.0
    %v2593 = vmax.f32 %v2577, 0.0
    %v2594 = vmax.f32 %v2578, 0.0
    %v2595 = vmax.f32 %v2579, 0.0
    %v2596 = vmax.f32 %v2580, 0.0
    %v2597 = vmax.f32 %v2581, 0.0
    %v2598 = vmax.f32 %v2582, 0.0
    %v2599 = vmax.f32 %v2583, 0.0
    %v2600 = vmax.f32 %v2584, 0.0
    %v2601 = vmax.f32 %v2585, 0.0
    %vm2602 = vcmp.lt.s32.totalorder %v2444, 13
    %vm2603 = vcmp.lt.s32.totalorder %v2445, 13
    %v2604 = vsel %vm2602, 1, 0
    %v2605 = vsel %vm2603, 1, 0
    %vm2606 = vcmp.eq.s32.totalorder %v2604, 1
    %vm2607 = vcmp.eq.s32.totalorder %v2605, 1
    %v2608 = vsel %vm2606, %v2586, 0.0
    %v2609 = vsel %vm2607, %v2587, 0.0
    %v2610 = vsel %vm2606, %v2588, 0.0
    %v2611 = vsel %vm2607, %v2589, 0.0
    %v2612 = vsel %vm2606, %v2590, 0.0
    %v2613 = vsel %vm2607, %v2591, 0.0
    %v2614 = vsel %vm2606, %v2592, 0.0
    %v2615 = vsel %vm2607, %v2593, 0.0
    %v2616 = vsel %vm2606, %v2594, 0.0
    %v2617 = vsel %vm2607, %v2595, 0.0
    %v2618 = vsel %vm2606, %v2596, 0.0
    %v2619 = vsel %vm2607, %v2597, 0.0
    %v2620 = vsel %vm2606, %v2598, 0.0
    %v2621 = vsel %vm2607, %v2599, 0.0
    %v2622 = vsel %vm2606, %v2600, 0.0
    %v2623 = vsel %vm2607, %v2601, 0.0
    %v2624 = vmax.f32 %v2608, %v2609
    %v2625 = vrot.slane %v2624, 4
    %v2626 = vmax.f32 %v2624, %v2625
    %v2627 = vrot.slane %v2626, 2
    %v2628 = vmax.f32 %v2626, %v2627
    %v2629 = vrot.slane %v2628, 1
    %v2630 = vmax.f32 %v2628, %v2629
    %v2631 = vmax.f32 %v2610, %v2611
    %v2632 = vrot.slane %v2631, 4
    %v2633 = vmax.f32 %v2631, %v2632
    %v2634 = vrot.slane %v2633, 2
    %v2635 = vmax.f32 %v2633, %v2634
    %v2636 = vrot.slane %v2635, 1
    %v2637 = vmax.f32 %v2635, %v2636
    %v2638 = vmax.f32 %v2612, %v2613
    %v2639 = vrot.slane %v2638, 4
    %v2640 = vmax.f32 %v2638, %v2639
    %v2641 = vrot.slane %v2640, 2
    %v2642 = vmax.f32 %v2640, %v2641
    %v2643 = vrot.slane %v2642, 1
    %v2644 = vmax.f32 %v2642, %v2643
    %v2645 = vmax.f32 %v2614, %v2615
    %v2646 = vrot.slane %v2645, 4
    %v2647 = vmax.f32 %v2645, %v2646
    %v2648 = vrot.slane %v2647, 2
    %v2649 = vmax.f32 %v2647, %v2648
    %v2650 = vrot.slane %v2649, 1
    %v2651 = vmax.f32 %v2649, %v2650
    %v2652 = vmax.f32 %v2616, %v2617
    %v2653 = vrot.slane %v2652, 4
    %v2654 = vmax.f32 %v2652, %v2653
    %v2655 = vrot.slane %v2654, 2
    %v2656 = vmax.f32 %v2654, %v2655
    %v2657 = vrot.slane %v2656, 1
    %v2658 = vmax.f32 %v2656, %v2657
    %v2659 = vmax.f32 %v2618, %v2619
    %v2660 = vrot.slane %v2659, 4
    %v2661 = vmax.f32 %v2659, %v2660
    %v2662 = vrot.slane %v2661, 2
    %v2663 = vmax.f32 %v2661, %v2662
    %v2664 = vrot.slane %v2663, 1
    %v2665 = vmax.f32 %v2663, %v2664
    %v2666 = vmax.f32 %v2620, %v2621
    %v2667 = vrot.slane %v2666, 4
    %v2668 = vmax.f32 %v2666, %v2667
    %v2669 = vrot.slane %v2668, 2
    %v2670 = vmax.f32 %v2668, %v2669
    %v2671 = vrot.slane %v2670, 1
    %v2672 = vmax.f32 %v2670, %v2671
    %v2673 = vmax.f32 %v2622, %v2623
    %v2674 = vrot.slane %v2673, 4
    %v2675 = vmax.f32 %v2673, %v2674
    %v2676 = vrot.slane %v2675, 2
    %v2677 = vmax.f32 %v2675, %v2676
    %v2678 = vrot.slane %v2677, 1
    %v2679 = vmax.f32 %v2677, %v2678
    %v2680 = vld [vmem:[%s2 + $0x2] sm:$0x1]
    %v2682 = vlaneseq
    %v2683 = vshrl.u32 %v2682, 7
    %v2684 = vsub.s32 0, %v2683
    %v2685 = vrot.slane %v2680, %v2684
    %v2687 = vadd.f32 %v2427, %v2685
    %v2688 = vadd.f32 %v2428, %v2685
    %v2689 = vadd.f32 %v2429, %v2685
    %v2690 = vadd.f32 %v2430, %v2685
    %v2691 = vadd.f32 %v2431, %v2685
    %v2692 = vadd.f32 %v2432, %v2685
    %v2693 = vadd.f32 %v2433, %v2685
    %v2694 = vadd.f32 %v2434, %v2685
    %v2695 = vadd.f32 %v2435, %v2685
    %v2696 = vadd.f32 %v2436, %v2685
    %v2697 = vadd.f32 %v2437, %v2685
    %v2698 = vadd.f32 %v2438, %v2685
    %v2699 = vadd.f32 %v2439, %v2685
    %v2700 = vadd.f32 %v2440, %v2685
    %v2701 = vadd.f32 %v2441, %v2685
    %v2702 = vadd.f32 %v2442, %v2685
    %v2703 = vmax.f32 %v2687, 0.0
    %v2704 = vmax.f32 %v2688, 0.0
    %v2705 = vmax.f32 %v2689, 0.0
    %v2706 = vmax.f32 %v2690, 0.0
    %v2707 = vmax.f32 %v2691, 0.0
    %v2708 = vmax.f32 %v2692, 0.0
    %v2709 = vmax.f32 %v2693, 0.0
    %v2710 = vmax.f32 %v2694, 0.0
    %v2711 = vmax.f32 %v2695, 0.0
    %v2712 = vmax.f32 %v2696, 0.0
    %v2713 = vmax.f32 %v2697, 0.0
    %v2714 = vmax.f32 %v2698, 0.0
    %v2715 = vmax.f32 %v2699, 0.0
    %v2716 = vmax.f32 %v2700, 0.0
    %v2717 = vmax.f32 %v2701, 0.0
    %v2718 = vmax.f32 %v2702, 0.0
    %vm2719 = vcmp.lt.s32.totalorder %v2444, 12
    %vm2720 = vcmp.lt.s32.totalorder %v2445, 12
    %v2721 = vsel %vm2719, 1, 0
    %v2722 = vsel %vm2720, 1, 0
    %vm2723 = vcmp.eq.s32.totalorder %v2721, 1
    %vm2724 = vcmp.eq.s32.totalorder %v2722, 1
    %v2725 = vsel %vm2723, %v2703, 0.0
    %v2726 = vsel %vm2724, %v2704, 0.0
    %v2727 = vsel %vm2723, %v2705, 0.0
    %v2728 = vsel %vm2724, %v2706, 0.0
    %v2729 = vsel %vm2723, %v2707, 0.0
    %v2730 = vsel %vm2724, %v2708, 0.0
    %v2731 = vsel %vm2723, %v2709, 0.0
    %v2732 = vsel %vm2724, %v2710, 0.0
    %v2733 = vsel %vm2723, %v2711, 0.0
    %v2734 = vsel %vm2724, %v2712, 0.0
    %v2735 = vsel %vm2723, %v2713, 0.0
    %v2736 = vsel %vm2724, %v2714, 0.0
    %v2737 = vsel %vm2723, %v2715, 0.0
    %v2738 = vsel %vm2724, %v2716, 0.0
    %v2739 = vsel %vm2723, %v2717, 0.0
    %v2740 = vsel %vm2724, %v2718, 0.0
    %v2741 = vmax.f32 %v2725, %v2726
    %v2742 = vrot.slane %v2741, 4
    %v2743 = vmax.f32 %v2741, %v2742
    %v2744 = vrot.slane %v2743, 2
    %v2745 = vmax.f32 %v2743, %v2744
    %v2746 = vrot.slane %v2745, 1
    %v2747 = vmax.f32 %v2745, %v2746
    %v2748 = vmax.f32 %v2727, %v2728
    %v2749 = vrot.slane %v2748, 4
    %v2750 = vmax.f32 %v2748, %v2749
    %v2751 = vrot.slane %v2750, 2
    %v2752 = vmax.f32 %v2750, %v2751
    %v2753 = vrot.slane %v2752, 1
    %v2754 = vmax.f32 %v2752, %v2753
    %v2755 = vmax.f32 %v2729, %v2730
    %v2756 = vrot.slane %v2755, 4
    %v2757 = vmax.f32 %v2755, %v2756
    %v2758 = vrot.slane %v2757, 2
    %v2759 = vmax.f32 %v2757, %v2758
    %v2760 = vrot.slane %v2759, 1
    %v2761 = vmax.f32 %v2759, %v2760
    %v2762 = vmax.f32 %v2731, %v2732
    %v2763 = vrot.slane %v2762, 4
    %v2764 = vmax.f32 %v2762, %v2763
    %v2765 = vrot.slane %v2764, 2
    %v2766 = vmax.f32 %v2764, %v2765
    %v2767 = vrot.slane %v2766, 1
    %v2768 = vmax.f32 %v2766, %v2767
    %v2769 = vmax.f32 %v2733, %v2734
    %v2770 = vrot.slane %v2769, 4
    %v2771 = vmax.f32 %v2769, %v2770
    %v2772 = vrot.slane %v2771, 2
    %v2773 = vmax.f32 %v2771, %v2772
    %v2774 = vrot.slane %v2773, 1
    %v2775 = vmax.f32 %v2773, %v2774
    %v2776 = vmax.f32 %v2735, %v2736
    %v2777 = vrot.slane %v2776, 4
    %v2778 = vmax.f32 %v2776, %v2777
    %v2779 = vrot.slane %v2778, 2
    %v2780 = vmax.f32 %v2778, %v2779
    %v2781 = vrot.slane %v2780, 1
    %v2782 = vmax.f32 %v2780, %v2781
    %v2783 = vmax.f32 %v2737, %v2738
    %v2784 = vrot.slane %v2783, 4
    %v2785 = vmax.f32 %v2783, %v2784
    %v2786 = vrot.slane %v2785, 2
    %v2787 = vmax.f32 %v2785, %v2786
    %v2788 = vrot.slane %v2787, 1
    %v2789 = vmax.f32 %v2787, %v2788
    %v2790 = vmax.f32 %v2739, %v2740
    %v2791 = vrot.slane %v2790, 4
    %v2792 = vmax.f32 %v2790, %v2791
    %v2793 = vrot.slane %v2792, 2
    %v2794 = vmax.f32 %v2792, %v2793
    %v2795 = vrot.slane %v2794, 1
    %v2796 = vmax.f32 %v2794, %v2795
    %vm2805 = vcmask 1041409
    %v2806 = vsel %vm2805, %v2520, %v2513
    %vm2807 = vcmask 1042434
    %v2808 = vsel %vm2807, %v2527, %v2806
    %vm2809 = vcmask 1043459
    %v2810 = vsel %vm2809, %v2534, %v2808
    %vm2811 = vcmask 1044484
    %v2812 = vsel %vm2811, %v2541, %v2810
    %vm2813 = vcmask 1045509
    %v2814 = vsel %vm2813, %v2548, %v2812
    %vm2815 = vcmask 1046534
    %v2816 = vsel %vm2815, %v2555, %v2814
    %vm2817 = vcmask 1047559
    %v2818 = vsel %vm2817, %v2562, %v2816
    %v2828 = vsel %vm2805, %v2637, %v2630
    %v2829 = vsel %vm2807, %v2644, %v2828
    %v2830 = vsel %vm2809, %v2651, %v2829
    %v2831 = vsel %vm2811, %v2658, %v2830
    %v2832 = vsel %vm2813, %v2665, %v2831
    %v2833 = vsel %vm2815, %v2672, %v2832
    %v2834 = vsel %vm2817, %v2679, %v2833
    %v2844 = vsel %vm2805, %v2754, %v2747
    %v2845 = vsel %vm2807, %v2761, %v2844
    %v2846 = vsel %vm2809, %v2768, %v2845
    %v2847 = vsel %vm2811, %v2775, %v2846
    %v2848 = vsel %vm2813, %v2782, %v2847
    %v2849 = vsel %vm2815, %v2789, %v2848
    %v2850 = vsel %vm2817, %v2796, %v2849
    %v2852 = vld [vmem:[#allocation8] sm:$0xff]
    %v2853 = vld [vmem:[#allocation8 + $0x8] sm:$0xff]
    %v2854 = vld [vmem:[#allocation8 + $0x10] sm:$0xff]
    %v2855 = vld [vmem:[#allocation8 + $0x18] sm:$0xff]
    %v2856 = vld [vmem:[#allocation8 + $0x20] sm:$0xff]
    %v2857 = vld [vmem:[#allocation8 + $0x28] sm:$0xff]
    %v2858 = vld [vmem:[#allocation8 + $0x30] sm:$0xff]
    %v2859 = vld [vmem:[#allocation8 + $0x38] sm:$0xff]
    %v2860 = vld [vmem:[#allocation8 + $0x40] sm:$0xff]
    %v2861 = vld [vmem:[#allocation8 + $0x48] sm:$0xff]
    %v2862 = vld [vmem:[#allocation8 + $0x50] sm:$0xff]
    %v2863 = vld [vmem:[#allocation8 + $0x58] sm:$0xff]
    %v2864 = vld [vmem:[#allocation8 + $0x60] sm:$0xff]
    %v2865 = vld [vmem:[#allocation8 + $0x68] sm:$0xff]
    %v2866 = vld [vmem:[#allocation8 + $0x70] sm:$0xff]
    %v2867 = vld [vmem:[#allocation8 + $0x78] sm:$0xff]
    %v2868 = vld [vmem:[#allocation8 + $0x80] sm:$0xff]
    %v2869 = vld [vmem:[#allocation8 + $0x88] sm:$0xff]
    %v2870 = vld [vmem:[#allocation8 + $0x90] sm:$0xff]
    %v2871 = vld [vmem:[#allocation8 + $0x98] sm:$0xff]
    %v2872 = vld [vmem:[#allocation8 + $0xa0] sm:$0xff]
    %v2873 = vld [vmem:[#allocation8 + $0xa8] sm:$0xff]
    %v2874 = vld [vmem:[#allocation8 + $0xb0] sm:$0xff]
    %v2875 = vld [vmem:[#allocation8 + $0xb8] sm:$0xff]
    %v2876 = vld [vmem:[#allocation8 + $0xc0] sm:$0xff]
    %v2877 = vld [vmem:[#allocation8 + $0xc8] sm:$0xff]
    %v2878 = vld [vmem:[#allocation8 + $0xd0] sm:$0xff]
    %v2879 = vld [vmem:[#allocation8 + $0xd8] sm:$0xff]
    %v2880 = vld [vmem:[#allocation8 + $0xe0] sm:$0xff]
    %v2881 = vld [vmem:[#allocation8 + $0xe8] sm:$0xff]
    %v2882 = vld [vmem:[#allocation8 + $0xf0] sm:$0xff]
    %v2883 = vld [vmem:[#allocation8 + $0xf8] sm:$0xff]
    %v2884 = vld [vmem:[#allocation8 + $0x100] sm:$0xff]
    %v2885 = vld [vmem:[#allocation8 + $0x108] sm:$0xff]
    %v2886 = vld [vmem:[#allocation8 + $0x110] sm:$0xff]
    %v2887 = vld [vmem:[#allocation8 + $0x118] sm:$0xff]
    %v2888 = vld [vmem:[#allocation8 + $0x120] sm:$0xff]
    %v2889 = vld [vmem:[#allocation8 + $0x128] sm:$0xff]
    %v2890 = vld [vmem:[#allocation8 + $0x130] sm:$0xff]
    %v2891 = vld [vmem:[#allocation8 + $0x138] sm:$0xff]
    %v2892 = vld [vmem:[#allocation8 + $0x140] sm:$0xff]
    %v2893 = vld [vmem:[#allocation8 + $0x148] sm:$0xff]
    %v2894 = vld [vmem:[#allocation8 + $0x150] sm:$0xff]
    %v2895 = vld [vmem:[#allocation8 + $0x158] sm:$0xff]
    %v2896 = vld [vmem:[#allocation8 + $0x160] sm:$0xff]
    %v2897 = vld [vmem:[#allocation8 + $0x168] sm:$0xff]
    %v2898 = vld [vmem:[#allocation8 + $0x170] sm:$0xff]
    %v2899 = vld [vmem:[#allocation8 + $0x178] sm:$0xff]
    %2900 = vmatprep.subr.mxu0 0.0
    %2901 = vmatpush1.msra.mxu0 %v2852
    %2902 = vmatprep.subr.mxu0 0.0
    %2903 = vmatpush1.msra.mxu0 %v2853
    %2904 = vmatprep.subr.mxu0 0.0
    %2905 = vmatpush1.msra.mxu0 %v2854
    %2906 = vmatprep.subr.mxu0 0.0
    %2907 = vmatpush1.msra.mxu0 %v2855
    %2908 = vmatprep.subr.mxu0 0.0
    %2909 = vmatpush1.msra.mxu0 %v2856
    %2910 = vmatprep.subr.mxu0 0.0
    %2911 = vmatpush1.msra.mxu0 %v2857
    %2912 = vmatprep.subr.mxu0 0.0
    %2913 = vmatpush1.msra.mxu0 %v2858
    %2914 = vmatprep.subr.mxu0 0.0
    %2915 = vmatpush1.msra.mxu0 %v2859
    %2916 = vmatprep.subr.mxu0 0.0
    %2917 = vmatpush1.msra.mxu0 %v2860
    %2918 = vmatprep.subr.mxu0 0.0
    %2919 = vmatpush1.msra.mxu0 %v2861
    %2920 = vmatprep.subr.mxu0 0.0
    %2921 = vmatpush1.msra.mxu0 %v2862
    %2922 = vmatprep.subr.mxu0 0.0
    %2923 = vmatpush1.msra.mxu0 %v2863
    %2924 = vmatprep.subr.mxu0 0.0
    %2925 = vmatpush1.msra.mxu0 %v2864
    %2926 = vmatprep.subr.mxu0 0.0
    %2927 = vmatpush1.msra.mxu0 %v2865
    %2928 = vmatprep.subr.mxu0 0.0
    %2929 = vmatpush1.msra.mxu0 %v2866
    %2930 = vmatprep.subr.mxu0 0.0
    %2931 = vmatpush1.msra.mxu0 %v2867
    %2932 = vmatprep.subr.mxu0 0.0
    %2933 = vmatpush1.msra.mxu0 %v2868
    %2934 = vmatprep.subr.mxu0 0.0
    %2935 = vmatpush1.msra.mxu0 %v2869
    %2936 = vmatprep.subr.mxu0 0.0
    %2937 = vmatpush1.msra.mxu0 %v2870
    %2938 = vmatprep.subr.mxu0 0.0
    %2939 = vmatpush1.msra.mxu0 %v2871
    %2940 = vmatprep.subr.mxu0 0.0
    %2941 = vmatpush1.msra.mxu0 %v2872
    %2942 = vmatprep.subr.mxu0 0.0
    %2943 = vmatpush1.msra.mxu0 %v2873
    %2944 = vmatprep.subr.mxu0 0.0
    %2945 = vmatpush1.msra.mxu0 %v2874
    %2946 = vmatprep.subr.mxu0 0.0
    %2947 = vmatpush1.msra.mxu0 %v2875
    %2948 = vmatprep.subr.mxu0 0.0
    %2949 = vmatpush1.msra.mxu0 %v2876
    %2950 = vmatprep.subr.mxu0 0.0
    %2951 = vmatpush1.msra.mxu0 %v2877
    %2952 = vmatprep.subr.mxu0 0.0
    %2953 = vmatpush1.msra.mxu0 %v2878
    %2954 = vmatprep.subr.mxu0 0.0
    %2955 = vmatpush1.msra.mxu0 %v2879
    %2956 = vmatprep.subr.mxu0 0.0
    %2957 = vmatpush1.msra.mxu0 %v2880
    %2958 = vmatprep.subr.mxu0 0.0
    %2959 = vmatpush1.msra.mxu0 %v2881
    %2960 = vmatprep.subr.mxu0 0.0
    %2961 = vmatpush1.msra.mxu0 %v2882
    %2962 = vmatprep.subr.mxu0 0.0
    %2963 = vmatpush1.msra.mxu0 %v2883
    %2964 = vmatprep.mubr.f32.mxu0 %v2834
    %2965 = vmatmul.mubr.f32.gmra.mrb[0].mxu0 %v2818
    %v2966 = vpop.f32.mrb[0].mxu0
    %v2967 = vadd.f32 0.0, %v2966
    %v2968 = vpop.f32.mrb[0].mxu0
    %2969 = vdwg.mxu0
    %2970 = vmatprep.subr.mxu0 0.0
    %2971 = vmatpush1.msra.mxu0 %v2884
    %2972 = vmatprep.subr.mxu0 0.0
    %2973 = vmatpush1.msra.mxu0 %v2885
    %2974 = vmatprep.subr.mxu0 0.0
    %2975 = vmatpush1.msra.mxu0 %v2886
    %2976 = vmatprep.subr.mxu0 0.0
    %2977 = vmatpush1.msra.mxu0 %v2887
    %2978 = vmatprep.subr.mxu0 0.0
    %2979 = vmatpush1.msra.mxu0 %v2888
    %2980 = vmatprep.subr.mxu0 0.0
    %2981 = vmatpush1.msra.mxu0 %v2889
    %2982 = vmatprep.subr.mxu0 0.0
    %2983 = vmatpush1.msra.mxu0 %v2890
    %2984 = vmatprep.subr.mxu0 0.0
    %2985 = vmatpush1.msra.mxu0 %v2891
    %2986 = vmatprep.subr.mxu0 0.0
    %2987 = vmatpush1.msra.mxu0 %v2892
    %2988 = vmatprep.subr.mxu0 0.0
    %2989 = vmatpush1.msra.mxu0 %v2893
    %2990 = vmatprep.subr.mxu0 0.0
    %2991 = vmatpush1.msra.mxu0 %v2894
    %2992 = vmatprep.subr.mxu0 0.0
    %2993 = vmatpush1.msra.mxu0 %v2895
    %2994 = vmatprep.subr.mxu0 0.0
    %2995 = vmatpush1.msra.mxu0 %v2896
    %2996 = vmatprep.subr.mxu0 0.0
    %2997 = vmatpush1.msra.mxu0 %v2897
    %2998 = vmatprep.subr.mxu0 0.0
    %2999 = vmatpush1.msra.mxu0 %v2898
    %3000 = vmatprep.subr.mxu0 0.0
    %3001 = vmatpush1.msra.mxu0 %v2899
    %3002 = vmatprep.subr.mxu0 0.0
    %3003 = vmatpush1.msra.mxu0 0.0
    %3004 = vmatprep.subr.mxu0 0.0
    %3005 = vmatpush1.msra.mxu0 0.0
    %3006 = vmatprep.subr.mxu0 0.0
    %3007 = vmatpush1.msra.mxu0 0.0
    %3008 = vmatprep.subr.mxu0 0.0
    %3009 = vmatpush1.msra.mxu0 0.0
    %3010 = vmatprep.subr.mxu0 0.0
    %3011 = vmatpush1.msra.mxu0 0.0
    %3012 = vmatprep.subr.mxu0 0.0
    %3013 = vmatpush1.msra.mxu0 0.0
    %3014 = vmatprep.subr.mxu0 0.0
    %3015 = vmatpush1.msra.mxu0 0.0
    %3016 = vmatprep.subr.mxu0 0.0
    %3017 = vmatpush1.msra.mxu0 0.0
    %3018 = vmatprep.subr.mxu0 0.0
    %3019 = vmatpush1.msra.mxu0 0.0
    %3020 = vmatprep.subr.mxu0 0.0
    %3021 = vmatpush1.msra.mxu0 0.0
    %3022 = vmatprep.subr.mxu0 0.0
    %3023 = vmatpush1.msra.mxu0 0.0
    %3024 = vmatprep.subr.mxu0 0.0
    %3025 = vmatpush1.msra.mxu0 0.0
    %3026 = vmatprep.subr.mxu0 0.0
    %3027 = vmatpush1.msra.mxu0 0.0
    %3028 = vmatprep.subr.mxu0 0.0
    %3029 = vmatpush1.msra.mxu0 0.0
    %3030 = vmatprep.subr.mxu0 0.0
    %3031 = vmatpush1.msra.mxu0 0.0
    %3032 = vmatprep.subr.mxu0 0.0
    %3033 = vmatpush1.msra.mxu0 0.0
    %3034 = vmatprep.mubr.f32.mxu0 0.0
    %3035 = vmatmul.mubr.f32.gmra.mrb[0].mxu0 %v2850
    %v3036 = vpop.f32.mrb[0].mxu0
    %v3037 = vadd.f32 %v2967, %v3036
    %v3038 = vpop.f32.mrb[0].mxu0
    %3039 = vdwg.mxu0
    %v3040 = vld [vmem:[%s4] sm:$0x1]
    %v3042 = vlaneseq
    %v3043 = vshrl.u32 %v3042, 7
    %v3044 = vsub.s32 0, %v3043
    %v3045 = vrot.slane %v3040, %v3044
    %v3047 = vadd.f32 %v3037, %v3045
    %v3048 = vsub.f32 0.0, %v3047
    %v3049 = vmul.f32 %v3048, 1.442695
    %v3050 = vpow.pop %v3049
    %v3051 = vadd.f32 %v3050, 1.0
    %v3052 = vrcp.pop %v3051
    %v3053 = vmul.f32 1.0, %v3052
    %3055 = vrot.lane.b32.xlu0 %v3037, 127
    %v3056 = vpop.permute.xlu0 %3055
    %v3058 = vmul.f32 %v3053, %v3056
    %3059 = vrot.lane.b32.xlu0 %v3045, 127
    %v3060 = vpop.permute.xlu0 %3059
    %v3062 = vadd.f32 %v3058, %v3060
    %v3063 = vlaneseq
    %v3064 = vand.u32 %v3063, 127
    %vm3065 = vcmp.eq.s32.totalorder %v3064, 0
    %vm3066 = vcmp.eq.s32.totalorder %v3064, 1
    %3068 = vset.pattern.permute.xlu0 0
    %3069 = vperm.xlu0 %3068, %v3053
    %v3070 = vpop.permute.xlu0 %3069
    %v3072 = vsel %vm3066, %v3070, 0.0
    %3074 = vset.pattern.permute.xlu0 0
    %3075 = vperm.xlu0 %3074, %v3062
    %v3076 = vpop.permute.xlu0 %3075
    %v3078 = vsel %vm3065, %v3076, %v3072
    %3079 = vst [vmem:[#allocation9] sm:$0xff] %v3078
    // Predicated region
    $region34: #{tpu_custom_call.1} parent=1 // pred_check
      _
    $region35: #{tpu_custom_call.1} parent=1 // pred_check_branch
      %3081 = sbr.rel (0) target = $region37
    $region36: #{tpu_custom_call.1} parent=1 // pred_region
      %s3083 = ssub.s32 128, 128
      %3084 = vsyncadd [#allocation5], %s3083
      %s3086 = sshll.u32 [#allocation9], 4
      %s3087 = int_to_ptr.vmem [resolvable:$true] %s3086
      %3089 = dma.vmem_to_hbm [thread:$0]  %s3087, 128, %s5, [#allocation5]
    $region37: #{tpu_custom_call.1} parent=1 // pred_fallthru
      _
    // Predicated region
    $region38: #{tpu_custom_call.1} parent=1 // pred_check
      _
    $region39: #{tpu_custom_call.1} parent=1 // pred_check_branch
      %3091 = sbr.rel (0) target = $region41
    $region40: #{tpu_custom_call.1} parent=1 // pred_region
      %3092 = dma.done [#allocation5], 128
    $region41: #{tpu_custom_call.1} parent=1 // pred_fallthru
      _
    %3093 = vsyncpa [#allocation4], 1
    %3094 = vsyncpa [#allocation7], 1
    %3095 = vsyncpa [#allocation5], 1

</llo_original>
